<compile_context>
chip_gen: v7x
topology: tpu7x:2x2x1
jax: 0.10.0
libtpu: 0.0.40
codegen_flags: <defaults>
</compile_context>

<pallas_src>
import math

import jax
import jax.numpy as jnp
from jax import lax
from jax.experimental import pallas as pl
from jax.experimental.pallas import tpu as pltpu


# ----------------------------------------------------------------------------
# Kernel factory: one (batch, head-group) grid step.
# ----------------------------------------------------------------------------
def _make_kernel(return_attn: bool, attn_dtype):
    def kernel(
        x_ref,                              # [1, S, Hid] f32  (residual / LN path)
        xb_ref,                             # [1, S, Hid] bf16 (matmul path, pre-cast)
        wq_ref, wk_ref, wv_ref,             # [Hid, G*D]  bf16 (wq pre-scaled by 1/sqrt(D))
        wo_ref,                             # [G*D, Hid]  bf16
        cos_ref, sins_ref,                  # [S, D] f32  (sins has rotate-half sign folded)
        bq_ref, bk_ref,                     # [S, 1] f32  (mean(cbias)*0.1, q-side pre-scaled)
        mask_ref,                           # [S, S] f32  additive causal mask (0 / -inf)
        g1_ref, b1_ref, g2_ref, b2_ref,     # [1, Hid] f32 LayerNorm params
        w1_ref, fb1_ref,                    # [Hid, 4Hid] bf16, [1, 4Hid] f32
        w2_ref, fb2_ref,                    # [4Hid, Hid] bf16, [1, Hid] f32
        out_ref,                            # [1, S, Hid] f32
        *rest,                              # (attn_ref?) + o_acc scratch
    ):
        if return_attn:
            attn_ref, o_acc = rest          # attn_ref: [1, G, S, S]
        else:
            (o_acc,) = rest                 # o_acc: [S, Hid] f32 VMEM scratch

        g_idx = pl.program_id(1)
        n_grp = pl.num_programs(1)

        S = x_ref.shape[1]
        D = cos_ref.shape[-1]
        GD = wq_ref.shape[-1]
        G = GD // D
        half = D // 2
        bf16 = jnp.bfloat16
        f32 = jnp.float32

        @pl.when(g_idx == 0)
        def _():
            o_acc[...] = jnp.zeros_like(o_acc)

        xb = xb_ref[0]                      # [S, Hid] bf16 (cast hoisted to wrapper)

        # --- group projections: full-width N = G*D MXU tiles, f32 accumulation ---
        q = jnp.dot(xb, wq_ref[...], preferred_element_type=f32)   # [S, GD] (already /sqrt(D))
        k = jnp.dot(xb, wk_ref[...], preferred_element_type=f32)
        v = jnp.dot(xb, wv_ref[...], preferred_element_type=f32)

        q3 = q.reshape(S, G, D)
        k3 = k.reshape(S, G, D)
        v3 = v.reshape(S, G, D).astype(bf16)

        cos3 = cos_ref[...][:, None, :]     # [S, 1, D], broadcast over heads (hoisted)
        sin3 = sins_ref[...][:, None, :]
        bq = bq_ref[...].reshape(S, 1, 1)
        bk = bk_ref[...].reshape(S, 1, 1)

        def rope(t3, bias):
            # rotate_half(t) * sin == swap_halves(t) * sin_signed
            sw = jnp.concatenate([t3[..., half:], t3[..., :half]], axis=-1)
            # TODO(synk): with head_dim >= 128 lanes use pltpu.roll(t3, half, -1)
            # (XLU slot); at sub-vreg head_dim the concat form lowers reliably.
            return t3 * cos3 + sw * sin3 + bias

        qh = rope(q3, bq).astype(bf16)      # [S, G, D] (1/sqrt(D) already folded in)
        kh = rope(k3, bk).astype(bf16)

        # --- per-head scores for the whole group: [G, S, S] ---
        scores = jnp.einsum("sgd,tgd->gst", qh, kh, preferred_element_type=f32)
        scores = scores + mask_ref[...]     # additive causal mask (0 / -inf)

        # --- softmax (f32; reciprocal on the EUP) ---
        m = jnp.max(scores, axis=-1, keepdims=True)
        p = jnp.exp(scores - m)
        denom = jnp.sum(p, axis=-1, keepdims=True)
        w = p * pl.reciprocal(denom, approx=True)                   # [G, S, S]
        # TODO(synk): approx reciprocal -> rows sum to 1 only to ~1e-3; switch the
        # stored-attn path to an exact divide if bit-parity with torch is needed.

        if return_attn:
            attn_ref[0] = w.astype(attn_dtype)

        # --- fold this group's contribution straight into the output projection:
        #     o += concat_g(w_g @ v_g) @ Wo[group rows]  (no explicit head concat) ---
        ho = jnp.einsum("gst,tgd->sgd", w.astype(bf16), v3,
                        preferred_element_type=f32)                 # [S, G, D]
        o_acc[...] += jnp.dot(ho.reshape(S, GD).astype(bf16), wo_ref[...],
                              preferred_element_type=f32)           # [S, Hid]

        # --- after the last group: residual + LN1 + FFN + residual + LN2 ---
        @pl.when(g_idx == n_grp - 1)
        def _():
            x = x_ref[0]                                            # [S, Hid] f32

            def layernorm(t, gamma, beta):
                mu = jnp.mean(t, axis=-1, keepdims=True)
                var = jnp.mean((t - mu) ** 2, axis=-1, keepdims=True)
                return (t - mu) * lax.rsqrt(var + 1e-5) * gamma + beta

            x1 = layernorm(x + o_acc[...], g1_ref[...], b1_ref[...])
            # TODO(synk): on v7x / large Hid, split the FFN into its own pallas_call
            # tiled over the 4*Hid axis instead of keeping W1/W2 resident plus the
            # [S, 4*Hid] f32 intermediate inside the attention kernel.
            h1 = jnp.dot(x1.astype(bf16), w1_ref[...],
                         preferred_element_type=f32) + fb1_ref[...]
            # TODO(synk): torch nn.GELU() is the exact erf form; tanh-approx GELU is
            # used for guaranteed Mosaic lowering (max abs diff ~3e-3).
            h1 = jax.nn.gelu(h1, approximate=True)
            h2 = jnp.dot(h1.astype(bf16), w2_ref[...],
                         preferred_element_type=f32) + fb2_ref[...]
            out_ref[0] = layernorm(x1 + h2, g2_ref[...], b2_ref[...])

    return kernel


# ----------------------------------------------------------------------------
# Helpers: head grouping, VMEM budget from block sizes.
# ----------------------------------------------------------------------------
def _pick_head_group(num_heads, head_dim, target=256):
    """Smallest divisor g of num_heads with g*head_dim >= target (full MXU fill)
    and a legal (8,128) block shape; fall back to all heads per step."""
    for g in range(1, num_heads + 1):
        if num_heads % g:
            continue
        gd = g * head_dim
        if gd < target:
            continue
        if g == num_heads or gd % 128 == 0:
            return g
    return num_heads


def _round_up(v, m):
    return (v + m - 1) // m * m


def _block_bytes(shape, itemsize):
    pad = list(shape)
    pad[-1] = _round_up(pad[-1], 128)
    if len(pad) >= 2:
        pad[-2] = _round_up(pad[-2], 8)
    n = 1
    for d in pad:
        n *= d
    return n * itemsize


def _vmem_limit_bytes(S, Hid, G, D, F, attn_bytes):
    GD = G * D
    blocks = (
        _block_bytes((1, S, Hid), 4) + _block_bytes((1, S, Hid), 2)      # x, xb
        + 3 * _block_bytes((Hid, GD), 2) + _block_bytes((GD, Hid), 2)    # wq/wk/wv, wo
        + 2 * _block_bytes((S, D), 4) + 2 * _block_bytes((S, 1), 4)      # cos/sin, biases
        + _block_bytes((S, S), 4)                                        # causal mask
        + 4 * _block_bytes((1, Hid), 4)                                  # LN params
        + _block_bytes((Hid, F), 2) + _block_bytes((1, F), 4)            # FFN W1, b1
        + _block_bytes((F, Hid), 2) + _block_bytes((1, Hid), 4)          # FFN W2, b2
        + _block_bytes((1, S, Hid), 4)                                   # out
    )
    if attn_bytes:
        blocks += _block_bytes((1, G, S, S), attn_bytes)
    working = (
        _block_bytes((S, Hid), 4)                       # o_acc scratch
        + 4 * G * _block_bytes((S, S), 4)               # scores / exp / probs temporaries
        + 6 * _block_bytes((S, GD), 4)                  # q/k/v + RoPE temporaries
        + 2 * _block_bytes((S, F), 4)                   # FFN intermediate
    )
    est = 2 * blocks + working                          # BlockSpec double-buffering
    try:
        phys = int(pltpu.get_tpu_info().vmem_capacity_bytes)
    except Exception:
        phys = 64 * 1024 * 1024                         # conservative (v7x per-TC)
    # keep ~1/8 headroom for compiler scratch / semaphores
    return int(min(max(est + (4 << 20), 32 << 20), phys * 7 // 8))


# ----------------------------------------------------------------------------
# One-time parameter prep (re-layout / casts / precompute hoisted out of forward).
# ----------------------------------------------------------------------------
def prepare_comrope_params(params, num_heads, seq_len):
    Hid = params["wq"].shape[0]
    assert Hid % num_heads == 0
    D = Hid // num_heads
    assert D % 2 == 0
    S = seq_len
    f32, bf16 = jnp.float32, jnp.bfloat16
    scale = 1.0 / math.sqrt(D)

    # rotary tables (position_ids = arange(S))
    # TODO(synk): custom position_ids would be handled by indexing these tables here.
    inv_freq = 1.0 / (10000.0 ** (jnp.arange(0, D, 2, dtype=f32) / D))
    t = jnp.arange(S, dtype=f32)
    freqs = jnp.einsum("i,j->ij", t, inv_freq)
    emb = jnp.concatenate([freqs, freqs], axis=-1)                   # [S, D]
    sign = jnp.concatenate([-jnp.ones((D // 2,), f32), jnp.ones((D // 2,), f32)])

    # contextual bias term: batch/head independent -> [S, 1]
    cbias = params["contextual_bias"][:S, :S]
    bias = jnp.mean(cbias, axis=-1, keepdims=True) * 0.1             # [S, 1]

    causal = jnp.triu(jnp.ones((S, S), dtype=bool), k=1)
    mask = jnp.where(causal, jnp.float32(-jnp.inf), jnp.float32(0.0))

    return dict(
        hidden_size=Hid, num_heads=num_heads, head_dim=D, seq_len=S,
        # 1/sqrt(D) folded into wq and the q-side bias -> no [S,S] rescale in-kernel.
        wq=(params["wq"] * scale).astype(bf16),
        wk=params["wk"].astype(bf16),
        wv=params["wv"].astype(bf16),
        wo=params["wo"].astype(bf16),
        cos=jnp.cos(emb).astype(f32),
        sin_signed=(jnp.sin(emb) * sign).astype(f32),
        bias_q=(bias * scale).astype(f32),
        bias_k=bias.astype(f32),
        causal_mask=mask.astype(f32),
        ln1_g=params["ln1_g"].astype(f32), ln1_b=params["ln1_b"].astype(f32),
        ln2_g=params["ln2_g"].astype(f32), ln2_b=params["ln2_b"].astype(f32),
        ffn_w1=params["ffn_w1"].astype(bf16), ffn_b1=params["ffn_b1"].astype(f32),
        ffn_w2=params["ffn_w2"].astype(bf16), ffn_b2=params["ffn_b2"].astype(f32),
    )


# ----------------------------------------------------------------------------
# Forward wrapper: BlockSpecs, grid, pallas_call.
# ----------------------------------------------------------------------------
def comrope_layer_forward(x, prep, *, return_attn=True, attn_dtype=jnp.bfloat16,
                          mxu_target=256):
    # TODO(synk): optional attention_mask is not plumbed (None assumed, as in the test).
    B, S, Hid = x.shape
    assert S == prep["seq_len"] and Hid == prep["hidden_size"]
    H, D = prep["num_heads"], prep["head_dim"]
    F = prep["ffn_w1"].shape[-1]
    G = _pick_head_group(H, D, target=mxu_target)
    NG = H // G
    GD = G * D
    f32 = jnp.float32

    xb = x.astype(jnp.bfloat16)          # cast once per forward; reused by every step

    def const2(shape):
        return pl.BlockSpec(shape, lambda b, g, _n=len(shape): (0,) * _n)

    # TODO(synk): constant-index blocks (cos/sin/bias/mask/LN/FFN) would ideally be
    # single-buffered (pipeline_mode=pl.Buffered(1)) to halve their VMEM footprint
    # on v7x; left default-buffered here for maximally portable lowering.
    in_specs = [
        pl.BlockSpec((1, S, Hid), lambda b, g: (b, 0, 0)),   # x  (f32, residual path)
        pl.BlockSpec((1, S, Hid), lambda b, g: (b, 0, 0)),   # xb (bf16, matmul path)
        pl.BlockSpec((Hid, GD), lambda b, g: (0, g)),        # wq (column block per group)
        pl.BlockSpec((Hid, GD), lambda b, g: (0, g)),        # wk
        pl.BlockSpec((Hid, GD), lambda b, g: (0, g)),        # wv
        pl.BlockSpec((GD, Hid), lambda b, g: (g, 0)),        # wo (row block per group)
        const2((S, D)), const2((S, D)),                      # cos, sin_signed
        const2((S, 1)), const2((S, 1)),                      # bias_q, bias_k
        const2((S, S)),                                      # additive causal mask
        const2((1, Hid)), const2((1, Hid)),                  # ln1 gamma / beta
        const2((1, Hid)), const2((1, Hid)),                  # ln2 gamma / beta
        const2((Hid, F)), const2((1, F)),                    # FFN W1, b1
        const2((F, Hid)), const2((1, Hid)),                  # FFN W2, b2
    ]

    out_shape = [jax.ShapeDtypeStruct((B, S, Hid), f32)]
    out_specs = [pl.BlockSpec((1, S, Hid), lambda b, g: (b, 0, 0))]
    if return_attn:
        out_shape.append(jax.ShapeDtypeStruct((B, H, S, S), attn_dtype))
        out_specs.append(pl.BlockSpec((1, G, S, S), lambda b, g: (b, g, 0, 0)))

    vmem_limit = _vmem_limit_bytes(
        S, Hid, G, D, F,
        attn_bytes=(jnp.dtype(attn_dtype).itemsize if return_attn else 0))

    # TODO(synk): for very large S, add a query-tile grid axis (flash-style online
    # softmax) so the score block is [Tq, Tk] instead of a full [S, S] per head.
    outs = pl.pallas_call(
        _make_kernel(return_attn, attn_dtype),
        out_shape=tuple(out_shape),
        grid=(B, NG),
        in_specs=in_specs,
        out_specs=tuple(out_specs),
        scratch_shapes=[pltpu.VMEM((S, Hid), f32)],          # per-batch o_proj accumulator
        compiler_params=pltpu.CompilerParams(
            # batch axis parallel (feeds both v7x TensorCores when B >= 2);
            # head-group axis accumulates into scratch -> arbitrary.
            dimension_semantics=("parallel", "arbitrary"),
            vmem_limit_bytes=vmem_limit,
        ),
    )(
        x, xb,
        prep["wq"], prep["wk"], prep["wv"], prep["wo"],
        prep["cos"], prep["sin_signed"], prep["bias_q"], prep["bias_k"],
        prep["causal_mask"],
        prep["ln1_g"], prep["ln1_b"], prep["ln2_g"], prep["ln2_b"],
        prep["ffn_w1"], prep["ffn_b1"], prep["ffn_w2"], prep["ffn_b2"],
    )

    if return_attn:
        return outs[0], outs[1]
    return outs[0], None


# ----------------------------------------------------------------------------
# Pure-JAX f32 reference (mirrors the PyTorch forward, eval mode).
# ----------------------------------------------------------------------------
def _reference(x, params, num_heads):
    B, S, Hid = x.shape
    D = Hid // num_heads
    inv_freq = 1.0 / (10000.0 ** (jnp.arange(0, D, 2, dtype=jnp.float32) / D))
    t = jnp.arange(S, dtype=jnp.float32)
    freqs = jnp.einsum("i,j->ij", t, inv_freq)
    emb = jnp.concatenate([freqs, freqs], axis=-1)
    cos, sin = jnp.cos(emb), jnp.sin(emb)

    def rot_half(a):
        a1, a2 = a[..., : D // 2], a[..., D // 2:]
        return jnp.concatenate([-a2, a1], axis=-1)

    q = (x @ params["wq"]).reshape(B, S, num_heads, D).transpose(0, 2, 1, 3)
    k = (x @ params["wk"]).reshape(B, S, num_heads, D).transpose(0, 2, 1, 3)
    v = (x @ params["wv"]).reshape(B, S, num_heads, D).transpose(0, 2, 1, 3)

    cbias = params["contextual_bias"][:S, :S]
    cbias = jnp.broadcast_to(cbias[None, None], (B, num_heads, S, S))
    bias_mean = jnp.mean(cbias, axis=-1, keepdims=True) * 0.1

    q = q * cos + rot_half(q) * sin + bias_mean
    k = k * cos + rot_half(k) * sin + bias_mean

    scores = jnp.einsum("bhqd,bhkd->bhqk", q, k) / math.sqrt(D)
    causal = jnp.triu(jnp.ones((S, S), dtype=bool), k=1)
    scores = jnp.where(causal[None, None], -jnp.inf, scores)
    attn = jax.nn.softmax(scores, axis=-1)
    ao = jnp.einsum("bhqk,bhkd->bhqd", attn, v)
    ao = ao.transpose(0, 2, 1, 3).reshape(B, S, Hid) @ params["wo"]

    def ln(a, g, b):
        mu = jnp.mean(a, axis=-1, keepdims=True)
        var = jnp.mean((a - mu) ** 2, axis=-1, keepdims=True)
        return (a - mu) / jnp.sqrt(var + 1e-5) * g + b

    x1 = ln(x + ao, params["ln1_g"], params["ln1_b"])
    h = jax.nn.gelu(x1 @ params["ffn_w1"] + params["ffn_b1"], approximate=False)
    h = h @ params["ffn_w2"] + params["ffn_b2"]
    x2 = ln(x1 + h, params["ln2_g"], params["ln2_b"])
    return x2, attn


# ----------------------------------------------------------------------------
if __name__ == "__main__":
    B, S, Hid, H = 2, 8, 32, 4
    max_seq_len = 16
    F = 4 * Hid

    key = jax.random.PRNGKey(0)
    keys = jax.random.split(key, 12)

    def xavier(k, fan_in, fan_out):
        bound = math.sqrt(6.0 / (fan_in + fan_out))
        return jax.random.uniform(k, (fan_in, fan_out), jnp.float32, -bound, bound)

    params = {
        # projection weights stored as [in, out] (y = x @ W)
        "wq": xavier(keys[0], Hid, Hid),
        "wk": xavier(keys[1], Hid, Hid),
        "wv": xavier(keys[2], Hid, Hid),
        "wo": xavier(keys[3], Hid, Hid),
        # contextual bias: randn * 0.02, lower-triangular (per _init_weights)
        "contextual_bias": jnp.tril(
            jax.random.normal(keys[4], (max_seq_len, max_seq_len), jnp.float32) * 0.02
        ),
        # LayerNorm params (PyTorch defaults: ones / zeros), kept 2-D for TPU
        "ln1_g": jnp.ones((1, Hid), jnp.float32),
        "ln1_b": jnp.zeros((1, Hid), jnp.float32),
        "ln2_g": jnp.ones((1, Hid), jnp.float32),
        "ln2_b": jnp.zeros((1, Hid), jnp.float32),
        # FFN weights / biases
        "ffn_w1": xavier(keys[5], Hid, F),
        "ffn_b1": (jax.random.uniform(keys[6], (1, F), jnp.float32) - 0.5) * 0.1,
        "ffn_w2": xavier(keys[7], F, Hid),
        "ffn_b2": (jax.random.uniform(keys[8], (1, Hid), jnp.float32) - 0.5) * 0.1,
    }

    x = jax.random.normal(keys[9], (B, S, Hid), jnp.float32)

    # one-time parameter prep (hoisted re-layout / casts / precompute)
    prep = prepare_comrope_params(params, H, S)

    out, attn = comrope_layer_forward(x, prep, return_attn=True)
    out = jax.block_until_ready(out)
    attn = jax.block_until_ready(attn).astype(jnp.float32)

    ref_out, ref_attn = _reference(x, params, H)

    # The kernel uses bf16 MXU operands (f32 accumulation), an approximate EUP
    # reciprocal in the softmax, tanh-approx GELU and a bf16 attention-probability
    # output, so it is compared with bf16-level tolerances.
    max_out_err = float(jnp.max(jnp.abs(out - ref_out)))
    max_attn_err = float(jnp.max(jnp.abs(attn - ref_attn)))
    assert max_out_err < 1e-1, f"output mismatch (max abs err {max_out_err})"
    assert max_attn_err < 5e-2, f"attn mismatch (max abs err {max_attn_err})"

    print("KERNEL_OK")
</pallas_src>

<mosaic_0001>
module attributes {stable_mosaic.version = 11 : i64} {
  func.func @kernel(%arg0: i32, %arg1: i32, %arg2: memref<1x8x32xf32, #tpu.memory_space<vmem>>, %arg3: memref<1x8x32xbf16, #tpu.memory_space<vmem>>, %arg4: memref<32x32xbf16, #tpu.memory_space<vmem>>, %arg5: memref<32x32xbf16, #tpu.memory_space<vmem>>, %arg6: memref<32x32xbf16, #tpu.memory_space<vmem>>, %arg7: memref<32x32xbf16, #tpu.memory_space<vmem>>, %arg8: memref<8x8xf32, #tpu.memory_space<vmem>>, %arg9: memref<8x8xf32, #tpu.memory_space<vmem>>, %arg10: memref<8x1xf32, #tpu.memory_space<vmem>>, %arg11: memref<8x1xf32, #tpu.memory_space<vmem>>, %arg12: memref<8x8xf32, #tpu.memory_space<vmem>>, %arg13: memref<1x32xf32, #tpu.memory_space<vmem>>, %arg14: memref<1x32xf32, #tpu.memory_space<vmem>>, %arg15: memref<1x32xf32, #tpu.memory_space<vmem>>, %arg16: memref<1x32xf32, #tpu.memory_space<vmem>>, %arg17: memref<32x128xbf16, #tpu.memory_space<vmem>>, %arg18: memref<1x128xf32, #tpu.memory_space<vmem>>, %arg19: memref<128x32xbf16, #tpu.memory_space<vmem>>, %arg20: memref<1x32xf32, #tpu.memory_space<vmem>>, %arg21: memref<1x8x32xf32, #tpu.memory_space<vmem>>, %arg22: memref<1x4x8x8xbf16, #tpu.memory_space<vmem>>, %arg23: memref<8x32xf32, #tpu.memory_space<vmem>>) attributes {dimension_semantics = [#tpu.dimension_semantics<parallel>, #tpu.dimension_semantics<arbitrary>], iteration_bounds = array<i64: 2, 1>, scalar_prefetch = 0 : i64, scratch_operands = 1 : i64, tpu.core_type = #tpu.core_type<tc>, window_params = [{transform_indices = @transform_0, window_bounds = array<i64: 1, 8, 32>}, {transform_indices = @transform_1, window_bounds = array<i64: 1, 8, 32>}, {transform_indices = @transform_2, window_bounds = array<i64: 32, 32>}, {transform_indices = @transform_3, window_bounds = array<i64: 32, 32>}, {transform_indices = @transform_4, window_bounds = array<i64: 32, 32>}, {transform_indices = @transform_5, window_bounds = array<i64: 32, 32>}, {pipeline_mode = #tpu.pipeline_mode<synchronous>, transform_indices = @transform_6, window_bounds = array<i64: 8, 8>}, {pipeline_mode = #tpu.pipeline_mode<synchronous>, transform_indices = @transform_7, window_bounds = array<i64: 8, 8>}, {pipeline_mode = #tpu.pipeline_mode<synchronous>, transform_indices = @transform_8, window_bounds = array<i64: 8, 1>}, {pipeline_mode = #tpu.pipeline_mode<synchronous>, transform_indices = @transform_9, window_bounds = array<i64: 8, 1>}, {pipeline_mode = #tpu.pipeline_mode<synchronous>, transform_indices = @transform_10, window_bounds = array<i64: 8, 8>}, {pipeline_mode = #tpu.pipeline_mode<synchronous>, transform_indices = @transform_11, window_bounds = array<i64: 1, 32>}, {pipeline_mode = #tpu.pipeline_mode<synchronous>, transform_indices = @transform_12, window_bounds = array<i64: 1, 32>}, {pipeline_mode = #tpu.pipeline_mode<synchronous>, transform_indices = @transform_13, window_bounds = array<i64: 1, 32>}, {pipeline_mode = #tpu.pipeline_mode<synchronous>, transform_indices = @transform_14, window_bounds = array<i64: 1, 32>}, {pipeline_mode = #tpu.pipeline_mode<synchronous>, transform_indices = @transform_15, window_bounds = array<i64: 32, 128>}, {pipeline_mode = #tpu.pipeline_mode<synchronous>, transform_indices = @transform_16, window_bounds = array<i64: 1, 128>}, {pipeline_mode = #tpu.pipeline_mode<synchronous>, transform_indices = @transform_17, window_bounds = array<i64: 128, 32>}, {pipeline_mode = #tpu.pipeline_mode<synchronous>, transform_indices = @transform_18, window_bounds = array<i64: 1, 32>}, {transform_indices = @transform_19, window_bounds = array<i64: 1, 8, 32>}, {transform_indices = @transform_20, window_bounds = array<i64: 1, 4, 8, 8>}]} {
    %c0_i32 = arith.constant 0 : i32
    %0 = arith.cmpi eq, %arg1, %c0_i32 : i32
    %1 = arith.extui %0 : i1 to i32
    %c0_i32_0 = arith.constant 0 : i32
    %2 = arith.cmpi ne, %1, %c0_i32_0 : i32
    scf.if %2 {
      %cst_38 = arith.constant 0.000000e+00 : f32
      %77 = vector.broadcast %cst_38 : f32 to vector<8x32xf32>
      %c0_39 = arith.constant 0 : index
      %c0_40 = arith.constant 0 : index
      %78 = vector.load %arg23[%c0_39, %c0_40] : memref<8x32xf32, #tpu.memory_space<vmem>>, vector<8x32xf32>
      tpu.vector_store %arg23[%c0_39, %c0_40], %77 {strides = array<i32>} : memref<8x32xf32, #tpu.memory_space<vmem>>, vector<8x32xf32>,
    } else {
    }
    %c0 = arith.constant 0 : index
    %c0_1 = arith.constant 0 : index
    %c0_2 = arith.constant 0 : index
    %3 = vector.load %arg3[%c0, %c0_1, %c0_2] : memref<1x8x32xbf16, #tpu.memory_space<vmem>>, vector<1x8x32xbf16>
    %4 = vector.shape_cast %3 : vector<1x8x32xbf16> to vector<8x32xbf16>
    %c0_3 = arith.constant 0 : index
    %c0_4 = arith.constant 0 : index
    %5 = vector.load %arg4[%c0_3, %c0_4] : memref<32x32xbf16, #tpu.memory_space<vmem>>, vector<32x32xbf16>
    %cst = arith.constant dense<0.000000e+00> : vector<8x32xf32>
    %6 = tpu.matmul %4, %5, %cst {dimension_numbers = #tpu.dot_dimension_numbers<[1], [0], [0], [1], [0, 0, 1, 1], [], []>} : vector<8x32xbf16>, vector<32x32xbf16>, vector<8x32xf32> -> vector<8x32xf32>
    %c0_5 = arith.constant 0 : index
    %c0_6 = arith.constant 0 : index
    %7 = vector.load %arg5[%c0_5, %c0_6] : memref<32x32xbf16, #tpu.memory_space<vmem>>, vector<32x32xbf16>
    %cst_7 = arith.constant dense<0.000000e+00> : vector<8x32xf32>
    %8 = tpu.matmul %4, %7, %cst_7 {dimension_numbers = #tpu.dot_dimension_numbers<[1], [0], [0], [1], [0, 0, 1, 1], [], []>} : vector<8x32xbf16>, vector<32x32xbf16>, vector<8x32xf32> -> vector<8x32xf32>
    %c0_8 = arith.constant 0 : index
    %c0_9 = arith.constant 0 : index
    %9 = vector.load %arg6[%c0_8, %c0_9] : memref<32x32xbf16, #tpu.memory_space<vmem>>, vector<32x32xbf16>
    %cst_10 = arith.constant dense<0.000000e+00> : vector<8x32xf32>
    %10 = tpu.matmul %4, %9, %cst_10 {dimension_numbers = #tpu.dot_dimension_numbers<[1], [0], [0], [1], [0, 0, 1, 1], [], []>} : vector<8x32xbf16>, vector<32x32xbf16>, vector<8x32xf32> -> vector<8x32xf32>
    %11 = vector.shape_cast %6 : vector<8x32xf32> to vector<8x4x8xf32>
    %12 = vector.shape_cast %8 : vector<8x32xf32> to vector<8x4x8xf32>
    %13 = vector.shape_cast %10 : vector<8x32xf32> to vector<8x4x8xf32>
    %14 = arith.truncf %13 : vector<8x4x8xf32> to vector<8x4x8xbf16>
    %c0_11 = arith.constant 0 : index
    %c0_12 = arith.constant 0 : index
    %15 = vector.load %arg8[%c0_11, %c0_12] : memref<8x8xf32, #tpu.memory_space<vmem>>, vector<8x8xf32>
    %16 = vector.shape_cast %15 : vector<8x8xf32> to vector<8x1x8xf32>
    %c0_13 = arith.constant 0 : index
    %c0_14 = arith.constant 0 : index
    %17 = vector.load %arg9[%c0_13, %c0_14] : memref<8x8xf32, #tpu.memory_space<vmem>>, vector<8x8xf32>
    %18 = vector.shape_cast %17 : vector<8x8xf32> to vector<8x1x8xf32>
    %c0_15 = arith.constant 0 : index
    %c0_16 = arith.constant 0 : index
    %19 = vector.load %arg10[%c0_15, %c0_16] : memref<8x1xf32, #tpu.memory_space<vmem>>, vector<8x1xf32>
    %20 = vector.shape_cast %19 : vector<8x1xf32> to vector<8x1x1xf32>
    %c0_17 = arith.constant 0 : index
    %c0_18 = arith.constant 0 : index
    %21 = vector.load %arg11[%c0_17, %c0_18] : memref<8x1xf32, #tpu.memory_space<vmem>>, vector<8x1xf32>
    %22 = vector.shape_cast %21 : vector<8x1xf32> to vector<8x1x1xf32>
    %23 = vector.extract_strided_slice %11 {offsets = [0, 0, 4], sizes = [8, 4, 4], strides = [1, 1, 1]} : vector<8x4x8xf32> to vector<8x4x4xf32>
    %24 = vector.extract_strided_slice %11 {offsets = [0, 0, 0], sizes = [8, 4, 4], strides = [1, 1, 1]} : vector<8x4x8xf32> to vector<8x4x4xf32>
    %25 = tpu.concatenate %23, %24 in 2 : vector<8x4x4xf32>, vector<8x4x4xf32> -> vector<8x4x8xf32>
    %26 = vector.broadcast %16 : vector<8x1x8xf32> to vector<8x4x8xf32>
    %27 = arith.mulf %11, %26 : vector<8x4x8xf32>
    %28 = vector.broadcast %18 : vector<8x1x8xf32> to vector<8x4x8xf32>
    %29 = arith.mulf %25, %28 : vector<8x4x8xf32>
    %30 = arith.addf %27, %29 : vector<8x4x8xf32>
    %31 = vector.broadcast %20 : vector<8x1x1xf32> to vector<8x4x8xf32>
    %32 = arith.addf %30, %31 : vector<8x4x8xf32>
    %33 = arith.truncf %32 : vector<8x4x8xf32> to vector<8x4x8xbf16>
    %34 = vector.extract_strided_slice %12 {offsets = [0, 0, 4], sizes = [8, 4, 4], strides = [1, 1, 1]} : vector<8x4x8xf32> to vector<8x4x4xf32>
    %35 = vector.extract_strided_slice %12 {offsets = [0, 0, 0], sizes = [8, 4, 4], strides = [1, 1, 1]} : vector<8x4x8xf32> to vector<8x4x4xf32>
    %36 = tpu.concatenate %34, %35 in 2 : vector<8x4x4xf32>, vector<8x4x4xf32> -> vector<8x4x8xf32>
    %37 = vector.broadcast %16 : vector<8x1x8xf32> to vector<8x4x8xf32>
    %38 = arith.mulf %12, %37 : vector<8x4x8xf32>
    %39 = vector.broadcast %18 : vector<8x1x8xf32> to vector<8x4x8xf32>
    %40 = arith.mulf %36, %39 : vector<8x4x8xf32>
    %41 = arith.addf %38, %40 : vector<8x4x8xf32>
    %42 = vector.broadcast %22 : vector<8x1x1xf32> to vector<8x4x8xf32>
    %43 = arith.addf %41, %42 : vector<8x4x8xf32>
    %44 = arith.truncf %43 : vector<8x4x8xf32> to vector<8x4x8xbf16>
    "tpu.trace_start"() <{level = 10 : i32, message = "sgd,tgd->gst"}> : () -> ()
    %cst_19 = arith.constant dense<0.000000e+00> : vector<4x8x8xf32>
    %45 = tpu.matmul %33, %44, %cst_19 {dimension_numbers = #tpu.dot_dimension_numbers<[2], [2], [0], [0], [0, 1, 0, 0, 1, 0], [1], [1]>} : vector<8x4x8xbf16>, vector<8x4x8xbf16>, vector<4x8x8xf32> -> vector<4x8x8xf32>
    "tpu.trace_stop"() : () -> ()
    %c0_20 = arith.constant 0 : index
    %c0_21 = arith.constant 0 : index
    %46 = vector.load %arg12[%c0_20, %c0_21] : memref<8x8xf32, #tpu.memory_space<vmem>>, vector<8x8xf32>
    %47 = vector.shape_cast %46 : vector<8x8xf32> to vector<1x8x8xf32>
    %48 = vector.broadcast %47 : vector<1x8x8xf32> to vector<4x8x8xf32>
    %49 = arith.addf %45, %48 : vector<4x8x8xf32>
    %cst_22 = arith.constant dense<0xFF800000> : vector<4x8xf32>
    %50 = vector.multi_reduction <maximumf>, %49, %cst_22 [2] : vector<4x8x8xf32> to vector<4x8xf32>
    %51 = vector.shape_cast %50 : vector<4x8xf32> to vector<4x8x1xf32>
    %52 = vector.broadcast %51 : vector<4x8x1xf32> to vector<4x8x8xf32>
    %53 = arith.subf %49, %52 : vector<4x8x8xf32>
    %54 = math.exp %53 : vector<4x8x8xf32>
    %cst_23 = arith.constant dense<0.000000e+00> : vector<4x8xf32>
    %55 = vector.multi_reduction <add>, %54, %cst_23 [2] : vector<4x8x8xf32> to vector<4x8xf32>
    %56 = vector.shape_cast %55 : vector<4x8xf32> to vector<4x8x1xf32>
    %57 = tpu.reciprocal %56 {approx = true} : vector<4x8x1xf32> -> vector<4x8x1xf32>
    %58 = vector.broadcast %57 : vector<4x8x1xf32> to vector<4x8x8xf32>
    %59 = arith.mulf %54, %58 : vector<4x8x8xf32>
    %60 = arith.truncf %59 : vector<4x8x8xf32> to vector<4x8x8xbf16>
    %c0_24 = arith.constant 0 : index
    %c0_25 = arith.constant 0 : index
    %c0_26 = arith.constant 0 : index
    %c0_27 = arith.constant 0 : index
    %61 = vector.load %arg22[%c0_24, %c0_25, %c0_26, %c0_27] : memref<1x4x8x8xbf16, #tpu.memory_space<vmem>>, vector<1x4x8x8xbf16>
    %62 = vector.shape_cast %61 : vector<1x4x8x8xbf16> to vector<4x8x8xbf16>
    %63 = vector.shape_cast %60 : vector<4x8x8xbf16> to vector<1x4x8x8xbf16>
    tpu.vector_store %arg22[%c0_24, %c0_25, %c0_26, %c0_27], %63 {strides = array<i32>} : memref<1x4x8x8xbf16, #tpu.memory_space<vmem>>, vector<1x4x8x8xbf16>,
    %64 = arith.truncf %59 : vector<4x8x8xf32> to vector<4x8x8xbf16>
    "tpu.trace_start"() <{level = 10 : i32, message = "gst,tgd->sgd"}> : () -> ()
    %cst_28 = arith.constant dense<0.000000e+00> : vector<4x8x8xf32>
    %65 = tpu.matmul %14, %64, %cst_28 {dimension_numbers = #tpu.dot_dimension_numbers<[0], [2], [2], [1], [0, 1, 0, 2, 1, 1], [1], [0]>} : vector<8x4x8xbf16>, vector<4x8x8xbf16>, vector<4x8x8xf32> -> vector<4x8x8xf32>
    %66 = tpu.transpose %65, [2, 0, 1] : vector<4x8x8xf32> -> vector<8x4x8xf32>
    "tpu.trace_stop"() : () -> ()
    %c0_29 = arith.constant 0 : index
    %c0_30 = arith.constant 0 : index
    %67 = vector.load %arg23[%c0_29, %c0_30] : memref<8x32xf32, #tpu.memory_space<vmem>>, vector<8x32xf32>
    %68 = vector.shape_cast %66 : vector<8x4x8xf32> to vector<8x32xf32>
    %69 = arith.truncf %68 : vector<8x32xf32> to vector<8x32xbf16>
    %c0_31 = arith.constant 0 : index
    %c0_32 = arith.constant 0 : index
    %70 = vector.load %arg7[%c0_31, %c0_32] : memref<32x32xbf16, #tpu.memory_space<vmem>>, vector<32x32xbf16>
    %cst_33 = arith.constant dense<0.000000e+00> : vector<8x32xf32>
    %71 = tpu.matmul %69, %70, %cst_33 {dimension_numbers = #tpu.dot_dimension_numbers<[1], [0], [0], [1], [0, 0, 1, 1], [], []>} : vector<8x32xbf16>, vector<32x32xbf16>, vector<8x32xf32> -> vector<8x32xf32>
    %72 = arith.addf %67, %71 : vector<8x32xf32>
    %c0_34 = arith.constant 0 : index
    %c0_35 = arith.constant 0 : index
    %73 = vector.load %arg23[%c0_34, %c0_35] : memref<8x32xf32, #tpu.memory_space<vmem>>, vector<8x32xf32>
    tpu.vector_store %arg23[%c0_34, %c0_35], %72 {strides = array<i32>} : memref<8x32xf32, #tpu.memory_space<vmem>>, vector<8x32xf32>,
    %c0_i32_36 = arith.constant 0 : i32
    %74 = arith.cmpi eq, %arg1, %c0_i32_36 : i32
    %75 = arith.extui %74 : i1 to i32
    %c0_i32_37 = arith.constant 0 : i32
    %76 = arith.cmpi ne, %75, %c0_i32_37 : i32
    scf.if %76 {
      %c0_38 = arith.constant 0 : index
      %c0_39 = arith.constant 0 : index
      %c0_40 = arith.constant 0 : index
      %77 = vector.load %arg2[%c0_38, %c0_39, %c0_40] : memref<1x8x32xf32, #tpu.memory_space<vmem>>, vector<1x8x32xf32>
      %78 = vector.shape_cast %77 : vector<1x8x32xf32> to vector<8x32xf32>
      %c0_41 = arith.constant 0 : index
      %c0_42 = arith.constant 0 : index
      %79 = vector.load %arg23[%c0_41, %c0_42] : memref<8x32xf32, #tpu.memory_space<vmem>>, vector<8x32xf32>
      %80 = arith.addf %78, %79 : vector<8x32xf32>
      %c0_43 = arith.constant 0 : index
      %c0_44 = arith.constant 0 : index
      %81 = vector.load %arg13[%c0_43, %c0_44] : memref<1x32xf32, #tpu.memory_space<vmem>>, vector<1x32xf32>
      %c0_45 = arith.constant 0 : index
      %c0_46 = arith.constant 0 : index
      %82 = vector.load %arg14[%c0_45, %c0_46] : memref<1x32xf32, #tpu.memory_space<vmem>>, vector<1x32xf32>
      %cst_47 = arith.constant dense<0.000000e+00> : vector<8xf32>
      %83 = vector.multi_reduction <add>, %80, %cst_47 [1] : vector<8x32xf32> to vector<8xf32>
      %84 = vector.shape_cast %83 : vector<8xf32> to vector<8x1xf32>
      %cst_48 = arith.constant 3.200000e+01 : f32
      %85 = vector.broadcast %cst_48 : f32 to vector<8x1xf32>
      %86 = arith.divf %84, %85 : vector<8x1xf32>
      %87 = vector.broadcast %86 : vector<8x1xf32> to vector<8x32xf32>
      %88 = arith.subf %80, %87 : vector<8x32xf32>
      %89 = arith.mulf %88, %88 : vector<8x32xf32>
      %cst_49 = arith.constant dense<0.000000e+00> : vector<8xf32>
      %90 = vector.multi_reduction <add>, %89, %cst_49 [1] : vector<8x32xf32> to vector<8xf32>
      %91 = vector.shape_cast %90 : vector<8xf32> to vector<8x1xf32>
      %cst_50 = arith.constant 3.200000e+01 : f32
      %92 = vector.broadcast %cst_50 : f32 to vector<8x1xf32>
      %93 = arith.divf %91, %92 : vector<8x1xf32>
      %94 = vector.broadcast %86 : vector<8x1xf32> to vector<8x32xf32>
      %95 = arith.subf %80, %94 : vector<8x32xf32>
      %cst_51 = arith.constant 9.99999974E-6 : f32
      %96 = vector.broadcast %cst_51 : f32 to vector<8x1xf32>
      %97 = arith.addf %93, %96 : vector<8x1xf32>
      %98 = math.rsqrt %97 : vector<8x1xf32>
      %99 = vector.broadcast %98 : vector<8x1xf32> to vector<8x32xf32>
      %100 = arith.mulf %95, %99 : vector<8x32xf32>
      %101 = vector.broadcast %81 : vector<1x32xf32> to vector<8x32xf32>
      %102 = arith.mulf %100, %101 : vector<8x32xf32>
      %103 = vector.broadcast %82 : vector<1x32xf32> to vector<8x32xf32>
      %104 = arith.addf %102, %103 : vector<8x32xf32>
      %105 = arith.truncf %104 : vector<8x32xf32> to vector<8x32xbf16>
      %c0_52 = arith.constant 0 : index
      %c0_53 = arith.constant 0 : index
      %106 = vector.load %arg17[%c0_52, %c0_53] : memref<32x128xbf16, #tpu.memory_space<vmem>>, vector<32x128xbf16>
      %cst_54 = arith.constant dense<0.000000e+00> : vector<8x128xf32>
      %107 = tpu.matmul %105, %106, %cst_54 {dimension_numbers = #tpu.dot_dimension_numbers<[1], [0], [0], [1], [0, 0, 1, 1], [], []>} : vector<8x32xbf16>, vector<32x128xbf16>, vector<8x128xf32> -> vector<8x128xf32>
      %c0_55 = arith.constant 0 : index
      %c0_56 = arith.constant 0 : index
      %108 = vector.load %arg18[%c0_55, %c0_56] : memref<1x128xf32, #tpu.memory_space<vmem>>, vector<1x128xf32>
      %109 = vector.broadcast %108 : vector<1x128xf32> to vector<8x128xf32>
      %110 = arith.addf %107, %109 : vector<8x128xf32>
      %111 = arith.mulf %110, %110 : vector<8x128xf32>
      %112 = arith.mulf %110, %111 : vector<8x128xf32>
      %cst_57 = arith.constant 4.471500e-02 : f32
      %113 = vector.broadcast %cst_57 : f32 to vector<8x128xf32>
      %114 = arith.mulf %113, %112 : vector<8x128xf32>
      %115 = arith.addf %110, %114 : vector<8x128xf32>
      %cst_58 = arith.constant 0.797884583 : f32
      %116 = vector.broadcast %cst_58 : f32 to vector<8x128xf32>
      %117 = arith.mulf %116, %115 : vector<8x128xf32>
      %118 = math.tanh %117 : vector<8x128xf32>
      %cst_59 = arith.constant 1.000000e+00 : f32
      %119 = vector.broadcast %cst_59 : f32 to vector<8x128xf32>
      %120 = arith.addf %119, %118 : vector<8x128xf32>
      %cst_60 = arith.constant 5.000000e-01 : f32
      %121 = vector.broadcast %cst_60 : f32 to vector<8x128xf32>
      %122 = arith.mulf %121, %120 : vector<8x128xf32>
      %123 = arith.mulf %110, %122 : vector<8x128xf32>
      %124 = arith.truncf %123 : vector<8x128xf32> to vector<8x128xbf16>
      %c0_61 = arith.constant 0 : index
      %c0_62 = arith.constant 0 : index
      %125 = vector.load %arg19[%c0_61, %c0_62] : memref<128x32xbf16, #tpu.memory_space<vmem>>, vector<128x32xbf16>
      %cst_63 = arith.constant dense<0.000000e+00> : vector<8x32xf32>
      %126 = tpu.matmul %124, %125, %cst_63 {dimension_numbers = #tpu.dot_dimension_numbers<[1], [0], [0], [1], [0, 0, 1, 1], [], []>} : vector<8x128xbf16>, vector<128x32xbf16>, vector<8x32xf32> -> vector<8x32xf32>
      %c0_64 = arith.constant 0 : index
      %c0_65 = arith.constant 0 : index
      %127 = vector.load %arg20[%c0_64, %c0_65] : memref<1x32xf32, #tpu.memory_space<vmem>>, vector<1x32xf32>
      %128 = vector.broadcast %127 : vector<1x32xf32> to vector<8x32xf32>
      %129 = arith.addf %126, %128 : vector<8x32xf32>
      %130 = arith.addf %104, %129 : vector<8x32xf32>
      %c0_66 = arith.constant 0 : index
      %c0_67 = arith.constant 0 : index
      %131 = vector.load %arg15[%c0_66, %c0_67] : memref<1x32xf32, #tpu.memory_space<vmem>>, vector<1x32xf32>
      %c0_68 = arith.constant 0 : index
      %c0_69 = arith.constant 0 : index
      %132 = vector.load %arg16[%c0_68, %c0_69] : memref<1x32xf32, #tpu.memory_space<vmem>>, vector<1x32xf32>
      %cst_70 = arith.constant dense<0.000000e+00> : vector<8xf32>
      %133 = vector.multi_reduction <add>, %130, %cst_70 [1] : vector<8x32xf32> to vector<8xf32>
      %134 = vector.shape_cast %133 : vector<8xf32> to vector<8x1xf32>
      %cst_71 = arith.constant 3.200000e+01 : f32
      %135 = vector.broadcast %cst_71 : f32 to vector<8x1xf32>
      %136 = arith.divf %134, %135 : vector<8x1xf32>
      %137 = vector.broadcast %136 : vector<8x1xf32> to vector<8x32xf32>
      %138 = arith.subf %130, %137 : vector<8x32xf32>
      %139 = arith.mulf %138, %138 : vector<8x32xf32>
      %cst_72 = arith.constant dense<0.000000e+00> : vector<8xf32>
      %140 = vector.multi_reduction <add>, %139, %cst_72 [1] : vector<8x32xf32> to vector<8xf32>
      %141 = vector.shape_cast %140 : vector<8xf32> to vector<8x1xf32>
      %cst_73 = arith.constant 3.200000e+01 : f32
      %142 = vector.broadcast %cst_73 : f32 to vector<8x1xf32>
      %143 = arith.divf %141, %142 : vector<8x1xf32>
      %144 = vector.broadcast %136 : vector<8x1xf32> to vector<8x32xf32>
      %145 = arith.subf %130, %144 : vector<8x32xf32>
      %cst_74 = arith.constant 9.99999974E-6 : f32
      %146 = vector.broadcast %cst_74 : f32 to vector<8x1xf32>
      %147 = arith.addf %143, %146 : vector<8x1xf32>
      %148 = math.rsqrt %147 : vector<8x1xf32>
      %149 = vector.broadcast %148 : vector<8x1xf32> to vector<8x32xf32>
      %150 = arith.mulf %145, %149 : vector<8x32xf32>
      %151 = vector.broadcast %131 : vector<1x32xf32> to vector<8x32xf32>
      %152 = arith.mulf %150, %151 : vector<8x32xf32>
      %153 = vector.broadcast %132 : vector<1x32xf32> to vector<8x32xf32>
      %154 = arith.addf %152, %153 : vector<8x32xf32>
      %c0_75 = arith.constant 0 : index
      %c0_76 = arith.constant 0 : index
      %c0_77 = arith.constant 0 : index
      %155 = vector.load %arg21[%c0_75, %c0_76, %c0_77] : memref<1x8x32xf32, #tpu.memory_space<vmem>>, vector<1x8x32xf32>
      %156 = vector.shape_cast %155 : vector<1x8x32xf32> to vector<8x32xf32>
      %157 = vector.shape_cast %154 : vector<8x32xf32> to vector<1x8x32xf32>
      tpu.vector_store %arg21[%c0_75, %c0_76, %c0_77], %157 {strides = array<i32>} : memref<1x8x32xf32, #tpu.memory_space<vmem>>, vector<1x8x32xf32>,
    } else {
    }
    return
  }
  func.func @transform_0(%arg0: i32, %arg1: i32) -> (i32, i32, i32) {
    %c0_i32 = arith.constant 0 : i32
    %c0_i32_0 = arith.constant 0 : i32
    %c0_i32_1 = arith.constant 0 : i32
    return %arg0, %c0_i32, %c0_i32_0 : i32, i32, i32
  }
  func.func @transform_1(%arg0: i32, %arg1: i32) -> (i32, i32, i32) {
    %c0_i32 = arith.constant 0 : i32
    %c0_i32_0 = arith.constant 0 : i32
    %c0_i32_1 = arith.constant 0 : i32
    return %arg0, %c0_i32, %c0_i32_0 : i32, i32, i32
  }
  func.func @transform_2(%arg0: i32, %arg1: i32) -> (i32, i32) {
    %c0_i32 = arith.constant 0 : i32
    %c0_i32_0 = arith.constant 0 : i32
    return %c0_i32, %arg1 : i32, i32
  }
  func.func @transform_3(%arg0: i32, %arg1: i32) -> (i32, i32) {
    %c0_i32 = arith.constant 0 : i32
    %c0_i32_0 = arith.constant 0 : i32
    return %c0_i32, %arg1 : i32, i32
  }
  func.func @transform_4(%arg0: i32, %arg1: i32) -> (i32, i32) {
    %c0_i32 = arith.constant 0 : i32
    %c0_i32_0 = arith.constant 0 : i32
    return %c0_i32, %arg1 : i32, i32
  }
  func.func @transform_5(%arg0: i32, %arg1: i32) -> (i32, i32) {
    %c0_i32 = arith.constant 0 : i32
    %c0_i32_0 = arith.constant 0 : i32
    return %arg1, %c0_i32 : i32, i32
  }
  func.func @transform_6(%arg0: i32, %arg1: i32) -> (i32, i32) {
    %c0_i32 = arith.constant 0 : i32
    %c0_i32_0 = arith.constant 0 : i32
    %c0_i32_1 = arith.constant 0 : i32
    return %c0_i32, %c0_i32_0 : i32, i32
  }
  func.func @transform_7(%arg0: i32, %arg1: i32) -> (i32, i32) {
    %c0_i32 = arith.constant 0 : i32
    %c0_i32_0 = arith.constant 0 : i32
    %c0_i32_1 = arith.constant 0 : i32
    return %c0_i32, %c0_i32_0 : i32, i32
  }
  func.func @transform_8(%arg0: i32, %arg1: i32) -> (i32, i32) {
    %c0_i32 = arith.constant 0 : i32
    %c0_i32_0 = arith.constant 0 : i32
    %c0_i32_1 = arith.constant 0 : i32
    return %c0_i32, %c0_i32_0 : i32, i32
  }
  func.func @transform_9(%arg0: i32, %arg1: i32) -> (i32, i32) {
    %c0_i32 = arith.constant 0 : i32
    %c0_i32_0 = arith.constant 0 : i32
    %c0_i32_1 = arith.constant 0 : i32
    return %c0_i32, %c0_i32_0 : i32, i32
  }
  func.func @transform_10(%arg0: i32, %arg1: i32) -> (i32, i32) {
    %c0_i32 = arith.constant 0 : i32
    %c0_i32_0 = arith.constant 0 : i32
    %c0_i32_1 = arith.constant 0 : i32
    return %c0_i32, %c0_i32_0 : i32, i32
  }
  func.func @transform_11(%arg0: i32, %arg1: i32) -> (i32, i32) {
    %c0_i32 = arith.constant 0 : i32
    %c0_i32_0 = arith.constant 0 : i32
    %c0_i32_1 = arith.constant 0 : i32
    return %c0_i32, %c0_i32_0 : i32, i32
  }
  func.func @transform_12(%arg0: i32, %arg1: i32) -> (i32, i32) {
    %c0_i32 = arith.constant 0 : i32
    %c0_i32_0 = arith.constant 0 : i32
    %c0_i32_1 = arith.constant 0 : i32
    return %c0_i32, %c0_i32_0 : i32, i32
  }
  func.func @transform_13(%arg0: i32, %arg1: i32) -> (i32, i32) {
    %c0_i32 = arith.constant 0 : i32
    %c0_i32_0 = arith.constant 0 : i32
    %c0_i32_1 = arith.constant 0 : i32
    return %c0_i32, %c0_i32_0 : i32, i32
  }
  func.func @transform_14(%arg0: i32, %arg1: i32) -> (i32, i32) {
    %c0_i32 = arith.constant 0 : i32
    %c0_i32_0 = arith.constant 0 : i32
    %c0_i32_1 = arith.constant 0 : i32
    return %c0_i32, %c0_i32_0 : i32, i32
  }
  func.func @transform_15(%arg0: i32, %arg1: i32) -> (i32, i32) {
    %c0_i32 = arith.constant 0 : i32
    %c0_i32_0 = arith.constant 0 : i32
    %c0_i32_1 = arith.constant 0 : i32
    return %c0_i32, %c0_i32_0 : i32, i32
  }
  func.func @transform_16(%arg0: i32, %arg1: i32) -> (i32, i32) {
    %c0_i32 = arith.constant 0 : i32
    %c0_i32_0 = arith.constant 0 : i32
    %c0_i32_1 = arith.constant 0 : i32
    return %c0_i32, %c0_i32_0 : i32, i32
  }
  func.func @transform_17(%arg0: i32, %arg1: i32) -> (i32, i32) {
    %c0_i32 = arith.constant 0 : i32
    %c0_i32_0 = arith.constant 0 : i32
    %c0_i32_1 = arith.constant 0 : i32
    return %c0_i32, %c0_i32_0 : i32, i32
  }
  func.func @transform_18(%arg0: i32, %arg1: i32) -> (i32, i32) {
    %c0_i32 = arith.constant 0 : i32
    %c0_i32_0 = arith.constant 0 : i32
    %c0_i32_1 = arith.constant 0 : i32
    return %c0_i32, %c0_i32_0 : i32, i32
  }
  func.func @transform_19(%arg0: i32, %arg1: i32) -> (i32, i32, i32) {
    %c0_i32 = arith.constant 0 : i32
    %c0_i32_0 = arith.constant 0 : i32
    %c0_i32_1 = arith.constant 0 : i32
    return %arg0, %c0_i32, %c0_i32_0 : i32, i32, i32
  }
  func.func @transform_20(%arg0: i32, %arg1: i32) -> (i32, i32, i32, i32) {
    %c0_i32 = arith.constant 0 : i32
    %c0_i32_0 = arith.constant 0 : i32
    %c0_i32_1 = arith.constant 0 : i32
    return %arg0, %arg1, %c0_i32, %c0_i32_0 : i32, i32, i32, i32
  }
}

</mosaic_0001>

<llo_original>
// kernel: tpu_custom_call.1
$region0: #{tpu_custom_call.1}
  #allocation0 [shape = 'u32[]', space=smem, size = 0x4, offset = 0x4, fixed_abs, tag = 'smem constant byte address 0x4 - core index']
  #allocation1 [shape = 'u32[144,128]{1,0:T(1,128)}', space=vmem, size = 0x12000, scoped, tag = 'internal scratch']
  #allocation2 [shape = 'f32[8,32]{1,0:T(8,128)}', space=vmem, size = 0x1000, scoped, tag = 'scratch operand']
  %s0 = inlined_call_operand.vmem [shape: f32[2,8,32], index: 0, kind: input, shape index: {}]
  %s1 = inlined_call_operand.hbm [shape: bf16[2,8,32], index: 1, kind: input, shape index: {}]
  %s2 = inlined_call_operand.vmem [shape: bf16[32,32], index: 2, kind: input, shape index: {}]
  %s3 = inlined_call_operand.vmem [shape: bf16[32,32], index: 3, kind: input, shape index: {}]
  %s4 = inlined_call_operand.vmem [shape: bf16[32,32], index: 4, kind: input, shape index: {}]
  %s5 = inlined_call_operand.vmem [shape: bf16[32,32], index: 5, kind: input, shape index: {}]
  %s6 = inlined_call_operand.vmem [shape: f32[8,8], index: 6, kind: input, shape index: {}]
  %s7 = inlined_call_operand.hbm [shape: f32[8,8], index: 7, kind: input, shape index: {}]
  %s8 = inlined_call_operand.vmem [shape: f32[8,1], index: 8, kind: input, shape index: {}]
  %s9 = inlined_call_operand.vmem [shape: f32[8,1], index: 9, kind: input, shape index: {}]
  %s10 = inlined_call_operand.vmem [shape: f32[8,8], index: 10, kind: input, shape index: {}]
  %s11 = inlined_call_operand.vmem [shape: f32[1,32], index: 11, kind: input, shape index: {}]
  %s12 = inlined_call_operand.vmem [shape: f32[1,32], index: 12, kind: input, shape index: {}]
  %s13 = inlined_call_operand.vmem [shape: f32[1,32], index: 13, kind: input, shape index: {}]
  %s14 = inlined_call_operand.vmem [shape: f32[1,32], index: 14, kind: input, shape index: {}]
  %s15 = inlined_call_operand.vmem [shape: bf16[32,128], index: 15, kind: input, shape index: {}]
  %s16 = inlined_call_operand.vmem [shape: f32[1,128], index: 16, kind: input, shape index: {}]
  %s17 = inlined_call_operand.vmem [shape: bf16[128,32], index: 17, kind: input, shape index: {}]
  %s18 = inlined_call_operand.vmem [shape: f32[1,32], index: 18, kind: input, shape index: {}]
  %s19 = inlined_call_operand.hbm [shape: f32[2,8,32], index: 19, kind: output, shape index: {0}]
  %s20 = inlined_call_operand.hbm [shape: bf16[2,4,8,8], index: 20, kind: output, shape index: {1}]
  %21 = xla_tuple %s19, %s20
  %s22 = sld [smem:[#allocation0]]
  $region133: #{tpu_custom_call.1} parent=0
    _
  %s24 = ssub.s32 1, %s22
  %s25 = scalar_select 0, %s24, %s22
  $region1: #{tpu_custom_call.1} parent=0
    #allocation3 [shape = 'u8[4096]{0}', space=vmem, size = 0x1000, scoped, tag = 'input window, operand 1']
    #allocation4 [shape = 's32[2]{0}', space=sflag, size = 0x8, scoped, tag = 'scoped memory for tpu_custom_call.1']
    #allocation5 [shape = 's32[2]{0}', space=sflag, size = 0x8, scoped, tag = 'scoped memory for tpu_custom_call.1']
    #allocation6 [shape = 'u8[4096]{0}', space=vmem, size = 0x1000, scoped, tag = 'input window, operand 7, single buffered']
    #allocation7 [shape = 's32[1]{0}', space=sflag, size = 0x4, scoped, tag = 'scoped memory for tpu_custom_call.1']
    #allocation8 [shape = 'u8[8192]{0}', space=vmem, size = 0x2000, scoped, tag = 'output window, operand 0']
    #allocation9 [shape = 'u8[16384]{0}', space=vmem, size = 0x4000, scoped, tag = 'output window, operand 1']
    #allocation10 [shape = 's32[2]{0}', space=sflag, size = 0x8, scoped, tag = 'scoped memory for tpu_custom_call.1']
    %26 = vsyncpa [#allocation4], 0
    %s27 = scalar_lea.sflag [#allocation4], 1
    %28 = vsyncpa %s27, 0
    %29 = vsyncpa [#allocation7], 0
    %30 = vsyncpa [#allocation5], 0
    %s31 = scalar_lea.sflag [#allocation5], 1
    %32 = vsyncpa %s31, 0
    %33 = vsyncpa [#allocation10], 0
    %s34 = scalar_lea.sflag [#allocation10], 1
    %35 = vsyncpa %s34, 0
    loop: start=0, step=1, limit=4
    $region2: #{tpu_custom_call.1} parent=1 // loop_pre_header
      _
    $region3: #{tpu_custom_call.1} parent=1 // loop_header
      %s37 = sphi 0, %s41
      %p38 = scmp.ge.s32.totalorder %s37, 4
      %s44 = sphi 0, %s56
      %s45 = sphi 0, %s52
      %s46 = sphi 0, %s44
      %s47 = sphi 0, %s45
      %s48 = sphi 0, %s46
      %s49 = sphi 0, %s47
      %s59 = sphi 0, %s61
      %s62 = sphi 0, %s59
      %s63 = sphi 0, %s62
      %s79 = sphi 0, %s63
      %s85 = sphi 0, %s87
      %s88 = sphi 0, %s85
      %s89 = sphi 0, %s88
      %s105 = sphi 0, %s89
      %s111 = sphi 0, %s113
      %s114 = sphi 0, %s111
      %s115 = sphi 0, %s114
      %s131 = sphi 0, %s115
      %s137 = sphi 0, %s139
      %s140 = sphi 0, %s137
      %s141 = sphi 0, %s140
      %s157 = sphi 0, %s141
      %s163 = sphi 0, %s165
      %s166 = sphi 0, %s163
      %s167 = sphi 0, %s166
      %s183 = sphi 0, %s167
      %s189 = sphi 0, %s191
      %s192 = sphi 0, %s189
      %s193 = sphi 0, %s192
      %s209 = sphi 0, %s193
      %s213 = sphi 0, %s213
      %s215 = sphi 0, %s213
      %s216 = sphi 0, %s215
      %s230 = sphi 0, %s216
      %s234 = sphi 0, %s234
      %s236 = sphi 0, %s234
      %s237 = sphi 0, %s236
      %s251 = sphi 0, %s237
      %s255 = sphi 0, %s255
      %s257 = sphi 0, %s255
      %s258 = sphi 0, %s257
      %s272 = sphi 0, %s258
      %s276 = sphi 0, %s276
      %s278 = sphi 0, %s276
      %s279 = sphi 0, %s278
      %s293 = sphi 0, %s279
      %s297 = sphi 0, %s297
      %s299 = sphi 0, %s297
      %s300 = sphi 0, %s299
      %s314 = sphi 0, %s300
      %s318 = sphi 0, %s318
      %s320 = sphi 0, %s318
      %s321 = sphi 0, %s320
      %s335 = sphi 0, %s321
      %s339 = sphi 0, %s339
      %s341 = sphi 0, %s339
      %s342 = sphi 0, %s341
      %s356 = sphi 0, %s342
      %s360 = sphi 0, %s360
      %s362 = sphi 0, %s360
      %s363 = sphi 0, %s362
      %s377 = sphi 0, %s363
      %s381 = sphi 0, %s381
      %s383 = sphi 0, %s381
      %s384 = sphi 0, %s383
      %s398 = sphi 0, %s384
      %s402 = sphi 0, %s402
      %s404 = sphi 0, %s402
      %s405 = sphi 0, %s404
      %s419 = sphi 0, %s405
      %s423 = sphi 0, %s423
      %s425 = sphi 0, %s423
      %s426 = sphi 0, %s425
      %s440 = sphi 0, %s426
      %s444 = sphi 0, %s444
      %s446 = sphi 0, %s444
      %s447 = sphi 0, %s446
      %s461 = sphi 0, %s447
      %s465 = sphi 0, %s465
      %s467 = sphi 0, %s465
      %s468 = sphi 0, %s467
      %s482 = sphi 0, %s468
      %s488 = sphi 0, %s490
      %s491 = sphi 0, %s488
      %s492 = sphi 0, %s491
      %s508 = sphi 0, %s492
      %s516 = sphi 0, %s518
      %s519 = sphi 0, %s516
      %s520 = sphi 0, %s519
      %s536 = sphi 0, %s520
    $region4: #{tpu_custom_call.1} parent=1 // loop_header_branch
      %40 = sbr.rel (%p38) target = $region8
    $region5: #{tpu_custom_call.1} parent=1 // loop_body
      %s42 = ssub.s32 %s37, 1
      %s43 = ssub.s32 %s37, 2
      %s50 = sadd.s32 1, %s45
      %p51 = scmp.ge.s32.totalorder %s50, 1
      %s52 = scalar_select %p51, 0, %s50
      %s53 = sadd.s32 1, %s44
      %s54 = scalar_select %p51, %s53, %s44
      %p55 = scmp.ge.s32.totalorder %s54, 2
      %s56 = scalar_select %p55, 0, %s54
      %s57 = ssub.s32 %s44, %s56
      %p58 = scmp.eq.s32.totalorder %s57, 0
      %s60 = sadd.s32 %s59, 1
      %s61 = scalar_select %p58, %s59, %s60
      %p64 = pneg %p58
      %p65 = scmp.eq.s32.totalorder %s37, 1
      %p66 = por %p64, %p65
      %p67 = scmp.ne.s32.totalorder %s59, %s62
      %p68 = scmp.eq.s32.totalorder %s37, 0
      %p69 = por %p67, %p68
      %p70 = scmp.ne.s32.totalorder %s59, %s62
      %p71 = scmp.eq.s32.totalorder %s42, 1
      %p72 = por %p70, %p71
      %p73 = scmp.ne.s32.totalorder %s62, %s63
      %p74 = scmp.eq.s32.totalorder %s42, 0
      %p75 = por %p73, %p74
      %p76 = scmp.ne.s32.totalorder %s62, %s63
      %p77 = scmp.eq.s32.totalorder %s43, 1
      %p78 = por %p76, %p77
      %p80 = scmp.ne.s32.totalorder %s63, %s79
      %p81 = scmp.eq.s32.totalorder %s43, 0
      %p82 = por %p80, %p81
      %s83 = ssub.s32 %s44, %s56
      %p84 = scmp.eq.s32.totalorder %s83, 0
      %s86 = sadd.s32 %s85, 1
      %s87 = scalar_select %p84, %s85, %s86
      %p90 = pneg %p84
      %p91 = scmp.eq.s32.totalorder %s37, 1
      %p92 = por %p90, %p91
      %p93 = scmp.ne.s32.totalorder %s85, %s88
      %p94 = scmp.eq.s32.totalorder %s37, 0
      %p95 = por %p93, %p94
      %p96 = scmp.ne.s32.totalorder %s85, %s88
      %p97 = scmp.eq.s32.totalorder %s42, 1
      %p98 = por %p96, %p97
      %p99 = scmp.ne.s32.totalorder %s88, %s89
      %p100 = scmp.eq.s32.totalorder %s42, 0
      %p101 = por %p99, %p100
      %p102 = scmp.ne.s32.totalorder %s88, %s89
      %p103 = scmp.eq.s32.totalorder %s43, 1
      %p104 = por %p102, %p103
      %p106 = scmp.ne.s32.totalorder %s89, %s105
      %p107 = scmp.eq.s32.totalorder %s43, 0
      %p108 = por %p106, %p107
      %s109 = ssub.s32 %s45, %s52
      %p110 = scmp.eq.s32.totalorder %s109, 0
      %s112 = sadd.s32 %s111, 1
      %s113 = scalar_select %p110, %s111, %s112
      %p116 = pneg %p110
      %p117 = scmp.eq.s32.totalorder %s37, 1
      %p118 = por %p116, %p117
      %p119 = scmp.ne.s32.totalorder %s111, %s114
      %p120 = scmp.eq.s32.totalorder %s37, 0
      %p121 = por %p119, %p120
      %p122 = scmp.ne.s32.totalorder %s111, %s114
      %p123 = scmp.eq.s32.totalorder %s42, 1
      %p124 = por %p122, %p123
      %p125 = scmp.ne.s32.totalorder %s114, %s115
      %p126 = scmp.eq.s32.totalorder %s42, 0
      %p127 = por %p125, %p126
      %p128 = scmp.ne.s32.totalorder %s114, %s115
      %p129 = scmp.eq.s32.totalorder %s43, 1
      %p130 = por %p128, %p129
      %p132 = scmp.ne.s32.totalorder %s115, %s131
      %p133 = scmp.eq.s32.totalorder %s43, 0
      %p134 = por %p132, %p133
      %s135 = ssub.s32 %s45, %s52
      %p136 = scmp.eq.s32.totalorder %s135, 0
      %s138 = sadd.s32 %s137, 1
      %s139 = scalar_select %p136, %s137, %s138
      %p142 = pneg %p136
      %p143 = scmp.eq.s32.totalorder %s37, 1
      %p144 = por %p142, %p143
      %p145 = scmp.ne.s32.totalorder %s137, %s140
      %p146 = scmp.eq.s32.totalorder %s37, 0
      %p147 = por %p145, %p146
      %p148 = scmp.ne.s32.totalorder %s137, %s140
      %p149 = scmp.eq.s32.totalorder %s42, 1
      %p150 = por %p148, %p149
      %p151 = scmp.ne.s32.totalorder %s140, %s141
      %p152 = scmp.eq.s32.totalorder %s42, 0
      %p153 = por %p151, %p152
      %p154 = scmp.ne.s32.totalorder %s140, %s141
      %p155 = scmp.eq.s32.totalorder %s43, 1
      %p156 = por %p154, %p155
      %p158 = scmp.ne.s32.totalorder %s141, %s157
      %p159 = scmp.eq.s32.totalorder %s43, 0
      %p160 = por %p158, %p159
      %s161 = ssub.s32 %s45, %s52
      %p162 = scmp.eq.s32.totalorder %s161, 0
      %s164 = sadd.s32 %s163, 1
      %s165 = scalar_select %p162, %s163, %s164
      %p168 = pneg %p162
      %p169 = scmp.eq.s32.totalorder %s37, 1
      %p170 = por %p168, %p169
      %p171 = scmp.ne.s32.totalorder %s163, %s166
      %p172 = scmp.eq.s32.totalorder %s37, 0
      %p173 = por %p171, %p172
      %p174 = scmp.ne.s32.totalorder %s163, %s166
      %p175 = scmp.eq.s32.totalorder %s42, 1
      %p176 = por %p174, %p175
      %p177 = scmp.ne.s32.totalorder %s166, %s167
      %p178 = scmp.eq.s32.totalorder %s42, 0
      %p179 = por %p177, %p178
      %p180 = scmp.ne.s32.totalorder %s166, %s167
      %p181 = scmp.eq.s32.totalorder %s43, 1
      %p182 = por %p180, %p181
      %p184 = scmp.ne.s32.totalorder %s167, %s183
      %p185 = scmp.eq.s32.totalorder %s43, 0
      %p186 = por %p184, %p185
      %s187 = ssub.s32 %s45, %s52
      %p188 = scmp.eq.s32.totalorder %s187, 0
      %s190 = sadd.s32 %s189, 1
      %s191 = scalar_select %p188, %s189, %s190
      %p194 = pneg %p188
      %p195 = scmp.eq.s32.totalorder %s37, 1
      %p196 = por %p194, %p195
      %p197 = scmp.ne.s32.totalorder %s189, %s192
      %p198 = scmp.eq.s32.totalorder %s37, 0
      %p199 = por %p197, %p198
      %p200 = scmp.ne.s32.totalorder %s189, %s192
      %p201 = scmp.eq.s32.totalorder %s42, 1
      %p202 = por %p200, %p201
      %p203 = scmp.ne.s32.totalorder %s192, %s193
      %p204 = scmp.eq.s32.totalorder %s42, 0
      %p205 = por %p203, %p204
      %p206 = scmp.ne.s32.totalorder %s192, %s193
      %p207 = scmp.eq.s32.totalorder %s43, 1
      %p208 = por %p206, %p207
      %p210 = scmp.ne.s32.totalorder %s193, %s209
      %p211 = scmp.eq.s32.totalorder %s43, 0
      %p212 = por %p210, %p211
      %s214 = sadd.s32 %s213, 1
      %p217 = scmp.eq.s32.totalorder %s37, 1
      %p218 = scmp.ne.s32.totalorder %s213, %s215
      %p219 = scmp.eq.s32.totalorder %s37, 0
      %p220 = por %p218, %p219
      %p221 = scmp.ne.s32.totalorder %s213, %s215
      %p222 = scmp.eq.s32.totalorder %s42, 1
      %p223 = por %p221, %p222
      %p224 = scmp.ne.s32.totalorder %s215, %s216
      %p225 = scmp.eq.s32.totalorder %s42, 0
      %p226 = por %p224, %p225
      %p227 = scmp.ne.s32.totalorder %s215, %s216
      %p228 = scmp.eq.s32.totalorder %s43, 1
      %p229 = por %p227, %p228
      %p231 = scmp.ne.s32.totalorder %s216, %s230
      %p232 = scmp.eq.s32.totalorder %s43, 0
      %p233 = por %p231, %p232
      %s235 = sadd.s32 %s234, 1
      %p238 = scmp.eq.s32.totalorder %s37, 1
      %p239 = scmp.ne.s32.totalorder %s234, %s236
      %p240 = scmp.eq.s32.totalorder %s37, 0
      %p241 = por %p239, %p240
      %p242 = scmp.ne.s32.totalorder %s234, %s236
      %p243 = scmp.eq.s32.totalorder %s42, 1
      %p244 = por %p242, %p243
      %p245 = scmp.ne.s32.totalorder %s236, %s237
      %p246 = scmp.eq.s32.totalorder %s42, 0
      %p247 = por %p245, %p246
      %p248 = scmp.ne.s32.totalorder %s236, %s237
      %p249 = scmp.eq.s32.totalorder %s43, 1
      %p250 = por %p248, %p249
      %p252 = scmp.ne.s32.totalorder %s237, %s251
      %p253 = scmp.eq.s32.totalorder %s43, 0
      %p254 = por %p252, %p253
      %s256 = sadd.s32 %s255, 1
      %p259 = scmp.eq.s32.totalorder %s37, 1
      %p260 = scmp.ne.s32.totalorder %s255, %s257
      %p261 = scmp.eq.s32.totalorder %s37, 0
      %p262 = por %p260, %p261
      %p263 = scmp.ne.s32.totalorder %s255, %s257
      %p264 = scmp.eq.s32.totalorder %s42, 1
      %p265 = por %p263, %p264
      %p266 = scmp.ne.s32.totalorder %s257, %s258
      %p267 = scmp.eq.s32.totalorder %s42, 0
      %p268 = por %p266, %p267
      %p269 = scmp.ne.s32.totalorder %s257, %s258
      %p270 = scmp.eq.s32.totalorder %s43, 1
      %p271 = por %p269, %p270
      %p273 = scmp.ne.s32.totalorder %s258, %s272
      %p274 = scmp.eq.s32.totalorder %s43, 0
      %p275 = por %p273, %p274
      %s277 = sadd.s32 %s276, 1
      %p280 = scmp.eq.s32.totalorder %s37, 1
      %p281 = scmp.ne.s32.totalorder %s276, %s278
      %p282 = scmp.eq.s32.totalorder %s37, 0
      %p283 = por %p281, %p282
      %p284 = scmp.ne.s32.totalorder %s276, %s278
      %p285 = scmp.eq.s32.totalorder %s42, 1
      %p286 = por %p284, %p285
      %p287 = scmp.ne.s32.totalorder %s278, %s279
      %p288 = scmp.eq.s32.totalorder %s42, 0
      %p289 = por %p287, %p288
      %p290 = scmp.ne.s32.totalorder %s278, %s279
      %p291 = scmp.eq.s32.totalorder %s43, 1
      %p292 = por %p290, %p291
      %p294 = scmp.ne.s32.totalorder %s279, %s293
      %p295 = scmp.eq.s32.totalorder %s43, 0
      %p296 = por %p294, %p295
      %s298 = sadd.s32 %s297, 1
      %p301 = scmp.eq.s32.totalorder %s37, 1
      %p302 = scmp.ne.s32.totalorder %s297, %s299
      %p303 = scmp.eq.s32.totalorder %s37, 0
      %p304 = por %p302, %p303
      %p305 = scmp.ne.s32.totalorder %s297, %s299
      %p306 = scmp.eq.s32.totalorder %s42, 1
      %p307 = por %p305, %p306
      %p308 = scmp.ne.s32.totalorder %s299, %s300
      %p309 = scmp.eq.s32.totalorder %s42, 0
      %p310 = por %p308, %p309
      %p311 = scmp.ne.s32.totalorder %s299, %s300
      %p312 = scmp.eq.s32.totalorder %s43, 1
      %p313 = por %p311, %p312
      %p315 = scmp.ne.s32.totalorder %s300, %s314
      %p316 = scmp.eq.s32.totalorder %s43, 0
      %p317 = por %p315, %p316
      %s319 = sadd.s32 %s318, 1
      %p322 = scmp.eq.s32.totalorder %s37, 1
      %p323 = scmp.ne.s32.totalorder %s318, %s320
      %p324 = scmp.eq.s32.totalorder %s37, 0
      %p325 = por %p323, %p324
      %p326 = scmp.ne.s32.totalorder %s318, %s320
      %p327 = scmp.eq.s32.totalorder %s42, 1
      %p328 = por %p326, %p327
      %p329 = scmp.ne.s32.totalorder %s320, %s321
      %p330 = scmp.eq.s32.totalorder %s42, 0
      %p331 = por %p329, %p330
      %p332 = scmp.ne.s32.totalorder %s320, %s321
      %p333 = scmp.eq.s32.totalorder %s43, 1
      %p334 = por %p332, %p333
      %p336 = scmp.ne.s32.totalorder %s321, %s335
      %p337 = scmp.eq.s32.totalorder %s43, 0
      %p338 = por %p336, %p337
      %s340 = sadd.s32 %s339, 1
      %p343 = scmp.eq.s32.totalorder %s37, 1
      %p344 = scmp.ne.s32.totalorder %s339, %s341
      %p345 = scmp.eq.s32.totalorder %s37, 0
      %p346 = por %p344, %p345
      %p347 = scmp.ne.s32.totalorder %s339, %s341
      %p348 = scmp.eq.s32.totalorder %s42, 1
      %p349 = por %p347, %p348
      %p350 = scmp.ne.s32.totalorder %s341, %s342
      %p351 = scmp.eq.s32.totalorder %s42, 0
      %p352 = por %p350, %p351
      %p353 = scmp.ne.s32.totalorder %s341, %s342
      %p354 = scmp.eq.s32.totalorder %s43, 1
      %p355 = por %p353, %p354
      %p357 = scmp.ne.s32.totalorder %s342, %s356
      %p358 = scmp.eq.s32.totalorder %s43, 0
      %p359 = por %p357, %p358
      %s361 = sadd.s32 %s360, 1
      %p364 = scmp.eq.s32.totalorder %s37, 1
      %p365 = scmp.ne.s32.totalorder %s360, %s362
      %p366 = scmp.eq.s32.totalorder %s37, 0
      %p367 = por %p365, %p366
      %p368 = scmp.ne.s32.totalorder %s360, %s362
      %p369 = scmp.eq.s32.totalorder %s42, 1
      %p370 = por %p368, %p369
      %p371 = scmp.ne.s32.totalorder %s362, %s363
      %p372 = scmp.eq.s32.totalorder %s42, 0
      %p373 = por %p371, %p372
      %p374 = scmp.ne.s32.totalorder %s362, %s363
      %p375 = scmp.eq.s32.totalorder %s43, 1
      %p376 = por %p374, %p375
      %p378 = scmp.ne.s32.totalorder %s363, %s377
      %p379 = scmp.eq.s32.totalorder %s43, 0
      %p380 = por %p378, %p379
      %s382 = sadd.s32 %s381, 1
      %p385 = scmp.eq.s32.totalorder %s37, 1
      %p386 = scmp.ne.s32.totalorder %s381, %s383
      %p387 = scmp.eq.s32.totalorder %s37, 0
      %p388 = por %p386, %p387
      %p389 = scmp.ne.s32.totalorder %s381, %s383
      %p390 = scmp.eq.s32.totalorder %s42, 1
      %p391 = por %p389, %p390
      %p392 = scmp.ne.s32.totalorder %s383, %s384
      %p393 = scmp.eq.s32.totalorder %s42, 0
      %p394 = por %p392, %p393
      %p395 = scmp.ne.s32.totalorder %s383, %s384
      %p396 = scmp.eq.s32.totalorder %s43, 1
      %p397 = por %p395, %p396
      %p399 = scmp.ne.s32.totalorder %s384, %s398
      %p400 = scmp.eq.s32.totalorder %s43, 0
      %p401 = por %p399, %p400
      %s403 = sadd.s32 %s402, 1
      %p406 = scmp.eq.s32.totalorder %s37, 1
      %p407 = scmp.ne.s32.totalorder %s402, %s404
      %p408 = scmp.eq.s32.totalorder %s37, 0
      %p409 = por %p407, %p408
      %p410 = scmp.ne.s32.totalorder %s402, %s404
      %p411 = scmp.eq.s32.totalorder %s42, 1
      %p412 = por %p410, %p411
      %p413 = scmp.ne.s32.totalorder %s404, %s405
      %p414 = scmp.eq.s32.totalorder %s42, 0
      %p415 = por %p413, %p414
      %p416 = scmp.ne.s32.totalorder %s404, %s405
      %p417 = scmp.eq.s32.totalorder %s43, 1
      %p418 = por %p416, %p417
      %p420 = scmp.ne.s32.totalorder %s405, %s419
      %p421 = scmp.eq.s32.totalorder %s43, 0
      %p422 = por %p420, %p421
      %s424 = sadd.s32 %s423, 1
      %p427 = scmp.eq.s32.totalorder %s37, 1
      %p428 = scmp.ne.s32.totalorder %s423, %s425
      %p429 = scmp.eq.s32.totalorder %s37, 0
      %p430 = por %p428, %p429
      %p431 = scmp.ne.s32.totalorder %s423, %s425
      %p432 = scmp.eq.s32.totalorder %s42, 1
      %p433 = por %p431, %p432
      %p434 = scmp.ne.s32.totalorder %s425, %s426
      %p435 = scmp.eq.s32.totalorder %s42, 0
      %p436 = por %p434, %p435
      %p437 = scmp.ne.s32.totalorder %s425, %s426
      %p438 = scmp.eq.s32.totalorder %s43, 1
      %p439 = por %p437, %p438
      %p441 = scmp.ne.s32.totalorder %s426, %s440
      %p442 = scmp.eq.s32.totalorder %s43, 0
      %p443 = por %p441, %p442
      %s445 = sadd.s32 %s444, 1
      %p448 = scmp.eq.s32.totalorder %s37, 1
      %p449 = scmp.ne.s32.totalorder %s444, %s446
      %p450 = scmp.eq.s32.totalorder %s37, 0
      %p451 = por %p449, %p450
      %p452 = scmp.ne.s32.totalorder %s444, %s446
      %p453 = scmp.eq.s32.totalorder %s42, 1
      %p454 = por %p452, %p453
      %p455 = scmp.ne.s32.totalorder %s446, %s447
      %p456 = scmp.eq.s32.totalorder %s42, 0
      %p457 = por %p455, %p456
      %p458 = scmp.ne.s32.totalorder %s446, %s447
      %p459 = scmp.eq.s32.totalorder %s43, 1
      %p460 = por %p458, %p459
      %p462 = scmp.ne.s32.totalorder %s447, %s461
      %p463 = scmp.eq.s32.totalorder %s43, 0
      %p464 = por %p462, %p463
      %s466 = sadd.s32 %s465, 1
      %p469 = scmp.eq.s32.totalorder %s37, 1
      %p470 = scmp.ne.s32.totalorder %s465, %s467
      %p471 = scmp.eq.s32.totalorder %s37, 0
      %p472 = por %p470, %p471
      %p473 = scmp.ne.s32.totalorder %s465, %s467
      %p474 = scmp.eq.s32.totalorder %s42, 1
      %p475 = por %p473, %p474
      %p476 = scmp.ne.s32.totalorder %s467, %s468
      %p477 = scmp.eq.s32.totalorder %s42, 0
      %p478 = por %p476, %p477
      %p479 = scmp.ne.s32.totalorder %s467, %s468
      %p480 = scmp.eq.s32.totalorder %s43, 1
      %p481 = por %p479, %p480
      %p483 = scmp.ne.s32.totalorder %s468, %s482
      %p484 = scmp.eq.s32.totalorder %s43, 0
      %p485 = por %p483, %p484
      %s486 = ssub.s32 %s44, %s56
      %p487 = scmp.eq.s32.totalorder %s486, 0
      %s489 = sadd.s32 %s488, 1
      %s490 = scalar_select %p487, %s488, %s489
      %p493 = pneg %p487
      %p494 = scmp.eq.s32.totalorder %s37, 1
      %p495 = por %p493, %p494
      %p496 = scmp.ne.s32.totalorder %s488, %s491
      %p497 = scmp.eq.s32.totalorder %s37, 0
      %p498 = por %p496, %p497
      %p499 = scmp.ne.s32.totalorder %s488, %s491
      %p500 = scmp.eq.s32.totalorder %s42, 1
      %p501 = por %p499, %p500
      %p502 = scmp.ne.s32.totalorder %s491, %s492
      %p503 = scmp.eq.s32.totalorder %s42, 0
      %p504 = por %p502, %p503
      %p505 = scmp.ne.s32.totalorder %s491, %s492
      %p506 = scmp.eq.s32.totalorder %s43, 1
      %p507 = por %p505, %p506
      %p509 = scmp.ne.s32.totalorder %s492, %s508
      %p510 = scmp.eq.s32.totalorder %s43, 0
      %p511 = por %p509, %p510
      %s512 = ssub.s32 %s44, %s56
      %s513 = ssub.s32 %s45, %s52
      %s514 = sor.u32 %s512, %s513
      %p515 = scmp.eq.s32.totalorder %s514, 0
      %s517 = sadd.s32 %s516, 1
      %s518 = scalar_select %p515, %s516, %s517
      %p521 = pneg %p515
      %p522 = scmp.eq.s32.totalorder %s37, 1
      %p523 = por %p521, %p522
      %p524 = scmp.ne.s32.totalorder %s516, %s519
      %p525 = scmp.eq.s32.totalorder %s37, 0
      %p526 = por %p524, %p525
      %p527 = scmp.ne.s32.totalorder %s516, %s519
      %p528 = scmp.eq.s32.totalorder %s42, 1
      %p529 = por %p527, %p528
      %p530 = scmp.ne.s32.totalorder %s519, %s520
      %p531 = scmp.eq.s32.totalorder %s42, 0
      %p532 = por %p530, %p531
      %p533 = scmp.ne.s32.totalorder %s519, %s520
      %p534 = scmp.eq.s32.totalorder %s43, 1
      %p535 = por %p533, %p534
      %p537 = scmp.ne.s32.totalorder %s520, %s536
      %p538 = scmp.eq.s32.totalorder %s43, 0
      %p539 = por %p537, %p538
      %p540 = scmp.le.s32.totalorder 1, %s37
      %p541 = scmp.lt.s32.totalorder %s37, 3
      %p542 = pnand %p540, %p541
      %p543 = pneg %p542
      // Predicated region
      $region9: #{tpu_custom_call.1} parent=5 // pred_check
        _
      $region10: #{tpu_custom_call.1} parent=5 // pred_check_branch
        %545 = sbr.rel (%p542) target = $region12
      $region11: #{tpu_custom_call.1} parent=5 // pred_region
        %s546 = ssub.s32 %s37, 1
        // Predicated region
        $region13: #{tpu_custom_call.1} parent=11 // pred_check
          %p547 = pneg %p127
        $region14: #{tpu_custom_call.1} parent=11 // pred_check_branch
          %549 = sbr.rel (%p547) target = $region16
        $region15: #{tpu_custom_call.1} parent=11 // pred_region
          %p550 = scmp.lt.s32.totalorder %s47, 0
          %s551 = scalar_select %p550, %s47, 0
          %s552 = smul.addr %s551, 4
          %s553 = scalar_lea.vmem %s2, %s552
        $region16: #{tpu_custom_call.1} parent=11 // pred_fallthru
          _
        // Predicated region
        $region17: #{tpu_custom_call.1} parent=11 // pred_check
          %p554 = pneg %p153
        $region18: #{tpu_custom_call.1} parent=11 // pred_check_branch
          %556 = sbr.rel (%p554) target = $region20
        $region19: #{tpu_custom_call.1} parent=11 // pred_region
          %p557 = scmp.lt.s32.totalorder %s47, 0
          %s558 = scalar_select %p557, %s47, 0
          %s559 = smul.addr %s558, 4
          %s560 = scalar_lea.vmem %s3, %s559
        $region20: #{tpu_custom_call.1} parent=11 // pred_fallthru
          _
        // Predicated region
        $region21: #{tpu_custom_call.1} parent=11 // pred_check
          %p561 = pneg %p179
        $region22: #{tpu_custom_call.1} parent=11 // pred_check_branch
          %563 = sbr.rel (%p561) target = $region24
        $region23: #{tpu_custom_call.1} parent=11 // pred_region
          %p564 = scmp.lt.s32.totalorder %s47, 0
          %s565 = scalar_select %p564, %s47, 0
          %s566 = smul.addr %s565, 4
          %s567 = scalar_lea.vmem %s4, %s566
        $region24: #{tpu_custom_call.1} parent=11 // pred_fallthru
          _
        // Predicated region
        $region25: #{tpu_custom_call.1} parent=11 // pred_check
          %p568 = pneg %p205
        $region26: #{tpu_custom_call.1} parent=11 // pred_check_branch
          %570 = sbr.rel (%p568) target = $region28
        $region27: #{tpu_custom_call.1} parent=11 // pred_region
          %s571 = smul.u32 4, %s47
          %p572 = scmp.lt.s32.totalorder %s571, 3
          %s573 = scalar_select %p572, %s571, 3
          %s574 = smul.addr %s573, 4
          %s575 = scalar_lea.vmem %s5, %s574
          %s576 = smul.u32 4, %s47
        $region28: #{tpu_custom_call.1} parent=11 // pred_fallthru
          _
        // Predicated region
        $region29: #{tpu_custom_call.1} parent=11 // pred_check
          %p577 = pneg %p226
        $region30: #{tpu_custom_call.1} parent=11 // pred_check_branch
          %579 = sbr.rel (%p577) target = $region32
        $region31: #{tpu_custom_call.1} parent=11 // pred_region
          _
        $region32: #{tpu_custom_call.1} parent=11 // pred_fallthru
          _
        // Predicated region
        $region33: #{tpu_custom_call.1} parent=11 // pred_check
          %p580 = pneg %p247
        $region34: #{tpu_custom_call.1} parent=11 // pred_check_branch
          %582 = sbr.rel (%p580) target = $region36
        $region35: #{tpu_custom_call.1} parent=11 // pred_region
          %s584 = ssub.s32 128, 128
          %585 = vsyncadd [#allocation7], %s584
          %s587 = sshll.u32 [#allocation6], 4
          %s588 = int_to_ptr.vmem [resolvable:$true] %s587
          %590 = dma.hbm_to_vmem [thread:$0]  %s7, 128, %s588, [#allocation7]
        $region36: #{tpu_custom_call.1} parent=11 // pred_fallthru
          _
        // Predicated region
        $region37: #{tpu_custom_call.1} parent=11 // pred_check
          %p591 = pneg %p268
        $region38: #{tpu_custom_call.1} parent=11 // pred_check_branch
          %593 = sbr.rel (%p591) target = $region40
        $region39: #{tpu_custom_call.1} parent=11 // pred_region
          _
        $region40: #{tpu_custom_call.1} parent=11 // pred_fallthru
          _
        // Predicated region
        $region41: #{tpu_custom_call.1} parent=11 // pred_check
          %p594 = pneg %p289
        $region42: #{tpu_custom_call.1} parent=11 // pred_check_branch
          %596 = sbr.rel (%p594) target = $region44
        $region43: #{tpu_custom_call.1} parent=11 // pred_region
          _
        $region44: #{tpu_custom_call.1} parent=11 // pred_fallthru
          _
        // Predicated region
        $region45: #{tpu_custom_call.1} parent=11 // pred_check
          %p597 = pneg %p310
        $region46: #{tpu_custom_call.1} parent=11 // pred_check_branch
          %599 = sbr.rel (%p597) target = $region48
        $region47: #{tpu_custom_call.1} parent=11 // pred_region
          _
        $region48: #{tpu_custom_call.1} parent=11 // pred_fallthru
          _
        // Predicated region
        $region49: #{tpu_custom_call.1} parent=11 // pred_check
          %p600 = pneg %p331
        $region50: #{tpu_custom_call.1} parent=11 // pred_check_branch
          %602 = sbr.rel (%p600) target = $region52
        $region51: #{tpu_custom_call.1} parent=11 // pred_region
          _
        $region52: #{tpu_custom_call.1} parent=11 // pred_fallthru
          _
        // Predicated region
        $region53: #{tpu_custom_call.1} parent=11 // pred_check
          %p603 = pneg %p352
        $region54: #{tpu_custom_call.1} parent=11 // pred_check_branch
          %605 = sbr.rel (%p603) target = $region56
        $region55: #{tpu_custom_call.1} parent=11 // pred_region
          _
        $region56: #{tpu_custom_call.1} parent=11 // pred_fallthru
          _
        // Predicated region
        $region57: #{tpu_custom_call.1} parent=11 // pred_check
          %p606 = pneg %p373
        $region58: #{tpu_custom_call.1} parent=11 // pred_check_branch
          %608 = sbr.rel (%p606) target = $region60
        $region59: #{tpu_custom_call.1} parent=11 // pred_region
          _
        $region60: #{tpu_custom_call.1} parent=11 // pred_fallthru
          _
        // Predicated region
        $region61: #{tpu_custom_call.1} parent=11 // pred_check
          %p609 = pneg %p394
        $region62: #{tpu_custom_call.1} parent=11 // pred_check_branch
          %611 = sbr.rel (%p609) target = $region64
        $region63: #{tpu_custom_call.1} parent=11 // pred_region
          _
        $region64: #{tpu_custom_call.1} parent=11 // pred_fallthru
          _
        // Predicated region
        $region65: #{tpu_custom_call.1} parent=11 // pred_check
          %p612 = pneg %p415
        $region66: #{tpu_custom_call.1} parent=11 // pred_check_branch
          %614 = sbr.rel (%p612) target = $region68
        $region67: #{tpu_custom_call.1} parent=11 // pred_region
          _
        $region68: #{tpu_custom_call.1} parent=11 // pred_fallthru
          _
        // Predicated region
        $region69: #{tpu_custom_call.1} parent=11 // pred_check
          %p615 = pneg %p436
        $region70: #{tpu_custom_call.1} parent=11 // pred_check_branch
          %617 = sbr.rel (%p615) target = $region72
        $region71: #{tpu_custom_call.1} parent=11 // pred_region
          _
        $region72: #{tpu_custom_call.1} parent=11 // pred_fallthru
          _
        // Predicated region
        $region73: #{tpu_custom_call.1} parent=11 // pred_check
          %p618 = pneg %p457
        $region74: #{tpu_custom_call.1} parent=11 // pred_check_branch
          %620 = sbr.rel (%p618) target = $region76
        $region75: #{tpu_custom_call.1} parent=11 // pred_region
          _
        $region76: #{tpu_custom_call.1} parent=11 // pred_fallthru
          _
        // Predicated region
        $region77: #{tpu_custom_call.1} parent=11 // pred_check
          %p621 = pneg %p478
        $region78: #{tpu_custom_call.1} parent=11 // pred_check_branch
          %623 = sbr.rel (%p621) target = $region80
        $region79: #{tpu_custom_call.1} parent=11 // pred_region
          _
        $region80: #{tpu_custom_call.1} parent=11 // pred_fallthru
          _
      $region12: #{tpu_custom_call.1} parent=5 // pred_fallthru
        _
      %p624 = scmp.lt.s32.totalorder %s37, 2
      // Predicated region
      $region81: #{tpu_custom_call.1} parent=5 // pred_check
        %p625 = pneg %p624
      $region82: #{tpu_custom_call.1} parent=5 // pred_check_branch
        %627 = sbr.rel (%p625) target = $region84
      $region83: #{tpu_custom_call.1} parent=5 // pred_region
        // Predicated region
        $region85: #{tpu_custom_call.1} parent=83 // pred_check
          %p628 = pneg %p69
        $region86: #{tpu_custom_call.1} parent=83 // pred_check_branch
          %630 = sbr.rel (%p628) target = $region88
        $region87: #{tpu_custom_call.1} parent=83 // pred_region
          %p631 = scmp.lt.s32.totalorder %s44, 1
          %s632 = scalar_select %p631, %s44, 1
          %s633 = smul.addr %s632, 8
          %s634 = scalar_lea.vmem %s0, %s633
        $region88: #{tpu_custom_call.1} parent=83 // pred_fallthru
          _
        // Predicated region
        $region89: #{tpu_custom_call.1} parent=83 // pred_check
          %p635 = pneg %p95
        $region90: #{tpu_custom_call.1} parent=83 // pred_check_branch
          %637 = sbr.rel (%p635) target = $region92
        $region91: #{tpu_custom_call.1} parent=83 // pred_region
          %s638 = sand.u32 %s85, 1
          %s639 = scalar_lea.sflag [#allocation4], %s638
          %s640 = sand.u32 %s85, 1
          %s641 = smul.addr %s640, 4
          %s642 = scalar_lea.vmem [#allocation3], %s641
          %s644 = ssub.s32 64, 64
          %645 = vsyncadd %s639, %s644
          %s646 = smul.addr %s44, 64
          %s647 = scalar_lea.hbm %s1, %s646
          %s649 = sshll.u32 %s642, 4
          %s650 = int_to_ptr.vmem [resolvable:$true] %s649
          %652 = dma.hbm_to_vmem [thread:$0]  %s647, 64, %s650, %s639
        $region92: #{tpu_custom_call.1} parent=83 // pred_fallthru
          _
      $region84: #{tpu_custom_call.1} parent=5 // pred_fallthru
        _
      %p653 = scmp.le.s32.totalorder 1, %s37
      %p654 = scmp.lt.s32.totalorder %s37, 3
      %p655 = pnand %p653, %p654
      %p656 = pneg %p655
      // Predicated region
      $region93: #{tpu_custom_call.1} parent=5 // pred_check
        _
      $region94: #{tpu_custom_call.1} parent=5 // pred_check_branch
        %658 = sbr.rel (%p655) target = $region96
      $region95: #{tpu_custom_call.1} parent=5 // pred_region
        %s659 = ssub.s32 %s37, 1
        %s660 = sand.u32 %s88, 1
        %s661 = scalar_lea.sflag [#allocation4], %s660
        %s662 = sand.u32 %s88, 1
        %s663 = smul.addr %s662, 4
        %s664 = scalar_lea.vmem [#allocation3], %s663
        // Predicated region
        $region97: #{tpu_custom_call.1} parent=95 // pred_check
          %p665 = pneg %p101
        $region98: #{tpu_custom_call.1} parent=95 // pred_check_branch
          %667 = sbr.rel (%p665) target = $region100
        $region99: #{tpu_custom_call.1} parent=95 // pred_region
          %668 = dma.done %s661, 64
        $region100: #{tpu_custom_call.1} parent=95 // pred_fallthru
          _
        // Predicated region
        $region101: #{tpu_custom_call.1} parent=95 // pred_check
          %p669 = pneg %p247
        $region102: #{tpu_custom_call.1} parent=95 // pred_check_branch
          %671 = sbr.rel (%p669) target = $region104
        $region103: #{tpu_custom_call.1} parent=95 // pred_region
          %672 = dma.done [#allocation7], 128
        $region104: #{tpu_custom_call.1} parent=95 // pred_fallthru
          _
        %p673 = scmp.lt.s32.totalorder %s46, 1
        %s674 = scalar_select %p673, %s46, 1
        %s675 = smul.addr %s674, 8
        %s676 = scalar_lea.vmem %s0, %s675
        %p677 = pneg %p75
        %p678 = pneg %p72
        %s679 = sand.u32 %s88, 1
        %s680 = scalar_lea.sflag [#allocation4], %s679
        %s681 = sand.u32 %s88, 1
        %s682 = smul.addr %s681, 4
        %s683 = scalar_lea.vmem [#allocation3], %s682
        %p684 = pneg %p101
        %p685 = pneg %p98
        %p686 = scmp.lt.s32.totalorder %s47, 0
        %s687 = scalar_select %p686, %s47, 0
        %s688 = smul.addr %s687, 4
        %s689 = scalar_lea.vmem %s2, %s688
        %p690 = pneg %p127
        %p691 = pneg %p124
        %p692 = scmp.lt.s32.totalorder %s47, 0
        %s693 = scalar_select %p692, %s47, 0
        %s694 = smul.addr %s693, 4
        %s695 = scalar_lea.vmem %s3, %s694
        %p696 = pneg %p153
        %p697 = pneg %p150
        %p698 = scmp.lt.s32.totalorder %s47, 0
        %s699 = scalar_select %p698, %s47, 0
        %s700 = smul.addr %s699, 4
        %s701 = scalar_lea.vmem %s4, %s700
        %p702 = pneg %p179
        %p703 = pneg %p176
        %s704 = smul.u32 4, %s47
        %p705 = scmp.lt.s32.totalorder %s704, 3
        %s706 = scalar_select %p705, %s704, 3
        %s707 = smul.addr %s706, 4
        %s708 = scalar_lea.vmem %s5, %s707
        %p709 = pneg %p205
        %p710 = pneg %p202
        %p711 = pneg %p226
        %p712 = pneg %p223
        %p713 = pneg %p247
        %p714 = pneg %p244
        %p715 = pneg %p268
        %p716 = pneg %p265
        %p717 = pneg %p289
        %p718 = pneg %p286
        %p719 = pneg %p310
        %p720 = pneg %p307
        %p721 = pneg %p331
        %p722 = pneg %p328
        %p723 = pneg %p352
        %p724 = pneg %p349
        %p725 = pneg %p373
        %p726 = pneg %p370
        %p727 = pneg %p394
        %p728 = pneg %p391
        %p729 = pneg %p415
        %p730 = pneg %p412
        %p731 = pneg %p436
        %p732 = pneg %p433
        %p733 = pneg %p457
        %p734 = pneg %p454
        %p735 = pneg %p478
        %p736 = pneg %p475
        %p737 = pneg %p504
        %p738 = pneg %p501
        %s739 = sand.u32 %s491, 1
        %s740 = scalar_lea.sflag [#allocation5], %s739
        %s741 = sand.u32 %s491, 1
        %s742 = smul.addr %s741, 8
        %s743 = scalar_lea.vmem [#allocation8], %s742
        %p744 = pneg %p532
        %p745 = pneg %p529
        %s746 = sand.u32 %s519, 1
        %s747 = scalar_lea.sflag [#allocation10], %s746
        %s748 = sand.u32 %s519, 1
        %s749 = smul.addr %s748, 16
        %s750 = scalar_lea.vmem [#allocation9], %s749
        %p751 = scmp.lt.s32.totalorder %s46, 1
        %s752 = scalar_select %p751, %s46, 1
        %s753 = smul.addr %s752, 8
        %s754 = scalar_lea.vmem %s0, %s753
        %p755 = scmp.lt.s32.totalorder %s47, 0
        %s756 = scalar_select %p755, %s47, 0
        %s757 = smul.addr %s756, 4
        %s758 = scalar_lea.vmem %s2, %s757
        %p759 = scmp.lt.s32.totalorder %s47, 0
        %s760 = scalar_select %p759, %s47, 0
        %s761 = smul.addr %s760, 4
        %s762 = scalar_lea.vmem %s3, %s761
        %p763 = scmp.lt.s32.totalorder %s47, 0
        %s764 = scalar_select %p763, %s47, 0
        %s765 = smul.addr %s764, 4
        %s766 = scalar_lea.vmem %s4, %s765
        %s767 = smul.u32 4, %s47
        %p768 = scmp.lt.s32.totalorder %s767, 3
        %s769 = scalar_select %p768, %s767, 3
        %s770 = smul.addr %s769, 4
        %s771 = scalar_lea.vmem %s5, %s770
        %s772 = smul.u32 4, %s47
        %s773 = smul.u32 4, %s47
        %p775 = scmp.eq.s32.totalorder %s47, 0
        // Predicated region
        $region105: #{tpu_custom_call.1} parent=95 // pred_check
          %p776 = pneg %p775
        $region106: #{tpu_custom_call.1} parent=95 // pred_check_branch
          %778 = sbr.rel (%p776) target = $region108
        $region107: #{tpu_custom_call.1} parent=95 // pred_region
          %vm779 = vcmask 261120
          %780 = vst.msk [vmem:[#allocation2] sm:$0xff] %vm779, 0.0
        $region108: #{tpu_custom_call.1} parent=95 // pred_fallthru
          _
        %v781 = vld [vmem:[%s664] sm:$0xf]
        %v782 = vld [vmem:[%s758] sm:$0xf]
        %v783 = vld [vmem:[%s758 + $0x4] sm:$0xf]
        %v784 = vld [vmem:[%s758 + $0x8] sm:$0xf]
        %v785 = vld [vmem:[%s758 + $0xc] sm:$0xf]
        %v790 = vunpack.c.l.b16 %v782
        %v791 = vunpack.c.l.b16 %v783
        %v792 = vunpack.c.l.b16 %v784
        %v793 = vunpack.c.l.b16 %v785
        %v794 = vpack.c.b16 %v791, %v790
        %v795 = vpack.c.b16 %v793, %v792
        %vm798 = vcmask 261120
        %v800 = vsel %vm798, %v781, 0
        %802 = vmatprep.subr.bf16.mxu0 0
        %803 = vmatpush1.bf16.msra.mxu0 %v794
        %804 = vmatprep.subr.bf16.mxu0 0
        %805 = vmatpush1.bf16.msra.mxu0 %v795
        %806 = vmatprep.subr.bf16.mxu0 0
        %807 = vmatpush1.bf16.msra.mxu0 0
        %808 = vmatprep.subr.bf16.mxu0 0
        %809 = vmatpush1.bf16.msra.mxu0 0
        %810 = vmatprep.subr.bf16.mxu0 0
        %811 = vmatpush1.bf16.msra.mxu0 0
        %812 = vmatprep.subr.bf16.mxu0 0
        %813 = vmatpush1.bf16.msra.mxu0 0
        %814 = vmatprep.subr.bf16.mxu0 0
        %815 = vmatpush1.bf16.msra.mxu0 0
        %816 = vmatprep.subr.bf16.mxu0 0
        %817 = vmatpush1.bf16.msra.mxu0 0
        %818 = vmatprep.subr.bf16.mxu0 0
        %819 = vmatpush1.bf16.msra.mxu0 0
        %820 = vmatprep.subr.bf16.mxu0 0
        %821 = vmatpush1.bf16.msra.mxu0 0
        %822 = vmatprep.subr.bf16.mxu0 0
        %823 = vmatpush1.bf16.msra.mxu0 0
        %824 = vmatprep.subr.bf16.mxu0 0
        %825 = vmatpush1.bf16.msra.mxu0 0
        %826 = vmatprep.subr.bf16.mxu0 0
        %827 = vmatpush1.bf16.msra.mxu0 0
        %828 = vmatprep.subr.bf16.mxu0 0
        %829 = vmatpush1.bf16.msra.mxu0 0
        %830 = vmatprep.subr.bf16.mxu0 0
        %831 = vmatpush1.bf16.msra.mxu0 0
        %832 = vmatprep.subr.bf16.mxu0 0
        %833 = vmatpush1.bf16.msra.mxu0 0
        %834 = vmatprep.mubr.bf16.mxu0 0
        %835 = vmatmul.mubr.bf16.gmra.mrb[0].mxu0 %v800
        %v836 = vpop.f32.mrb[0].mxu0
        %v837 = vadd.f32 0.0, %v836
        %v838 = vpop.f32.mrb[0].mxu0
        %v839 = vpop.f32.mrb[0].mxu0
        %v840 = vpop.f32.mrb[0].mxu0
        %841 = vdwg.mxu0
        %v842 = vld [vmem:[%s762] sm:$0xf]
        %v843 = vld [vmem:[%s762 + $0x4] sm:$0xf]
        %v844 = vld [vmem:[%s762 + $0x8] sm:$0xf]
        %v845 = vld [vmem:[%s762 + $0xc] sm:$0xf]
        %v850 = vunpack.c.l.b16 %v842
        %v851 = vunpack.c.l.b16 %v843
        %v852 = vunpack.c.l.b16 %v844
        %v853 = vunpack.c.l.b16 %v845
        %v854 = vpack.c.b16 %v851, %v850
        %v855 = vpack.c.b16 %v853, %v852
        %858 = vmatprep.subr.bf16.mxu0 0
        %859 = vmatpush1.bf16.msra.mxu0 %v854
        %860 = vmatprep.subr.bf16.mxu0 0
        %861 = vmatpush1.bf16.msra.mxu0 %v855
        %862 = vmatprep.subr.bf16.mxu0 0
        %863 = vmatpush1.bf16.msra.mxu0 0
        %864 = vmatprep.subr.bf16.mxu0 0
        %865 = vmatpush1.bf16.msra.mxu0 0
        %866 = vmatprep.subr.bf16.mxu0 0
        %867 = vmatpush1.bf16.msra.mxu0 0
        %868 = vmatprep.subr.bf16.mxu0 0
        %869 = vmatpush1.bf16.msra.mxu0 0
        %870 = vmatprep.subr.bf16.mxu0 0
        %871 = vmatpush1.bf16.msra.mxu0 0
        %872 = vmatprep.subr.bf16.mxu0 0
        %873 = vmatpush1.bf16.msra.mxu0 0
        %874 = vmatprep.subr.bf16.mxu0 0
        %875 = vmatpush1.bf16.msra.mxu0 0
        %876 = vmatprep.subr.bf16.mxu0 0
        %877 = vmatpush1.bf16.msra.mxu0 0
        %878 = vmatprep.subr.bf16.mxu0 0
        %879 = vmatpush1.bf16.msra.mxu0 0
        %880 = vmatprep.subr.bf16.mxu0 0
        %881 = vmatpush1.bf16.msra.mxu0 0
        %882 = vmatprep.subr.bf16.mxu0 0
        %883 = vmatpush1.bf16.msra.mxu0 0
        %884 = vmatprep.subr.bf16.mxu0 0
        %885 = vmatpush1.bf16.msra.mxu0 0
        %886 = vmatprep.subr.bf16.mxu0 0
        %887 = vmatpush1.bf16.msra.mxu0 0
        %888 = vmatprep.subr.bf16.mxu0 0
        %889 = vmatpush1.bf16.msra.mxu0 0
        %890 = vmatprep.mubr.bf16.mxu0 0
        %891 = vmatmul.mubr.bf16.gmra.mrb[0].mxu0 %v800
        %v892 = vpop.f32.mrb[0].mxu0
        %v893 = vadd.f32 0.0, %v892
        %v894 = vpop.f32.mrb[0].mxu0
        %v895 = vpop.f32.mrb[0].mxu0
        %v896 = vpop.f32.mrb[0].mxu0
        %897 = vdwg.mxu0
        %v898 = vld [vmem:[%s766] sm:$0xf]
        %v899 = vld [vmem:[%s766 + $0x4] sm:$0xf]
        %v900 = vld [vmem:[%s766 + $0x8] sm:$0xf]
        %v901 = vld [vmem:[%s766 + $0xc] sm:$0xf]
        %v906 = vunpack.c.l.b16 %v898
        %v907 = vunpack.c.l.b16 %v899
        %v908 = vunpack.c.l.b16 %v900
        %v909 = vunpack.c.l.b16 %v901
        %v910 = vpack.c.b16 %v907, %v906
        %v911 = vpack.c.b16 %v909, %v908
        %914 = vmatprep.subr.bf16.mxu0 0
        %915 = vmatpush1.bf16.msra.mxu0 %v910
        %916 = vmatprep.subr.bf16.mxu0 0
        %917 = vmatpush1.bf16.msra.mxu0 %v911
        %918 = vmatprep.subr.bf16.mxu0 0
        %919 = vmatpush1.bf16.msra.mxu0 0
        %920 = vmatprep.subr.bf16.mxu0 0
        %921 = vmatpush1.bf16.msra.mxu0 0
        %922 = vmatprep.subr.bf16.mxu0 0
        %923 = vmatpush1.bf16.msra.mxu0 0
        %924 = vmatprep.subr.bf16.mxu0 0
        %925 = vmatpush1.bf16.msra.mxu0 0
        %926 = vmatprep.subr.bf16.mxu0 0
        %927 = vmatpush1.bf16.msra.mxu0 0
        %928 = vmatprep.subr.bf16.mxu0 0
        %929 = vmatpush1.bf16.msra.mxu0 0
        %930 = vmatprep.subr.bf16.mxu0 0
        %931 = vmatpush1.bf16.msra.mxu0 0
        %932 = vmatprep.subr.bf16.mxu0 0
        %933 = vmatpush1.bf16.msra.mxu0 0
        %934 = vmatprep.subr.bf16.mxu0 0
        %935 = vmatpush1.bf16.msra.mxu0 0
        %936 = vmatprep.subr.bf16.mxu0 0
        %937 = vmatpush1.bf16.msra.mxu0 0
        %938 = vmatprep.subr.bf16.mxu0 0
        %939 = vmatpush1.bf16.msra.mxu0 0
        %940 = vmatprep.subr.bf16.mxu0 0
        %941 = vmatpush1.bf16.msra.mxu0 0
        %942 = vmatprep.subr.bf16.mxu0 0
        %943 = vmatpush1.bf16.msra.mxu0 0
        %944 = vmatprep.subr.bf16.mxu0 0
        %945 = vmatpush1.bf16.msra.mxu0 0
        %946 = vmatprep.mubr.bf16.mxu0 0
        %947 = vmatmul.mubr.bf16.gmra.mrb[0].mxu0 %v800
        %v948 = vpop.f32.mrb[0].mxu0
        %v949 = vadd.f32 0.0, %v948
        %v950 = vpop.f32.mrb[0].mxu0
        %v951 = vpop.f32.mrb[0].mxu0
        %v952 = vpop.f32.mrb[0].mxu0
        %953 = vdwg.mxu0
        %955 = vrot.lane.b32.xlu0 %v837, 120
        %v956 = vpop.permute.xlu0 %955
        %958 = vrot.lane.b32.xlu0 %v837, 112
        %v959 = vpop.permute.xlu0 %958
        %961 = vrot.lane.b32.xlu0 %v837, 104
        %v962 = vpop.permute.xlu0 %961
        %v964 = vcombine.low %v837, %v959
        %v965 = vcombine.high %v837, %v959
        %v967 = vunpack.c.l.s4 1983009808
        %v968 = vunpack.c.0.s8 %v967
        %v969 = vlaneseq
        %v970 = vshrl.u32 %v969, 7
        %v971 = vsub.s32 %v968, %v970
        %v972 = vrot.slane %v964, %v971
        %v974 = vunpack.c.l.s4 1983009808
        %v975 = vunpack.c.0.s8 %v974
        %v976 = vlaneseq
        %v977 = vshrl.u32 %v976, 7
        %v978 = vsub.s32 %v975, %v977
        %v979 = vrot.slane %v965, %v978
        %v980 = vcombine.low %v956, %v962
        %v981 = vcombine.high %v956, %v962
        %v983 = vunpack.c.l.s4 1983009808
        %v984 = vunpack.c.0.s8 %v983
        %v985 = vlaneseq
        %v986 = vshrl.u32 %v985, 7
        %v987 = vsub.s32 %v984, %v986
        %v988 = vrot.slane %v980, %v987
        %v990 = vunpack.c.l.s4 1983009808
        %v991 = vunpack.c.0.s8 %v990
        %v992 = vlaneseq
        %v993 = vshrl.u32 %v992, 7
        %v994 = vsub.s32 %v991, %v993
        %v995 = vrot.slane %v981, %v994
        %v996 = vcombine.low %v972, %v988
        %v997 = vcombine.high %v972, %v988
        %v999 = vunpack.c.l.s4 1934713408
        %v1000 = vunpack.c.0.s8 %v999
        %v1001 = vlaneseq
        %v1002 = vshrl.u32 %v1001, 7
        %v1003 = vsub.s32 %v1000, %v1002
        %v1004 = vrot.slane %v996, %v1003
        %v1006 = vunpack.c.l.s4 1934713408
        %v1007 = vunpack.c.0.s8 %v1006
        %v1008 = vlaneseq
        %v1009 = vshrl.u32 %v1008, 7
        %v1010 = vsub.s32 %v1007, %v1009
        %v1011 = vrot.slane %v997, %v1010
        %v1012 = vcombine.low %v979, %v995
        %v1013 = vcombine.high %v979, %v995
        %v1015 = vunpack.c.l.s4 1934713408
        %v1016 = vunpack.c.0.s8 %v1015
        %v1017 = vlaneseq
        %v1018 = vshrl.u32 %v1017, 7
        %v1019 = vsub.s32 %v1016, %v1018
        %v1020 = vrot.slane %v1012, %v1019
        %v1022 = vunpack.c.l.s4 1934713408
        %v1023 = vunpack.c.0.s8 %v1022
        %v1024 = vlaneseq
        %v1025 = vshrl.u32 %v1024, 7
        %v1026 = vsub.s32 %v1023, %v1025
        %v1027 = vrot.slane %v1013, %v1026
        %v1028 = vcombine.high %v1004, 0.0
        %v1029 = vcombine.high %v1011, 0.0
        %v1030 = vcombine.high %v1020, 0.0
        %v1031 = vcombine.high %v1027, 0.0
        %1033 = vrot.lane.b32.xlu0 %v893, 120
        %v1034 = vpop.permute.xlu0 %1033
        %1036 = vrot.lane.b32.xlu0 %v893, 112
        %v1037 = vpop.permute.xlu0 %1036
        %1039 = vrot.lane.b32.xlu0 %v893, 104
        %v1040 = vpop.permute.xlu0 %1039
        %v1042 = vcombine.low %v893, %v1037
        %v1043 = vcombine.high %v893, %v1037
        %v1045 = vunpack.c.l.s4 1983009808
        %v1046 = vunpack.c.0.s8 %v1045
        %v1047 = vlaneseq
        %v1048 = vshrl.u32 %v1047, 7
        %v1049 = vsub.s32 %v1046, %v1048
        %v1050 = vrot.slane %v1042, %v1049
        %v1052 = vunpack.c.l.s4 1983009808
        %v1053 = vunpack.c.0.s8 %v1052
        %v1054 = vlaneseq
        %v1055 = vshrl.u32 %v1054, 7
        %v1056 = vsub.s32 %v1053, %v1055
        %v1057 = vrot.slane %v1043, %v1056
        %v1058 = vcombine.low %v1034, %v1040
        %v1059 = vcombine.high %v1034, %v1040
        %v1061 = vunpack.c.l.s4 1983009808
        %v1062 = vunpack.c.0.s8 %v1061
        %v1063 = vlaneseq
        %v1064 = vshrl.u32 %v1063, 7
        %v1065 = vsub.s32 %v1062, %v1064
        %v1066 = vrot.slane %v1058, %v1065
        %v1068 = vunpack.c.l.s4 1983009808
        %v1069 = vunpack.c.0.s8 %v1068
        %v1070 = vlaneseq
        %v1071 = vshrl.u32 %v1070, 7
        %v1072 = vsub.s32 %v1069, %v1071
        %v1073 = vrot.slane %v1059, %v1072
        %v1074 = vcombine.low %v1050, %v1066
        %v1075 = vcombine.high %v1050, %v1066
        %v1077 = vunpack.c.l.s4 1934713408
        %v1078 = vunpack.c.0.s8 %v1077
        %v1079 = vlaneseq
        %v1080 = vshrl.u32 %v1079, 7
        %v1081 = vsub.s32 %v1078, %v1080
        %v1082 = vrot.slane %v1074, %v1081
        %v1084 = vunpack.c.l.s4 1934713408
        %v1085 = vunpack.c.0.s8 %v1084
        %v1086 = vlaneseq
        %v1087 = vshrl.u32 %v1086, 7
        %v1088 = vsub.s32 %v1085, %v1087
        %v1089 = vrot.slane %v1075, %v1088
        %v1090 = vcombine.low %v1057, %v1073
        %v1091 = vcombine.high %v1057, %v1073
        %v1093 = vunpack.c.l.s4 1934713408
        %v1094 = vunpack.c.0.s8 %v1093
        %v1095 = vlaneseq
        %v1096 = vshrl.u32 %v1095, 7
        %v1097 = vsub.s32 %v1094, %v1096
        %v1098 = vrot.slane %v1090, %v1097
        %v1100 = vunpack.c.l.s4 1934713408
        %v1101 = vunpack.c.0.s8 %v1100
        %v1102 = vlaneseq
        %v1103 = vshrl.u32 %v1102, 7
        %v1104 = vsub.s32 %v1101, %v1103
        %v1105 = vrot.slane %v1091, %v1104
        %v1106 = vcombine.high %v1082, 0.0
        %v1107 = vcombine.high %v1089, 0.0
        %v1108 = vcombine.high %v1098, 0.0
        %v1109 = vcombine.high %v1105, 0.0
        %1111 = vrot.lane.b32.xlu0 %v949, 120
        %v1112 = vpop.permute.xlu0 %1111
        %1114 = vrot.lane.b32.xlu0 %v949, 112
        %v1115 = vpop.permute.xlu0 %1114
        %1117 = vrot.lane.b32.xlu0 %v949, 104
        %v1118 = vpop.permute.xlu0 %1117
        %v1120 = vcombine.low %v949, %v1115
        %v1121 = vcombine.high %v949, %v1115
        %v1123 = vunpack.c.l.s4 1983009808
        %v1124 = vunpack.c.0.s8 %v1123
        %v1125 = vlaneseq
        %v1126 = vshrl.u32 %v1125, 7
        %v1127 = vsub.s32 %v1124, %v1126
        %v1128 = vrot.slane %v1120, %v1127
        %v1130 = vunpack.c.l.s4 1983009808
        %v1131 = vunpack.c.0.s8 %v1130
        %v1132 = vlaneseq
        %v1133 = vshrl.u32 %v1132, 7
        %v1134 = vsub.s32 %v1131, %v1133
        %v1135 = vrot.slane %v1121, %v1134
        %v1136 = vcombine.low %v1112, %v1118
        %v1137 = vcombine.high %v1112, %v1118
        %v1139 = vunpack.c.l.s4 1983009808
        %v1140 = vunpack.c.0.s8 %v1139
        %v1141 = vlaneseq
        %v1142 = vshrl.u32 %v1141, 7
        %v1143 = vsub.s32 %v1140, %v1142
        %v1144 = vrot.slane %v1136, %v1143
        %v1146 = vunpack.c.l.s4 1983009808
        %v1147 = vunpack.c.0.s8 %v1146
        %v1148 = vlaneseq
        %v1149 = vshrl.u32 %v1148, 7
        %v1150 = vsub.s32 %v1147, %v1149
        %v1151 = vrot.slane %v1137, %v1150
        %v1152 = vcombine.low %v1128, %v1144
        %v1153 = vcombine.high %v1128, %v1144
        %v1155 = vunpack.c.l.s4 1934713408
        %v1156 = vunpack.c.0.s8 %v1155
        %v1157 = vlaneseq
        %v1158 = vshrl.u32 %v1157, 7
        %v1159 = vsub.s32 %v1156, %v1158
        %v1160 = vrot.slane %v1152, %v1159
        %v1162 = vunpack.c.l.s4 1934713408
        %v1163 = vunpack.c.0.s8 %v1162
        %v1164 = vlaneseq
        %v1165 = vshrl.u32 %v1164, 7
        %v1166 = vsub.s32 %v1163, %v1165
        %v1167 = vrot.slane %v1153, %v1166
        %v1168 = vcombine.low %v1135, %v1151
        %v1169 = vcombine.high %v1135, %v1151
        %v1171 = vunpack.c.l.s4 1934713408
        %v1172 = vunpack.c.0.s8 %v1171
        %v1173 = vlaneseq
        %v1174 = vshrl.u32 %v1173, 7
        %v1175 = vsub.s32 %v1172, %v1174
        %v1176 = vrot.slane %v1168, %v1175
        %v1178 = vunpack.c.l.s4 1934713408
        %v1179 = vunpack.c.0.s8 %v1178
        %v1180 = vlaneseq
        %v1181 = vshrl.u32 %v1180, 7
        %v1182 = vsub.s32 %v1179, %v1181
        %v1183 = vrot.slane %v1169, %v1182
        %v1184 = vcombine.high %v1160, 0.0
        %v1185 = vcombine.high %v1167, 0.0
        %v1186 = vcombine.high %v1176, 0.0
        %v1187 = vcombine.high %v1183, 0.0
        %v1188 = vpack.c.bf16 %v1160, %v1160
        %v1189 = vpack.c.bf16 %v1184, %v1184
        %v1190 = vpack.c.bf16 %v1167, %v1167
        %v1191 = vpack.c.bf16 %v1185, %v1185
        %v1192 = vpack.c.bf16 %v1176, %v1176
        %v1193 = vpack.c.bf16 %v1186, %v1186
        %v1194 = vpack.c.bf16 %v1183, %v1183
        %v1195 = vpack.c.bf16 %v1187, %v1187
        %v1196 = vld [vmem:[%s6] sm:$0xff]
        %v1198 = vcombine.high %v1196, %v1196
        %v1200 = vunpack.c.l.s4 1966171168
        %v1201 = vunpack.c.0.s8 %v1200
        %v1202 = vlaneseq
        %v1203 = vshrl.u32 %v1202, 7
        %v1204 = vsub.s32 %v1201, %v1203
        %v1205 = vrot.slane %v1196, %v1204
        %v1207 = vunpack.c.l.s4 1966171168
        %v1208 = vunpack.c.0.s8 %v1207
        %v1209 = vlaneseq
        %v1210 = vshrl.u32 %v1209, 7
        %v1211 = vsub.s32 %v1208, %v1210
        %v1212 = vrot.slane %v1198, %v1211
        %v1213 = vcombine.high %v1205, %v1205
        %v1214 = vcombine.high %v1212, %v1212
        %v1216 = vunpack.c.l.s4 1966171168
        %v1217 = vunpack.c.0.s8 %v1216
        %v1218 = vlaneseq
        %v1219 = vshrl.u32 %v1218, 7
        %v1220 = vsub.s32 %v1217, %v1219
        %v1221 = vrot.slane %v1205, %v1220
        %v1223 = vunpack.c.l.s4 1966171168
        %v1224 = vunpack.c.0.s8 %v1223
        %v1225 = vlaneseq
        %v1226 = vshrl.u32 %v1225, 7
        %v1227 = vsub.s32 %v1224, %v1226
        %v1228 = vrot.slane %v1212, %v1227
        %v1230 = vunpack.c.l.s4 1966171168
        %v1231 = vunpack.c.0.s8 %v1230
        %v1232 = vlaneseq
        %v1233 = vshrl.u32 %v1232, 7
        %v1234 = vsub.s32 %v1231, %v1233
        %v1235 = vrot.slane %v1213, %v1234
        %v1237 = vunpack.c.l.s4 1966171168
        %v1238 = vunpack.c.0.s8 %v1237
        %v1239 = vlaneseq
        %v1240 = vshrl.u32 %v1239, 7
        %v1241 = vsub.s32 %v1238, %v1240
        %v1242 = vrot.slane %v1214, %v1241
        %v1243 = vcombine.high %v1221, %v1221
        %v1244 = vcombine.high %v1228, %v1228
        %v1245 = vcombine.high %v1235, %v1235
        %v1246 = vcombine.high %v1242, %v1242
        %v1247 = vld [vmem:[#allocation6] sm:$0xff]
        %v1249 = vcombine.high %v1247, %v1247
        %v1251 = vunpack.c.l.s4 1966171168
        %v1252 = vunpack.c.0.s8 %v1251
        %v1253 = vlaneseq
        %v1254 = vshrl.u32 %v1253, 7
        %v1255 = vsub.s32 %v1252, %v1254
        %v1256 = vrot.slane %v1247, %v1255
        %v1258 = vunpack.c.l.s4 1966171168
        %v1259 = vunpack.c.0.s8 %v1258
        %v1260 = vlaneseq
        %v1261 = vshrl.u32 %v1260, 7
        %v1262 = vsub.s32 %v1259, %v1261
        %v1263 = vrot.slane %v1249, %v1262
        %v1264 = vcombine.high %v1256, %v1256
        %v1265 = vcombine.high %v1263, %v1263
        %v1267 = vunpack.c.l.s4 1966171168
        %v1268 = vunpack.c.0.s8 %v1267
        %v1269 = vlaneseq
        %v1270 = vshrl.u32 %v1269, 7
        %v1271 = vsub.s32 %v1268, %v1270
        %v1272 = vrot.slane %v1256, %v1271
        %v1274 = vunpack.c.l.s4 1966171168
        %v1275 = vunpack.c.0.s8 %v1274
        %v1276 = vlaneseq
        %v1277 = vshrl.u32 %v1276, 7
        %v1278 = vsub.s32 %v1275, %v1277
        %v1279 = vrot.slane %v1263, %v1278
        %v1281 = vunpack.c.l.s4 1966171168
        %v1282 = vunpack.c.0.s8 %v1281
        %v1283 = vlaneseq
        %v1284 = vshrl.u32 %v1283, 7
        %v1285 = vsub.s32 %v1282, %v1284
        %v1286 = vrot.slane %v1264, %v1285
        %v1288 = vunpack.c.l.s4 1966171168
        %v1289 = vunpack.c.0.s8 %v1288
        %v1290 = vlaneseq
        %v1291 = vshrl.u32 %v1290, 7
        %v1292 = vsub.s32 %v1289, %v1291
        %v1293 = vrot.slane %v1265, %v1292
        %v1294 = vcombine.high %v1272, %v1272
        %v1295 = vcombine.high %v1279, %v1279
        %v1296 = vcombine.high %v1286, %v1286
        %v1297 = vcombine.high %v1293, %v1293
        %v1298 = vld [vmem:[%s8] sm:$0xff]
        %v1300 = vcombine.high %v1298, %v1298
        %v1302 = vunpack.c.l.s4 1966171168
        %v1303 = vunpack.c.0.s8 %v1302
        %v1304 = vlaneseq
        %v1305 = vshrl.u32 %v1304, 7
        %v1306 = vsub.s32 %v1303, %v1305
        %v1307 = vrot.slane %v1298, %v1306
        %v1309 = vunpack.c.l.s4 1966171168
        %v1310 = vunpack.c.0.s8 %v1309
        %v1311 = vlaneseq
        %v1312 = vshrl.u32 %v1311, 7
        %v1313 = vsub.s32 %v1310, %v1312
        %v1314 = vrot.slane %v1300, %v1313
        %v1315 = vcombine.high %v1307, %v1307
        %v1316 = vcombine.high %v1314, %v1314
        %v1318 = vunpack.c.l.s4 1966171168
        %v1319 = vunpack.c.0.s8 %v1318
        %v1320 = vlaneseq
        %v1321 = vshrl.u32 %v1320, 7
        %v1322 = vsub.s32 %v1319, %v1321
        %v1323 = vrot.slane %v1307, %v1322
        %v1325 = vunpack.c.l.s4 1966171168
        %v1326 = vunpack.c.0.s8 %v1325
        %v1327 = vlaneseq
        %v1328 = vshrl.u32 %v1327, 7
        %v1329 = vsub.s32 %v1326, %v1328
        %v1330 = vrot.slane %v1314, %v1329
        %v1332 = vunpack.c.l.s4 1966171168
        %v1333 = vunpack.c.0.s8 %v1332
        %v1334 = vlaneseq
        %v1335 = vshrl.u32 %v1334, 7
        %v1336 = vsub.s32 %v1333, %v1335
        %v1337 = vrot.slane %v1315, %v1336
        %v1339 = vunpack.c.l.s4 1966171168
        %v1340 = vunpack.c.0.s8 %v1339
        %v1341 = vlaneseq
        %v1342 = vshrl.u32 %v1341, 7
        %v1343 = vsub.s32 %v1340, %v1342
        %v1344 = vrot.slane %v1316, %v1343
        %v1345 = vcombine.high %v1323, %v1323
        %v1346 = vcombine.high %v1330, %v1330
        %v1347 = vcombine.high %v1337, %v1337
        %v1348 = vcombine.high %v1344, %v1344
        %v1349 = vld [vmem:[%s9] sm:$0xff]
        %v1351 = vcombine.high %v1349, %v1349
        %v1353 = vunpack.c.l.s4 1966171168
        %v1354 = vunpack.c.0.s8 %v1353
        %v1355 = vlaneseq
        %v1356 = vshrl.u32 %v1355, 7
        %v1357 = vsub.s32 %v1354, %v1356
        %v1358 = vrot.slane %v1349, %v1357
        %v1360 = vunpack.c.l.s4 1966171168
        %v1361 = vunpack.c.0.s8 %v1360
        %v1362 = vlaneseq
        %v1363 = vshrl.u32 %v1362, 7
        %v1364 = vsub.s32 %v1361, %v1363
        %v1365 = vrot.slane %v1351, %v1364
        %v1366 = vcombine.high %v1358, %v1358
        %v1367 = vcombine.high %v1365, %v1365
        %v1369 = vunpack.c.l.s4 1966171168
        %v1370 = vunpack.c.0.s8 %v1369
        %v1371 = vlaneseq
        %v1372 = vshrl.u32 %v1371, 7
        %v1373 = vsub.s32 %v1370, %v1372
        %v1374 = vrot.slane %v1358, %v1373
        %v1376 = vunpack.c.l.s4 1966171168
        %v1377 = vunpack.c.0.s8 %v1376
        %v1378 = vlaneseq
        %v1379 = vshrl.u32 %v1378, 7
        %v1380 = vsub.s32 %v1377, %v1379
        %v1381 = vrot.slane %v1365, %v1380
        %v1383 = vunpack.c.l.s4 1966171168
        %v1384 = vunpack.c.0.s8 %v1383
        %v1385 = vlaneseq
        %v1386 = vshrl.u32 %v1385, 7
        %v1387 = vsub.s32 %v1384, %v1386
        %v1388 = vrot.slane %v1366, %v1387
        %v1390 = vunpack.c.l.s4 1966171168
        %v1391 = vunpack.c.0.s8 %v1390
        %v1392 = vlaneseq
        %v1393 = vshrl.u32 %v1392, 7
        %v1394 = vsub.s32 %v1391, %v1393
        %v1395 = vrot.slane %v1367, %v1394
        %v1396 = vcombine.high %v1374, %v1374
        %v1397 = vcombine.high %v1381, %v1381
        %v1398 = vcombine.high %v1388, %v1388
        %v1399 = vcombine.high %v1395, %v1395
        %1408 = vrot.lane.b32.xlu0 %v1004, 124
        %v1409 = vpop.permute.xlu0 %1408
        %1410 = vrot.lane.b32.xlu0 %v1028, 124
        %v1411 = vpop.permute.xlu0 %1410
        %1412 = vrot.lane.b32.xlu0 %v1011, 124
        %v1413 = vpop.permute.xlu0 %1412
        %1414 = vrot.lane.b32.xlu0 %v1029, 124
        %v1415 = vpop.permute.xlu0 %1414
        %1416 = vrot.lane.b32.xlu0 %v1020, 124
        %v1417 = vpop.permute.xlu0 %1416
        %1418 = vrot.lane.b32.xlu0 %v1030, 124
        %v1419 = vpop.permute.xlu0 %1418
        %1420 = vrot.lane.b32.xlu0 %v1027, 124
        %v1421 = vpop.permute.xlu0 %1420
        %1422 = vrot.lane.b32.xlu0 %v1031, 124
        %v1423 = vpop.permute.xlu0 %1422
        %1432 = vrot.lane.b32.xlu0 %v1004, 4
        %v1433 = vpop.permute.xlu0 %1432
        %1434 = vrot.lane.b32.xlu0 %v1028, 4
        %v1435 = vpop.permute.xlu0 %1434
        %1436 = vrot.lane.b32.xlu0 %v1011, 4
        %v1437 = vpop.permute.xlu0 %1436
        %1438 = vrot.lane.b32.xlu0 %v1029, 4
        %v1439 = vpop.permute.xlu0 %1438
        %1440 = vrot.lane.b32.xlu0 %v1020, 4
        %v1441 = vpop.permute.xlu0 %1440
        %1442 = vrot.lane.b32.xlu0 %v1030, 4
        %v1443 = vpop.permute.xlu0 %1442
        %1444 = vrot.lane.b32.xlu0 %v1027, 4
        %v1445 = vpop.permute.xlu0 %1444
        %1446 = vrot.lane.b32.xlu0 %v1031, 4
        %v1447 = vpop.permute.xlu0 %1446
        %vm1456 = vcmask 31744
        %v1457 = vsel %vm1456, %v1409, %v1433
        %v1458 = vsel %vm1456, %v1411, %v1435
        %v1459 = vsel %vm1456, %v1413, %v1437
        %v1460 = vsel %vm1456, %v1415, %v1439
        %v1461 = vsel %vm1456, %v1417, %v1441
        %v1462 = vsel %vm1456, %v1419, %v1443
        %v1463 = vsel %vm1456, %v1421, %v1445
        %v1464 = vsel %vm1456, %v1423, %v1447
        %v1465 = vlaneseq
        %v1466 = vshrl.u32 %v1465, 7
        %v1467 = vsub.s32 0, %v1466
        %v1468 = vrot.slane %v1221, %v1467
        %v1469 = vlaneseq
        %v1470 = vshrl.u32 %v1469, 7
        %v1471 = vsub.s32 0, %v1470
        %v1472 = vrot.slane %v1235, %v1471
        %v1473 = vlaneseq
        %v1474 = vshrl.u32 %v1473, 7
        %v1475 = vsub.s32 0, %v1474
        %v1476 = vrot.slane %v1243, %v1475
        %v1477 = vlaneseq
        %v1478 = vshrl.u32 %v1477, 7
        %v1479 = vsub.s32 0, %v1478
        %v1480 = vrot.slane %v1245, %v1479
        %v1481 = vlaneseq
        %v1482 = vshrl.u32 %v1481, 7
        %v1483 = vsub.s32 0, %v1482
        %v1484 = vrot.slane %v1228, %v1483
        %v1485 = vlaneseq
        %v1486 = vshrl.u32 %v1485, 7
        %v1487 = vsub.s32 0, %v1486
        %v1488 = vrot.slane %v1242, %v1487
        %v1489 = vlaneseq
        %v1490 = vshrl.u32 %v1489, 7
        %v1491 = vsub.s32 0, %v1490
        %v1492 = vrot.slane %v1244, %v1491
        %v1493 = vlaneseq
        %v1494 = vshrl.u32 %v1493, 7
        %v1495 = vsub.s32 0, %v1494
        %v1496 = vrot.slane %v1246, %v1495
        %v1505 = vmul.f32 %v1004, %v1468
        %v1506 = vmul.f32 %v1028, %v1472
        %v1507 = vmul.f32 %v1011, %v1476
        %v1508 = vmul.f32 %v1029, %v1480
        %v1509 = vmul.f32 %v1020, %v1484
        %v1510 = vmul.f32 %v1030, %v1488
        %v1511 = vmul.f32 %v1027, %v1492
        %v1512 = vmul.f32 %v1031, %v1496
        %v1513 = vlaneseq
        %v1514 = vshrl.u32 %v1513, 7
        %v1515 = vsub.s32 0, %v1514
        %v1516 = vrot.slane %v1272, %v1515
        %v1517 = vlaneseq
        %v1518 = vshrl.u32 %v1517, 7
        %v1519 = vsub.s32 0, %v1518
        %v1520 = vrot.slane %v1286, %v1519
        %v1521 = vlaneseq
        %v1522 = vshrl.u32 %v1521, 7
        %v1523 = vsub.s32 0, %v1522
        %v1524 = vrot.slane %v1294, %v1523
        %v1525 = vlaneseq
        %v1526 = vshrl.u32 %v1525, 7
        %v1527 = vsub.s32 0, %v1526
        %v1528 = vrot.slane %v1296, %v1527
        %v1529 = vlaneseq
        %v1530 = vshrl.u32 %v1529, 7
        %v1531 = vsub.s32 0, %v1530
        %v1532 = vrot.slane %v1279, %v1531
        %v1533 = vlaneseq
        %v1534 = vshrl.u32 %v1533, 7
        %v1535 = vsub.s32 0, %v1534
        %v1536 = vrot.slane %v1293, %v1535
        %v1537 = vlaneseq
        %v1538 = vshrl.u32 %v1537, 7
        %v1539 = vsub.s32 0, %v1538
        %v1540 = vrot.slane %v1295, %v1539
        %v1541 = vlaneseq
        %v1542 = vshrl.u32 %v1541, 7
        %v1543 = vsub.s32 0, %v1542
        %v1544 = vrot.slane %v1297, %v1543
        %v1553 = vmul.f32 %v1457, %v1516
        %v1554 = vmul.f32 %v1458, %v1520
        %v1555 = vmul.f32 %v1459, %v1524
        %v1556 = vmul.f32 %v1460, %v1528
        %v1557 = vmul.f32 %v1461, %v1532
        %v1558 = vmul.f32 %v1462, %v1536
        %v1559 = vmul.f32 %v1463, %v1540
        %v1560 = vmul.f32 %v1464, %v1544
        %v1561 = vadd.f32 %v1505, %v1553
        %v1562 = vadd.f32 %v1506, %v1554
        %v1563 = vadd.f32 %v1507, %v1555
        %v1564 = vadd.f32 %v1508, %v1556
        %v1565 = vadd.f32 %v1509, %v1557
        %v1566 = vadd.f32 %v1510, %v1558
        %v1567 = vadd.f32 %v1511, %v1559
        %v1568 = vadd.f32 %v1512, %v1560
        %v1569 = vlaneseq
        %v1570 = vshrl.u32 %v1569, 7
        %v1571 = vsub.s32 0, %v1570
        %v1572 = vrot.slane %v1323, %v1571
        %v1573 = vlaneseq
        %v1574 = vshrl.u32 %v1573, 7
        %v1575 = vsub.s32 0, %v1574
        %v1576 = vrot.slane %v1337, %v1575
        %v1577 = vlaneseq
        %v1578 = vshrl.u32 %v1577, 7
        %v1579 = vsub.s32 0, %v1578
        %v1580 = vrot.slane %v1345, %v1579
        %v1581 = vlaneseq
        %v1582 = vshrl.u32 %v1581, 7
        %v1583 = vsub.s32 0, %v1582
        %v1584 = vrot.slane %v1347, %v1583
        %v1585 = vlaneseq
        %v1586 = vshrl.u32 %v1585, 7
        %v1587 = vsub.s32 0, %v1586
        %v1588 = vrot.slane %v1330, %v1587
        %v1589 = vlaneseq
        %v1590 = vshrl.u32 %v1589, 7
        %v1591 = vsub.s32 0, %v1590
        %v1592 = vrot.slane %v1344, %v1591
        %v1593 = vlaneseq
        %v1594 = vshrl.u32 %v1593, 7
        %v1595 = vsub.s32 0, %v1594
        %v1596 = vrot.slane %v1346, %v1595
        %v1597 = vlaneseq
        %v1598 = vshrl.u32 %v1597, 7
        %v1599 = vsub.s32 0, %v1598
        %v1600 = vrot.slane %v1348, %v1599
        %1601 = vset.pattern.permute.xlu0 0
        %1602 = vperm.xlu0 %1601, %v1572
        %v1603 = vpop.permute.xlu0 %1602
        %1605 = vset.pattern.permute.xlu0 0
        %1606 = vperm.xlu0 %1605, %v1576
        %v1607 = vpop.permute.xlu0 %1606
        %1609 = vset.pattern.permute.xlu0 0
        %1610 = vperm.xlu0 %1609, %v1580
        %v1611 = vpop.permute.xlu0 %1610
        %1613 = vset.pattern.permute.xlu0 0
        %1614 = vperm.xlu0 %1613, %v1584
        %v1615 = vpop.permute.xlu0 %1614
        %1617 = vset.pattern.permute.xlu0 0
        %1618 = vperm.xlu0 %1617, %v1588
        %v1619 = vpop.permute.xlu0 %1618
        %1621 = vset.pattern.permute.xlu0 0
        %1622 = vperm.xlu0 %1621, %v1592
        %v1623 = vpop.permute.xlu0 %1622
        %1625 = vset.pattern.permute.xlu0 0
        %1626 = vperm.xlu0 %1625, %v1596
        %v1627 = vpop.permute.xlu0 %1626
        %1629 = vset.pattern.permute.xlu0 0
        %1630 = vperm.xlu0 %1629, %v1600
        %v1631 = vpop.permute.xlu0 %1630
        %v1633 = vadd.f32 %v1561, %v1603
        %v1634 = vadd.f32 %v1562, %v1607
        %v1635 = vadd.f32 %v1563, %v1611
        %v1636 = vadd.f32 %v1564, %v1615
        %v1637 = vadd.f32 %v1565, %v1619
        %v1638 = vadd.f32 %v1566, %v1623
        %v1639 = vadd.f32 %v1567, %v1627
        %v1640 = vadd.f32 %v1568, %v1631
        %v1641 = vpack.c.bf16 %v1633, %v1633
        %v1642 = vpack.c.bf16 %v1634, %v1634
        %v1643 = vpack.c.bf16 %v1635, %v1635
        %v1644 = vpack.c.bf16 %v1636, %v1636
        %v1645 = vpack.c.bf16 %v1637, %v1637
        %v1646 = vpack.c.bf16 %v1638, %v1638
        %v1647 = vpack.c.bf16 %v1639, %v1639
        %v1648 = vpack.c.bf16 %v1640, %v1640
        %1657 = vrot.lane.b32.xlu0 %v1082, 124
        %v1658 = vpop.permute.xlu0 %1657
        %1659 = vrot.lane.b32.xlu0 %v1106, 124
        %v1660 = vpop.permute.xlu0 %1659
        %1661 = vrot.lane.b32.xlu0 %v1089, 124
        %v1662 = vpop.permute.xlu0 %1661
        %1663 = vrot.lane.b32.xlu0 %v1107, 124
        %v1664 = vpop.permute.xlu0 %1663
        %1665 = vrot.lane.b32.xlu0 %v1098, 124
        %v1666 = vpop.permute.xlu0 %1665
        %1667 = vrot.lane.b32.xlu0 %v1108, 124
        %v1668 = vpop.permute.xlu0 %1667
        %1669 = vrot.lane.b32.xlu0 %v1105, 124
        %v1670 = vpop.permute.xlu0 %1669
        %1671 = vrot.lane.b32.xlu0 %v1109, 124
        %v1672 = vpop.permute.xlu0 %1671
        %1681 = vrot.lane.b32.xlu0 %v1082, 4
        %v1682 = vpop.permute.xlu0 %1681
        %1683 = vrot.lane.b32.xlu0 %v1106, 4
        %v1684 = vpop.permute.xlu0 %1683
        %1685 = vrot.lane.b32.xlu0 %v1089, 4
        %v1686 = vpop.permute.xlu0 %1685
        %1687 = vrot.lane.b32.xlu0 %v1107, 4
        %v1688 = vpop.permute.xlu0 %1687
        %1689 = vrot.lane.b32.xlu0 %v1098, 4
        %v1690 = vpop.permute.xlu0 %1689
        %1691 = vrot.lane.b32.xlu0 %v1108, 4
        %v1692 = vpop.permute.xlu0 %1691
        %1693 = vrot.lane.b32.xlu0 %v1105, 4
        %v1694 = vpop.permute.xlu0 %1693
        %1695 = vrot.lane.b32.xlu0 %v1109, 4
        %v1696 = vpop.permute.xlu0 %1695
        %v1705 = vsel %vm1456, %v1658, %v1682
        %v1706 = vsel %vm1456, %v1660, %v1684
        %v1707 = vsel %vm1456, %v1662, %v1686
        %v1708 = vsel %vm1456, %v1664, %v1688
        %v1709 = vsel %vm1456, %v1666, %v1690
        %v1710 = vsel %vm1456, %v1668, %v1692
        %v1711 = vsel %vm1456, %v1670, %v1694
        %v1712 = vsel %vm1456, %v1672, %v1696
        %v1713 = vmul.f32 %v1082, %v1468
        %v1714 = vmul.f32 %v1106, %v1472
        %v1715 = vmul.f32 %v1089, %v1476
        %v1716 = vmul.f32 %v1107, %v1480
        %v1717 = vmul.f32 %v1098, %v1484
        %v1718 = vmul.f32 %v1108, %v1488
        %v1719 = vmul.f32 %v1105, %v1492
        %v1720 = vmul.f32 %v1109, %v1496
        %v1721 = vmul.f32 %v1705, %v1516
        %v1722 = vmul.f32 %v1706, %v1520
        %v1723 = vmul.f32 %v1707, %v1524
        %v1724 = vmul.f32 %v1708, %v1528
        %v1725 = vmul.f32 %v1709, %v1532
        %v1726 = vmul.f32 %v1710, %v1536
        %v1727 = vmul.f32 %v1711, %v1540
        %v1728 = vmul.f32 %v1712, %v1544
        %v1729 = vadd.f32 %v1713, %v1721
        %v1730 = vadd.f32 %v1714, %v1722
        %v1731 = vadd.f32 %v1715, %v1723
        %v1732 = vadd.f32 %v1716, %v1724
        %v1733 = vadd.f32 %v1717, %v1725
        %v1734 = vadd.f32 %v1718, %v1726
        %v1735 = vadd.f32 %v1719, %v1727
        %v1736 = vadd.f32 %v1720, %v1728
        %v1737 = vlaneseq
        %v1738 = vshrl.u32 %v1737, 7
        %v1739 = vsub.s32 0, %v1738
        %v1740 = vrot.slane %v1374, %v1739
        %v1741 = vlaneseq
        %v1742 = vshrl.u32 %v1741, 7
        %v1743 = vsub.s32 0, %v1742
        %v1744 = vrot.slane %v1388, %v1743
        %v1745 = vlaneseq
        %v1746 = vshrl.u32 %v1745, 7
        %v1747 = vsub.s32 0, %v1746
        %v1748 = vrot.slane %v1396, %v1747
        %v1749 = vlaneseq
        %v1750 = vshrl.u32 %v1749, 7
        %v1751 = vsub.s32 0, %v1750
        %v1752 = vrot.slane %v1398, %v1751
        %v1753 = vlaneseq
        %v1754 = vshrl.u32 %v1753, 7
        %v1755 = vsub.s32 0, %v1754
        %v1756 = vrot.slane %v1381, %v1755
        %v1757 = vlaneseq
        %v1758 = vshrl.u32 %v1757, 7
        %v1759 = vsub.s32 0, %v1758
        %v1760 = vrot.slane %v1395, %v1759
        %v1761 = vlaneseq
        %v1762 = vshrl.u32 %v1761, 7
        %v1763 = vsub.s32 0, %v1762
        %v1764 = vrot.slane %v1397, %v1763
        %v1765 = vlaneseq
        %v1766 = vshrl.u32 %v1765, 7
        %v1767 = vsub.s32 0, %v1766
        %v1768 = vrot.slane %v1399, %v1767
        %1769 = vset.pattern.permute.xlu0 0
        %1770 = vperm.xlu0 %1769, %v1740
        %v1771 = vpop.permute.xlu0 %1770
        %1773 = vset.pattern.permute.xlu0 0
        %1774 = vperm.xlu0 %1773, %v1744
        %v1775 = vpop.permute.xlu0 %1774
        %1777 = vset.pattern.permute.xlu0 0
        %1778 = vperm.xlu0 %1777, %v1748
        %v1779 = vpop.permute.xlu0 %1778
        %1781 = vset.pattern.permute.xlu0 0
        %1782 = vperm.xlu0 %1781, %v1752
        %v1783 = vpop.permute.xlu0 %1782
        %1785 = vset.pattern.permute.xlu0 0
        %1786 = vperm.xlu0 %1785, %v1756
        %v1787 = vpop.permute.xlu0 %1786
        %1789 = vset.pattern.permute.xlu0 0
        %1790 = vperm.xlu0 %1789, %v1760
        %v1791 = vpop.permute.xlu0 %1790
        %1793 = vset.pattern.permute.xlu0 0
        %1794 = vperm.xlu0 %1793, %v1764
        %v1795 = vpop.permute.xlu0 %1794
        %1797 = vset.pattern.permute.xlu0 0
        %1798 = vperm.xlu0 %1797, %v1768
        %v1799 = vpop.permute.xlu0 %1798
        %v1801 = vadd.f32 %v1729, %v1771
        %v1802 = vadd.f32 %v1730, %v1775
        %v1803 = vadd.f32 %v1731, %v1779
        %v1804 = vadd.f32 %v1732, %v1783
        %v1805 = vadd.f32 %v1733, %v1787
        %v1806 = vadd.f32 %v1734, %v1791
        %v1807 = vadd.f32 %v1735, %v1795
        %v1808 = vadd.f32 %v1736, %v1799
        %v1809 = vpack.c.bf16 %v1801, %v1801
        %v1810 = vpack.c.bf16 %v1802, %v1802
        %v1811 = vpack.c.bf16 %v1803, %v1803
        %v1812 = vpack.c.bf16 %v1804, %v1804
        %v1813 = vpack.c.bf16 %v1805, %v1805
        %v1814 = vpack.c.bf16 %v1806, %v1806
        %v1815 = vpack.c.bf16 %v1807, %v1807
        %v1816 = vpack.c.bf16 %v1808, %v1808
        %v1817 = vld [vmem:[%s10] sm:$0xff]
        %v1818 = vcombine.low %v1641, %v1645
        %v1820 = vunpack.c.l.s4 1983009808
        %v1821 = vunpack.c.0.s8 %v1820
        %v1822 = vlaneseq
        %v1823 = vshrl.u32 %v1822, 7
        %v1824 = vsub.s32 %v1821, %v1823
        %v1825 = vrot.slane %v1818, %v1824
        %v1826 = vcombine.low %v1643, %v1647
        %v1828 = vunpack.c.l.s4 1983009808
        %v1829 = vunpack.c.0.s8 %v1828
        %v1830 = vlaneseq
        %v1831 = vshrl.u32 %v1830, 7
        %v1832 = vsub.s32 %v1829, %v1831
        %v1833 = vrot.slane %v1826, %v1832
        %v1834 = vcombine.low %v1825, %v1833
        %v1836 = vunpack.c.l.s4 1934713408
        %v1837 = vunpack.c.0.s8 %v1836
        %v1838 = vlaneseq
        %v1839 = vshrl.u32 %v1838, 7
        %v1840 = vsub.s32 %v1837, %v1839
        %v1841 = vrot.slane %v1834, %v1840
        %v1842 = vcombine.high %v1841, 0
        %v1843 = vcombine.low %v1642, %v1646
        %v1845 = vunpack.c.l.s4 1983009808
        %v1846 = vunpack.c.0.s8 %v1845
        %v1847 = vlaneseq
        %v1848 = vshrl.u32 %v1847, 7
        %v1849 = vsub.s32 %v1846, %v1848
        %v1850 = vrot.slane %v1843, %v1849
        %v1851 = vcombine.low %v1644, %v1648
        %v1853 = vunpack.c.l.s4 1983009808
        %v1854 = vunpack.c.0.s8 %v1853
        %v1855 = vlaneseq
        %v1856 = vshrl.u32 %v1855, 7
        %v1857 = vsub.s32 %v1854, %v1856
        %v1858 = vrot.slane %v1851, %v1857
        %v1859 = vcombine.low %v1850, %v1858
        %v1861 = vunpack.c.l.s4 1934713408
        %v1862 = vunpack.c.0.s8 %v1861
        %v1863 = vlaneseq
        %v1864 = vshrl.u32 %v1863, 7
        %v1865 = vsub.s32 %v1862, %v1864
        %v1866 = vrot.slane %v1859, %v1865
        %v1867 = vcombine.high %v1866, 0
        %v1870 = vpack.i.b16 %v1866, %v1841
        %v1871 = vshrl.u32 %v1841, 16
        %v1872 = vshrl.u32 %v1866, 16
        %v1873 = vpack.i.b16 %v1872, %v1871
        %v1876 = vpack.i.b16 %v1867, %v1842
        %v1877 = vshrl.u32 %v1842, 16
        %v1878 = vshrl.u32 %v1867, 16
        %v1879 = vpack.i.b16 %v1878, %v1877
        %1880 = vxpose.xlu0.c.b16.start [1/8] %v1809, 128
        %1881 = vxpose.xlu0.c.b16.cont [2/8] 0, 128
        %1882 = vxpose.xlu0.c.b16.cont [3/8] 0, 128
        %1883 = vxpose.xlu0.c.b16.cont [4/8] 0, 128
        %1884 = vxpose.xlu0.c.b16.cont [5/8] 0, 128
        %1885 = vxpose.xlu0.c.b16.cont [6/8] 0, 128
        %1886 = vxpose.xlu0.c.b16.cont [7/8] 0, 128
        %1887 = vxpose.xlu0.c.b16.end [8/8] 0, 128
        %v1888 = vpop.trf.xlu0
        %v1889 = vpop.trf.xlu0
        %v1890 = vpop.trf.xlu0
        %v1891 = vpop.trf.xlu0
        %v1892 = vpop.trf.xlu0
        %v1893 = vpop.trf.xlu0
        %v1894 = vpop.trf.xlu0
        %v1895 = vpop.trf.xlu0
        %1896 = vxpose.xlu0.c.b16.start [1/8] %v1810, 128
        %1897 = vxpose.xlu0.c.b16.cont [2/8] 0, 128
        %1898 = vxpose.xlu0.c.b16.cont [3/8] 0, 128
        %1899 = vxpose.xlu0.c.b16.cont [4/8] 0, 128
        %1900 = vxpose.xlu0.c.b16.cont [5/8] 0, 128
        %1901 = vxpose.xlu0.c.b16.cont [6/8] 0, 128
        %1902 = vxpose.xlu0.c.b16.cont [7/8] 0, 128
        %1903 = vxpose.xlu0.c.b16.end [8/8] 0, 128
        %v1904 = vpop.trf.xlu0
        %v1905 = vpop.trf.xlu0
        %v1906 = vpop.trf.xlu0
        %v1907 = vpop.trf.xlu0
        %v1908 = vpop.trf.xlu0
        %v1909 = vpop.trf.xlu0
        %v1910 = vpop.trf.xlu0
        %v1911 = vpop.trf.xlu0
        %1912 = vxpose.xlu0.c.b16.start [1/8] %v1811, 128
        %1913 = vxpose.xlu0.c.b16.cont [2/8] 0, 128
        %1914 = vxpose.xlu0.c.b16.cont [3/8] 0, 128
        %1915 = vxpose.xlu0.c.b16.cont [4/8] 0, 128
        %1916 = vxpose.xlu0.c.b16.cont [5/8] 0, 128
        %1917 = vxpose.xlu0.c.b16.cont [6/8] 0, 128
        %1918 = vxpose.xlu0.c.b16.cont [7/8] 0, 128
        %1919 = vxpose.xlu0.c.b16.end [8/8] 0, 128
        %v1920 = vpop.trf.xlu0
        %v1921 = vpop.trf.xlu0
        %v1922 = vpop.trf.xlu0
        %v1923 = vpop.trf.xlu0
        %v1924 = vpop.trf.xlu0
        %v1925 = vpop.trf.xlu0
        %v1926 = vpop.trf.xlu0
        %v1927 = vpop.trf.xlu0
        %1928 = vxpose.xlu0.c.b16.start [1/8] %v1812, 128
        %1929 = vxpose.xlu0.c.b16.cont [2/8] 0, 128
        %1930 = vxpose.xlu0.c.b16.cont [3/8] 0, 128
        %1931 = vxpose.xlu0.c.b16.cont [4/8] 0, 128
        %1932 = vxpose.xlu0.c.b16.cont [5/8] 0, 128
        %1933 = vxpose.xlu0.c.b16.cont [6/8] 0, 128
        %1934 = vxpose.xlu0.c.b16.cont [7/8] 0, 128
        %1935 = vxpose.xlu0.c.b16.end [8/8] 0, 128
        %v1936 = vpop.trf.xlu0
        %v1937 = vpop.trf.xlu0
        %v1938 = vpop.trf.xlu0
        %v1939 = vpop.trf.xlu0
        %v1940 = vpop.trf.xlu0
        %v1941 = vpop.trf.xlu0
        %v1942 = vpop.trf.xlu0
        %v1943 = vpop.trf.xlu0
        %1944 = vxpose.xlu0.c.b16.start [1/8] %v1813, 128
        %1945 = vxpose.xlu0.c.b16.cont [2/8] 0, 128
        %1946 = vxpose.xlu0.c.b16.cont [3/8] 0, 128
        %1947 = vxpose.xlu0.c.b16.cont [4/8] 0, 128
        %1948 = vxpose.xlu0.c.b16.cont [5/8] 0, 128
        %1949 = vxpose.xlu0.c.b16.cont [6/8] 0, 128
        %1950 = vxpose.xlu0.c.b16.cont [7/8] 0, 128
        %1951 = vxpose.xlu0.c.b16.end [8/8] 0, 128
        %v1952 = vpop.trf.xlu0
        %v1953 = vpop.trf.xlu0
        %v1954 = vpop.trf.xlu0
        %v1955 = vpop.trf.xlu0
        %v1956 = vpop.trf.xlu0
        %v1957 = vpop.trf.xlu0
        %v1958 = vpop.trf.xlu0
        %v1959 = vpop.trf.xlu0
        %1960 = vxpose.xlu0.c.b16.start [1/8] %v1814, 128
        %1961 = vxpose.xlu0.c.b16.cont [2/8] 0, 128
        %1962 = vxpose.xlu0.c.b16.cont [3/8] 0, 128
        %1963 = vxpose.xlu0.c.b16.cont [4/8] 0, 128
        %1964 = vxpose.xlu0.c.b16.cont [5/8] 0, 128
        %1965 = vxpose.xlu0.c.b16.cont [6/8] 0, 128
        %1966 = vxpose.xlu0.c.b16.cont [7/8] 0, 128
        %1967 = vxpose.xlu0.c.b16.end [8/8] 0, 128
        %v1968 = vpop.trf.xlu0
        %v1969 = vpop.trf.xlu0
        %v1970 = vpop.trf.xlu0
        %v1971 = vpop.trf.xlu0
        %v1972 = vpop.trf.xlu0
        %v1973 = vpop.trf.xlu0
        %v1974 = vpop.trf.xlu0
        %v1975 = vpop.trf.xlu0
        %1976 = vxpose.xlu0.c.b16.start [1/8] %v1815, 128
        %1977 = vxpose.xlu0.c.b16.cont [2/8] 0, 128
        %1978 = vxpose.xlu0.c.b16.cont [3/8] 0, 128
        %1979 = vxpose.xlu0.c.b16.cont [4/8] 0, 128
        %1980 = vxpose.xlu0.c.b16.cont [5/8] 0, 128
        %1981 = vxpose.xlu0.c.b16.cont [6/8] 0, 128
        %1982 = vxpose.xlu0.c.b16.cont [7/8] 0, 128
        %1983 = vxpose.xlu0.c.b16.end [8/8] 0, 128
        %v1984 = vpop.trf.xlu0
        %v1985 = vpop.trf.xlu0
        %v1986 = vpop.trf.xlu0
        %v1987 = vpop.trf.xlu0
        %v1988 = vpop.trf.xlu0
        %v1989 = vpop.trf.xlu0
        %v1990 = vpop.trf.xlu0
        %v1991 = vpop.trf.xlu0
        %1992 = vxpose.xlu0.c.b16.start [1/8] %v1816, 128
        %1993 = vxpose.xlu0.c.b16.cont [2/8] 0, 128
        %1994 = vxpose.xlu0.c.b16.cont [3/8] 0, 128
        %1995 = vxpose.xlu0.c.b16.cont [4/8] 0, 128
        %1996 = vxpose.xlu0.c.b16.cont [5/8] 0, 128
        %1997 = vxpose.xlu0.c.b16.cont [6/8] 0, 128
        %1998 = vxpose.xlu0.c.b16.cont [7/8] 0, 128
        %1999 = vxpose.xlu0.c.b16.end [8/8] 0, 128
        %v2000 = vpop.trf.xlu0
        %v2001 = vpop.trf.xlu0
        %v2002 = vpop.trf.xlu0
        %v2003 = vpop.trf.xlu0
        %v2004 = vpop.trf.xlu0
        %v2005 = vpop.trf.xlu0
        %v2006 = vpop.trf.xlu0
        %v2007 = vpop.trf.xlu0
        %v2008 = vcombine.low %v1888, %v1952
        %v2010 = vunpack.c.l.s4 1983009808
        %v2011 = vunpack.c.0.s8 %v2010
        %v2012 = vlaneseq
        %v2013 = vshrl.u32 %v2012, 7
        %v2014 = vsub.s32 %v2011, %v2013
        %v2015 = vrot.slane %v2008, %v2014
        %v2016 = vcombine.low %v1920, %v1984
        %v2018 = vunpack.c.l.s4 1983009808
        %v2019 = vunpack.c.0.s8 %v2018
        %v2020 = vlaneseq
        %v2021 = vshrl.u32 %v2020, 7
        %v2022 = vsub.s32 %v2019, %v2021
        %v2023 = vrot.slane %v2016, %v2022
        %v2024 = vcombine.low %v2015, %v2023
        %v2025 = vcombine.high %v2015, %v2023
        %v2027 = vunpack.c.l.s4 1934713408
        %v2028 = vunpack.c.0.s8 %v2027
        %v2029 = vlaneseq
        %v2030 = vshrl.u32 %v2029, 7
        %v2031 = vsub.s32 %v2028, %v2030
        %v2032 = vrot.slane %v2024, %v2031
        %v2034 = vunpack.c.l.s4 1934713408
        %v2035 = vunpack.c.0.s8 %v2034
        %v2036 = vlaneseq
        %v2037 = vshrl.u32 %v2036, 7
        %v2038 = vsub.s32 %v2035, %v2037
        %v2039 = vrot.slane %v2025, %v2038
        %v2040 = vcombine.high %v2032, 0
        %v2041 = vcombine.high %v2039, 0
        %v2042 = vcombine.low %v1904, %v1968
        %v2044 = vunpack.c.l.s4 1983009808
        %v2045 = vunpack.c.0.s8 %v2044
        %v2046 = vlaneseq
        %v2047 = vshrl.u32 %v2046, 7
        %v2048 = vsub.s32 %v2045, %v2047
        %v2049 = vrot.slane %v2042, %v2048
        %v2050 = vcombine.low %v1936, %v2000
        %v2052 = vunpack.c.l.s4 1983009808
        %v2053 = vunpack.c.0.s8 %v2052
        %v2054 = vlaneseq
        %v2055 = vshrl.u32 %v2054, 7
        %v2056 = vsub.s32 %v2053, %v2055
        %v2057 = vrot.slane %v2050, %v2056
        %v2058 = vcombine.low %v2049, %v2057
        %v2059 = vcombine.high %v2049, %v2057
        %v2061 = vunpack.c.l.s4 1934713408
        %v2062 = vunpack.c.0.s8 %v2061
        %v2063 = vlaneseq
        %v2064 = vshrl.u32 %v2063, 7
        %v2065 = vsub.s32 %v2062, %v2064
        %v2066 = vrot.slane %v2058, %v2065
        %v2068 = vunpack.c.l.s4 1934713408
        %v2069 = vunpack.c.0.s8 %v2068
        %v2070 = vlaneseq
        %v2071 = vshrl.u32 %v2070, 7
        %v2072 = vsub.s32 %v2069, %v2071
        %v2073 = vrot.slane %v2059, %v2072
        %v2074 = vcombine.high %v2066, 0
        %v2075 = vcombine.high %v2073, 0
        %v2078 = vpack.i.b16 %v2066, %v2032
        %v2080 = vshrl.u32 %v2032, 16
        %v2081 = vshrl.u32 %v2066, 16
        %v2082 = vpack.i.b16 %v2081, %v2080
        %v2086 = vpack.i.b16 %v2074, %v2040
        %v2088 = vshrl.u32 %v2040, 16
        %v2089 = vshrl.u32 %v2074, 16
        %v2090 = vpack.i.b16 %v2089, %v2088
        %v2094 = vpack.i.b16 %v2073, %v2039
        %v2096 = vshrl.u32 %v2039, 16
        %v2097 = vshrl.u32 %v2073, 16
        %v2098 = vpack.i.b16 %v2097, %v2096
        %v2102 = vpack.i.b16 %v2075, %v2041
        %v2104 = vshrl.u32 %v2041, 16
        %v2105 = vshrl.u32 %v2075, 16
        %v2106 = vpack.i.b16 %v2105, %v2104
        %2108 = vxpose.xlu0.c.b16.start [1/8] %v2078, 128
        %2109 = vxpose.xlu0.c.b16.cont [2/8] 0, 128
        %2110 = vxpose.xlu0.c.b16.cont [3/8] 0, 128
        %2111 = vxpose.xlu0.c.b16.cont [4/8] 0, 128
        %2112 = vxpose.xlu0.c.b16.cont [5/8] 0, 128
        %2113 = vxpose.xlu0.c.b16.cont [6/8] 0, 128
        %2114 = vxpose.xlu0.c.b16.cont [7/8] 0, 128
        %2115 = vxpose.xlu0.c.b16.end [8/8] 0, 128
        %v2116 = vpop.trf.xlu0
        %v2117 = vpop.trf.xlu0
        %v2118 = vpop.trf.xlu0
        %v2119 = vpop.trf.xlu0
        %v2120 = vpop.trf.xlu0
        %v2121 = vpop.trf.xlu0
        %v2122 = vpop.trf.xlu0
        %v2123 = vpop.trf.xlu0
        %2124 = vxpose.xlu0.c.b16.start [1/8] %v2082, 128
        %2125 = vxpose.xlu0.c.b16.cont [2/8] 0, 128
        %2126 = vxpose.xlu0.c.b16.cont [3/8] 0, 128
        %2127 = vxpose.xlu0.c.b16.cont [4/8] 0, 128
        %2128 = vxpose.xlu0.c.b16.cont [5/8] 0, 128
        %2129 = vxpose.xlu0.c.b16.cont [6/8] 0, 128
        %2130 = vxpose.xlu0.c.b16.cont [7/8] 0, 128
        %2131 = vxpose.xlu0.c.b16.end [8/8] 0, 128
        %v2132 = vpop.trf.xlu0
        %v2133 = vpop.trf.xlu0
        %v2134 = vpop.trf.xlu0
        %v2135 = vpop.trf.xlu0
        %v2136 = vpop.trf.xlu0
        %v2137 = vpop.trf.xlu0
        %v2138 = vpop.trf.xlu0
        %v2139 = vpop.trf.xlu0
        %2140 = vxpose.xlu0.c.b16.start [1/8] %v2086, 128
        %2141 = vxpose.xlu0.c.b16.cont [2/8] 0, 128
        %2142 = vxpose.xlu0.c.b16.cont [3/8] 0, 128
        %2143 = vxpose.xlu0.c.b16.cont [4/8] 0, 128
        %2144 = vxpose.xlu0.c.b16.cont [5/8] 0, 128
        %2145 = vxpose.xlu0.c.b16.cont [6/8] 0, 128
        %2146 = vxpose.xlu0.c.b16.cont [7/8] 0, 128
        %2147 = vxpose.xlu0.c.b16.end [8/8] 0, 128
        %v2148 = vpop.trf.xlu0
        %v2149 = vpop.trf.xlu0
        %v2150 = vpop.trf.xlu0
        %v2151 = vpop.trf.xlu0
        %v2152 = vpop.trf.xlu0
        %v2153 = vpop.trf.xlu0
        %v2154 = vpop.trf.xlu0
        %v2155 = vpop.trf.xlu0
        %2156 = vxpose.xlu0.c.b16.start [1/8] %v2090, 128
        %2157 = vxpose.xlu0.c.b16.cont [2/8] 0, 128
        %2158 = vxpose.xlu0.c.b16.cont [3/8] 0, 128
        %2159 = vxpose.xlu0.c.b16.cont [4/8] 0, 128
        %2160 = vxpose.xlu0.c.b16.cont [5/8] 0, 128
        %2161 = vxpose.xlu0.c.b16.cont [6/8] 0, 128
        %2162 = vxpose.xlu0.c.b16.cont [7/8] 0, 128
        %2163 = vxpose.xlu0.c.b16.end [8/8] 0, 128
        %v2164 = vpop.trf.xlu0
        %v2165 = vpop.trf.xlu0
        %v2166 = vpop.trf.xlu0
        %v2167 = vpop.trf.xlu0
        %v2168 = vpop.trf.xlu0
        %v2169 = vpop.trf.xlu0
        %v2170 = vpop.trf.xlu0
        %v2171 = vpop.trf.xlu0
        %2172 = vxpose.xlu0.c.b16.start [1/8] %v2094, 128
        %2173 = vxpose.xlu0.c.b16.cont [2/8] 0, 128
        %2174 = vxpose.xlu0.c.b16.cont [3/8] 0, 128
        %2175 = vxpose.xlu0.c.b16.cont [4/8] 0, 128
        %2176 = vxpose.xlu0.c.b16.cont [5/8] 0, 128
        %2177 = vxpose.xlu0.c.b16.cont [6/8] 0, 128
        %2178 = vxpose.xlu0.c.b16.cont [7/8] 0, 128
        %2179 = vxpose.xlu0.c.b16.end [8/8] 0, 128
        %v2180 = vpop.trf.xlu0
        %v2181 = vpop.trf.xlu0
        %v2182 = vpop.trf.xlu0
        %v2183 = vpop.trf.xlu0
        %v2184 = vpop.trf.xlu0
        %v2185 = vpop.trf.xlu0
        %v2186 = vpop.trf.xlu0
        %v2187 = vpop.trf.xlu0
        %2188 = vxpose.xlu0.c.b16.start [1/8] %v2098, 128
        %2189 = vxpose.xlu0.c.b16.cont [2/8] 0, 128
        %2190 = vxpose.xlu0.c.b16.cont [3/8] 0, 128
        %2191 = vxpose.xlu0.c.b16.cont [4/8] 0, 128
        %2192 = vxpose.xlu0.c.b16.cont [5/8] 0, 128
        %2193 = vxpose.xlu0.c.b16.cont [6/8] 0, 128
        %2194 = vxpose.xlu0.c.b16.cont [7/8] 0, 128
        %2195 = vxpose.xlu0.c.b16.end [8/8] 0, 128
        %v2196 = vpop.trf.xlu0
        %v2197 = vpop.trf.xlu0
        %v2198 = vpop.trf.xlu0
        %v2199 = vpop.trf.xlu0
        %v2200 = vpop.trf.xlu0
        %v2201 = vpop.trf.xlu0
        %v2202 = vpop.trf.xlu0
        %v2203 = vpop.trf.xlu0
        %2204 = vxpose.xlu0.c.b16.start [1/8] %v2102, 128
        %2205 = vxpose.xlu0.c.b16.cont [2/8] 0, 128
        %2206 = vxpose.xlu0.c.b16.cont [3/8] 0, 128
        %2207 = vxpose.xlu0.c.b16.cont [4/8] 0, 128
        %2208 = vxpose.xlu0.c.b16.cont [5/8] 0, 128
        %2209 = vxpose.xlu0.c.b16.cont [6/8] 0, 128
        %2210 = vxpose.xlu0.c.b16.cont [7/8] 0, 128
        %2211 = vxpose.xlu0.c.b16.end [8/8] 0, 128
        %v2212 = vpop.trf.xlu0
        %v2213 = vpop.trf.xlu0
        %v2214 = vpop.trf.xlu0
        %v2215 = vpop.trf.xlu0
        %v2216 = vpop.trf.xlu0
        %v2217 = vpop.trf.xlu0
        %v2218 = vpop.trf.xlu0
        %v2219 = vpop.trf.xlu0
        %2220 = vxpose.xlu0.c.b16.start [1/8] %v2106, 128
        %2221 = vxpose.xlu0.c.b16.cont [2/8] 0, 128
        %2222 = vxpose.xlu0.c.b16.cont [3/8] 0, 128
        %2223 = vxpose.xlu0.c.b16.cont [4/8] 0, 128
        %2224 = vxpose.xlu0.c.b16.cont [5/8] 0, 128
        %2225 = vxpose.xlu0.c.b16.cont [6/8] 0, 128
        %2226 = vxpose.xlu0.c.b16.cont [7/8] 0, 128
        %2227 = vxpose.xlu0.c.b16.end [8/8] 0, 128
        %v2228 = vpop.trf.xlu0
        %v2229 = vpop.trf.xlu0
        %v2230 = vpop.trf.xlu0
        %v2231 = vpop.trf.xlu0
        %v2232 = vpop.trf.xlu0
        %v2233 = vpop.trf.xlu0
        %v2234 = vpop.trf.xlu0
        %v2235 = vpop.trf.xlu0
        %v2236 = vcombine.low %v2116, %v2180
        %v2238 = vunpack.c.l.s4 1983009808
        %v2239 = vunpack.c.0.s8 %v2238
        %v2240 = vlaneseq
        %v2241 = vshrl.u32 %v2240, 7
        %v2242 = vsub.s32 %v2239, %v2241
        %v2243 = vrot.slane %v2236, %v2242
        %v2244 = vcombine.low %v2148, %v2212
        %v2246 = vunpack.c.l.s4 1983009808
        %v2247 = vunpack.c.0.s8 %v2246
        %v2248 = vlaneseq
        %v2249 = vshrl.u32 %v2248, 7
        %v2250 = vsub.s32 %v2247, %v2249
        %v2251 = vrot.slane %v2244, %v2250
        %v2252 = vcombine.low %v2243, %v2251
        %v2254 = vunpack.c.l.s4 1934713408
        %v2255 = vunpack.c.0.s8 %v2254
        %v2256 = vlaneseq
        %v2257 = vshrl.u32 %v2256, 7
        %v2258 = vsub.s32 %v2255, %v2257
        %v2259 = vrot.slane %v2252, %v2258
        %v2260 = vcombine.high %v2259, 0
        %v2261 = vcombine.low %v2132, %v2196
        %v2263 = vunpack.c.l.s4 1983009808
        %v2264 = vunpack.c.0.s8 %v2263
        %v2265 = vlaneseq
        %v2266 = vshrl.u32 %v2265, 7
        %v2267 = vsub.s32 %v2264, %v2266
        %v2268 = vrot.slane %v2261, %v2267
        %v2269 = vcombine.low %v2164, %v2228
        %v2271 = vunpack.c.l.s4 1983009808
        %v2272 = vunpack.c.0.s8 %v2271
        %v2273 = vlaneseq
        %v2274 = vshrl.u32 %v2273, 7
        %v2275 = vsub.s32 %v2272, %v2274
        %v2276 = vrot.slane %v2269, %v2275
        %v2277 = vcombine.low %v2268, %v2276
        %v2279 = vunpack.c.l.s4 1934713408
        %v2280 = vunpack.c.0.s8 %v2279
        %v2281 = vlaneseq
        %v2282 = vshrl.u32 %v2281, 7
        %v2283 = vsub.s32 %v2280, %v2282
        %v2284 = vrot.slane %v2277, %v2283
        %v2285 = vcombine.high %v2284, 0
        %v2288 = vpack.i.b16 %v2284, %v2259
        %v2289 = vshrl.u32 %v2259, 16
        %v2290 = vshrl.u32 %v2284, 16
        %v2291 = vpack.i.b16 %v2290, %v2289
        %v2294 = vpack.i.b16 %v2285, %v2260
        %v2295 = vshrl.u32 %v2260, 16
        %v2296 = vshrl.u32 %v2285, 16
        %v2297 = vpack.i.b16 %v2296, %v2295
        %vm2298 = vcmask 64512
        %v2300 = vsel %vm2298, %v1870, 0
        %vm2302 = vcmask 1043456
        %v2304 = vsel %vm2302, %v2288, 0
        %2306 = vmatprep.subr.bf16.mxu0 0
        %2307 = vmatpush1.bf16.msra.mxu0 %v2304
        %2308 = vmatprep.subr.bf16.mxu0 0
        %2309 = vmatpush1.bf16.msra.mxu0 0
        %2310 = vmatprep.subr.bf16.mxu0 0
        %2311 = vmatpush1.bf16.msra.mxu0 0
        %2312 = vmatprep.subr.bf16.mxu0 0
        %2313 = vmatpush1.bf16.msra.mxu0 0
        %2314 = vmatprep.subr.bf16.mxu0 0
        %2315 = vmatpush1.bf16.msra.mxu0 0
        %2316 = vmatprep.subr.bf16.mxu0 0
        %2317 = vmatpush1.bf16.msra.mxu0 0
        %2318 = vmatprep.subr.bf16.mxu0 0
        %2319 = vmatpush1.bf16.msra.mxu0 0
        %2320 = vmatprep.subr.bf16.mxu0 0
        %2321 = vmatpush1.bf16.msra.mxu0 0
        %2322 = vmatprep.subr.bf16.mxu0 0
        %2323 = vmatpush1.bf16.msra.mxu0 0
        %2324 = vmatprep.subr.bf16.mxu0 0
        %2325 = vmatpush1.bf16.msra.mxu0 0
        %2326 = vmatprep.subr.bf16.mxu0 0
        %2327 = vmatpush1.bf16.msra.mxu0 0
        %2328 = vmatprep.subr.bf16.mxu0 0
        %2329 = vmatpush1.bf16.msra.mxu0 0
        %2330 = vmatprep.subr.bf16.mxu0 0
        %2331 = vmatpush1.bf16.msra.mxu0 0
        %2332 = vmatprep.subr.bf16.mxu0 0
        %2333 = vmatpush1.bf16.msra.mxu0 0
        %2334 = vmatprep.subr.bf16.mxu0 0
        %2335 = vmatpush1.bf16.msra.mxu0 0
        %2336 = vmatprep.subr.bf16.mxu0 0
        %2337 = vmatpush1.bf16.msra.mxu0 0
        %2338 = vmatprep.mubr.bf16.mxu0 0
        %2339 = vmatmul.mubr.bf16.gmra.mrb[0].mxu0 %v2300
        %v2340 = vpop.f32.mrb[0].mxu0
        %v2341 = vadd.f32 %v1817, %v2340
        %v2342 = vpop.f32.mrb[0].mxu0
        %v2343 = vpop.f32.mrb[0].mxu0
        %v2344 = vpop.f32.mrb[0].mxu0
        %2345 = vdwg.mxu0
        %v2347 = vsel %vm2298, %v1873, 0
        %v2350 = vsel %vm2302, %v2291, 0
        %2352 = vmatprep.subr.bf16.mxu0 0
        %2353 = vmatpush1.bf16.msra.mxu0 %v2350
        %2354 = vmatprep.subr.bf16.mxu0 0
        %2355 = vmatpush1.bf16.msra.mxu0 0
        %2356 = vmatprep.subr.bf16.mxu0 0
        %2357 = vmatpush1.bf16.msra.mxu0 0
        %2358 = vmatprep.subr.bf16.mxu0 0
        %2359 = vmatpush1.bf16.msra.mxu0 0
        %2360 = vmatprep.subr.bf16.mxu0 0
        %2361 = vmatpush1.bf16.msra.mxu0 0
        %2362 = vmatprep.subr.bf16.mxu0 0
        %2363 = vmatpush1.bf16.msra.mxu0 0
        %2364 = vmatprep.subr.bf16.mxu0 0
        %2365 = vmatpush1.bf16.msra.mxu0 0
        %2366 = vmatprep.subr.bf16.mxu0 0
        %2367 = vmatpush1.bf16.msra.mxu0 0
        %2368 = vmatprep.subr.bf16.mxu0 0
        %2369 = vmatpush1.bf16.msra.mxu0 0
        %2370 = vmatprep.subr.bf16.mxu0 0
        %2371 = vmatpush1.bf16.msra.mxu0 0
        %2372 = vmatprep.subr.bf16.mxu0 0
        %2373 = vmatpush1.bf16.msra.mxu0 0
        %2374 = vmatprep.subr.bf16.mxu0 0
        %2375 = vmatpush1.bf16.msra.mxu0 0
        %2376 = vmatprep.subr.bf16.mxu0 0
        %2377 = vmatpush1.bf16.msra.mxu0 0
        %2378 = vmatprep.subr.bf16.mxu0 0
        %2379 = vmatpush1.bf16.msra.mxu0 0
        %2380 = vmatprep.subr.bf16.mxu0 0
        %2381 = vmatpush1.bf16.msra.mxu0 0
        %2382 = vmatprep.subr.bf16.mxu0 0
        %2383 = vmatpush1.bf16.msra.mxu0 0
        %2384 = vmatprep.mubr.bf16.mxu0 0
        %2385 = vmatmul.mubr.bf16.gmra.mrb[0].mxu0 %v2347
        %v2386 = vpop.f32.mrb[0].mxu0
        %v2387 = vadd.f32 %v1817, %v2386
        %v2388 = vpop.f32.mrb[0].mxu0
        %v2389 = vpop.f32.mrb[0].mxu0
        %v2390 = vpop.f32.mrb[0].mxu0
        %2391 = vdwg.mxu0
        %v2393 = vsel %vm2298, %v1876, 0
        %v2396 = vsel %vm2302, %v2294, 0
        %2398 = vmatprep.subr.bf16.mxu0 0
        %2399 = vmatpush1.bf16.msra.mxu0 %v2396
        %2400 = vmatprep.subr.bf16.mxu0 0
        %2401 = vmatpush1.bf16.msra.mxu0 0
        %2402 = vmatprep.subr.bf16.mxu0 0
        %2403 = vmatpush1.bf16.msra.mxu0 0
        %2404 = vmatprep.subr.bf16.mxu0 0
        %2405 = vmatpush1.bf16.msra.mxu0 0
        %2406 = vmatprep.subr.bf16.mxu0 0
        %2407 = vmatpush1.bf16.msra.mxu0 0
        %2408 = vmatprep.subr.bf16.mxu0 0
        %2409 = vmatpush1.bf16.msra.mxu0 0
        %2410 = vmatprep.subr.bf16.mxu0 0
        %2411 = vmatpush1.bf16.msra.mxu0 0
        %2412 = vmatprep.subr.bf16.mxu0 0
        %2413 = vmatpush1.bf16.msra.mxu0 0
        %2414 = vmatprep.subr.bf16.mxu0 0
        %2415 = vmatpush1.bf16.msra.mxu0 0
        %2416 = vmatprep.subr.bf16.mxu0 0
        %2417 = vmatpush1.bf16.msra.mxu0 0
        %2418 = vmatprep.subr.bf16.mxu0 0
        %2419 = vmatpush1.bf16.msra.mxu0 0
        %2420 = vmatprep.subr.bf16.mxu0 0
        %2421 = vmatpush1.bf16.msra.mxu0 0
        %2422 = vmatprep.subr.bf16.mxu0 0
        %2423 = vmatpush1.bf16.msra.mxu0 0
        %2424 = vmatprep.subr.bf16.mxu0 0
        %2425 = vmatpush1.bf16.msra.mxu0 0
        %2426 = vmatprep.subr.bf16.mxu0 0
        %2427 = vmatpush1.bf16.msra.mxu0 0
        %2428 = vmatprep.subr.bf16.mxu0 0
        %2429 = vmatpush1.bf16.msra.mxu0 0
        %2430 = vmatprep.mubr.bf16.mxu0 0
        %2431 = vmatmul.mubr.bf16.gmra.mrb[0].mxu0 %v2393
        %v2432 = vpop.f32.mrb[0].mxu0
        %v2433 = vadd.f32 %v1817, %v2432
        %v2434 = vpop.f32.mrb[0].mxu0
        %v2435 = vpop.f32.mrb[0].mxu0
        %v2436 = vpop.f32.mrb[0].mxu0
        %2437 = vdwg.mxu0
        %v2439 = vsel %vm2298, %v1879, 0
        %v2442 = vsel %vm2302, %v2297, 0
        %2444 = vmatprep.subr.bf16.mxu0 0
        %2445 = vmatpush1.bf16.msra.mxu0 %v2442
        %2446 = vmatprep.subr.bf16.mxu0 0
        %2447 = vmatpush1.bf16.msra.mxu0 0
        %2448 = vmatprep.subr.bf16.mxu0 0
        %2449 = vmatpush1.bf16.msra.mxu0 0
        %2450 = vmatprep.subr.bf16.mxu0 0
        %2451 = vmatpush1.bf16.msra.mxu0 0
        %2452 = vmatprep.subr.bf16.mxu0 0
        %2453 = vmatpush1.bf16.msra.mxu0 0
        %2454 = vmatprep.subr.bf16.mxu0 0
        %2455 = vmatpush1.bf16.msra.mxu0 0
        %2456 = vmatprep.subr.bf16.mxu0 0
        %2457 = vmatpush1.bf16.msra.mxu0 0
        %2458 = vmatprep.subr.bf16.mxu0 0
        %2459 = vmatpush1.bf16.msra.mxu0 0
        %2460 = vmatprep.subr.bf16.mxu0 0
        %2461 = vmatpush1.bf16.msra.mxu0 0
        %2462 = vmatprep.subr.bf16.mxu0 0
        %2463 = vmatpush1.bf16.msra.mxu0 0
        %2464 = vmatprep.subr.bf16.mxu0 0
        %2465 = vmatpush1.bf16.msra.mxu0 0
        %2466 = vmatprep.subr.bf16.mxu0 0
        %2467 = vmatpush1.bf16.msra.mxu0 0
        %2468 = vmatprep.subr.bf16.mxu0 0
        %2469 = vmatpush1.bf16.msra.mxu0 0
        %2470 = vmatprep.subr.bf16.mxu0 0
        %2471 = vmatpush1.bf16.msra.mxu0 0
        %2472 = vmatprep.subr.bf16.mxu0 0
        %2473 = vmatpush1.bf16.msra.mxu0 0
        %2474 = vmatprep.subr.bf16.mxu0 0
        %2475 = vmatpush1.bf16.msra.mxu0 0
        %2476 = vmatprep.mubr.bf16.mxu0 0
        %2477 = vmatmul.mubr.bf16.gmra.mrb[0].mxu0 %v2439
        %v2478 = vpop.f32.mrb[0].mxu0
        %v2479 = vadd.f32 %v1817, %v2478
        %v2480 = vpop.f32.mrb[0].mxu0
        %v2481 = vpop.f32.mrb[0].mxu0
        %v2482 = vpop.f32.mrb[0].mxu0
        %2483 = vdwg.mxu0
        %v2484 = vsel %vm2298, %v2341, -inf
        %2485 = vmax.xlane.f32.xlu0 %v2484
        %v2486 = vpop.xlane.xlu0 %2485
        %v2487 = vsel %vm2298, %v2387, -inf
        %2488 = vmax.xlane.f32.xlu0 %v2487
        %v2489 = vpop.xlane.xlu0 %2488
        %v2490 = vsel %vm2298, %v2433, -inf
        %2491 = vmax.xlane.f32.xlu0 %v2490
        %v2492 = vpop.xlane.xlu0 %2491
        %v2493 = vsel %vm2298, %v2479, -inf
        %2494 = vmax.xlane.f32.xlu0 %v2493
        %v2495 = vpop.xlane.xlu0 %2494
        %v2496 = vsub.f32 %v2341, %v2486
        %v2497 = vsub.f32 %v2387, %v2489
        %v2498 = vsub.f32 %v2433, %v2492
        %v2499 = vsub.f32 %v2479, %v2495
        %v2500 = vmul.f32 %v2496, 1.442695
        %v2501 = vpow.pop %v2500
        %v2502 = vmul.f32 %v2497, 1.442695
        %v2503 = vpow.pop %v2502
        %v2504 = vmul.f32 %v2498, 1.442695
        %v2505 = vpow.pop %v2504
        %v2506 = vmul.f32 %v2499, 1.442695
        %v2507 = vpow.pop %v2506
        %v2508 = vsel %vm2298, %v2501, 0.0
        %2509 = vadd.xlane.f32.xlu0 %v2508
        %v2510 = vpop.xlane.xlu0 %2509
        %v2511 = vsel %vm2298, %v2503, 0.0
        %2512 = vadd.xlane.f32.xlu0 %v2511
        %v2513 = vpop.xlane.xlu0 %2512
        %v2514 = vsel %vm2298, %v2505, 0.0
        %2515 = vadd.xlane.f32.xlu0 %v2514
        %v2516 = vpop.xlane.xlu0 %2515
        %v2517 = vsel %vm2298, %v2507, 0.0
        %2518 = vadd.xlane.f32.xlu0 %v2517
        %v2519 = vpop.xlane.xlu0 %2518
        %v2520 = vrcp.pop %v2510
        %v2521 = vrcp.pop %v2513
        %v2522 = vrcp.pop %v2516
        %v2523 = vrcp.pop %v2519
        %v2524 = vmul.f32 %v2501, %v2520
        %v2525 = vmul.f32 %v2503, %v2521
        %v2526 = vmul.f32 %v2505, %v2522
        %v2527 = vmul.f32 %v2507, %v2523
        %v2528 = vpack.c.bf16 %v2524, %v2524
        %v2529 = vpack.c.bf16 %v2525, %v2525
        %v2530 = vpack.c.bf16 %v2526, %v2526
        %v2531 = vpack.c.bf16 %v2527, %v2527
        %vm2532 = vcmask 60416
        %2533 = vst.msk [vmem:[%s750] sm:$0xf] %vm2532, %v2528
        %2534 = vst.msk [vmem:[%s750 + $0x4] sm:$0xf] %vm2532, %v2529
        %2535 = vst.msk [vmem:[%s750 + $0x8] sm:$0xf] %vm2532, %v2530
        %2536 = vst.msk [vmem:[%s750 + $0xc] sm:$0xf] %vm2532, %v2531
        %2537 = vxpose.xlu0.c.b16.start [1/8] %v1188, 128
        %2538 = vxpose.xlu0.c.b16.cont [2/8] 0, 128
        %2539 = vxpose.xlu0.c.b16.cont [3/8] 0, 128
        %2540 = vxpose.xlu0.c.b16.cont [4/8] 0, 128
        %2541 = vxpose.xlu0.c.b16.cont [5/8] 0, 128
        %2542 = vxpose.xlu0.c.b16.cont [6/8] 0, 128
        %2543 = vxpose.xlu0.c.b16.cont [7/8] 0, 128
        %2544 = vxpose.xlu0.c.b16.end [8/8] 0, 128
        %v2545 = vpop.trf.xlu0
        %v2546 = vpop.trf.xlu0
        %v2547 = vpop.trf.xlu0
        %v2548 = vpop.trf.xlu0
        %v2549 = vpop.trf.xlu0
        %v2550 = vpop.trf.xlu0
        %v2551 = vpop.trf.xlu0
        %v2552 = vpop.trf.xlu0
        %2553 = vxpose.xlu0.c.b16.start [1/8] %v1189, 128
        %2554 = vxpose.xlu0.c.b16.cont [2/8] 0, 128
        %2555 = vxpose.xlu0.c.b16.cont [3/8] 0, 128
        %2556 = vxpose.xlu0.c.b16.cont [4/8] 0, 128
        %2557 = vxpose.xlu0.c.b16.cont [5/8] 0, 128
        %2558 = vxpose.xlu0.c.b16.cont [6/8] 0, 128
        %2559 = vxpose.xlu0.c.b16.cont [7/8] 0, 128
        %2560 = vxpose.xlu0.c.b16.end [8/8] 0, 128
        %v2561 = vpop.trf.xlu0
        %v2562 = vpop.trf.xlu0
        %v2563 = vpop.trf.xlu0
        %v2564 = vpop.trf.xlu0
        %v2565 = vpop.trf.xlu0
        %v2566 = vpop.trf.xlu0
        %v2567 = vpop.trf.xlu0
        %v2568 = vpop.trf.xlu0
        %2569 = vxpose.xlu0.c.b16.start [1/8] %v1190, 128
        %2570 = vxpose.xlu0.c.b16.cont [2/8] 0, 128
        %2571 = vxpose.xlu0.c.b16.cont [3/8] 0, 128
        %2572 = vxpose.xlu0.c.b16.cont [4/8] 0, 128
        %2573 = vxpose.xlu0.c.b16.cont [5/8] 0, 128
        %2574 = vxpose.xlu0.c.b16.cont [6/8] 0, 128
        %2575 = vxpose.xlu0.c.b16.cont [7/8] 0, 128
        %2576 = vxpose.xlu0.c.b16.end [8/8] 0, 128
        %v2577 = vpop.trf.xlu0
        %v2578 = vpop.trf.xlu0
        %v2579 = vpop.trf.xlu0
        %v2580 = vpop.trf.xlu0
        %v2581 = vpop.trf.xlu0
        %v2582 = vpop.trf.xlu0
        %v2583 = vpop.trf.xlu0
        %v2584 = vpop.trf.xlu0
        %2585 = vxpose.xlu0.c.b16.start [1/8] %v1191, 128
        %2586 = vxpose.xlu0.c.b16.cont [2/8] 0, 128
        %2587 = vxpose.xlu0.c.b16.cont [3/8] 0, 128
        %2588 = vxpose.xlu0.c.b16.cont [4/8] 0, 128
        %2589 = vxpose.xlu0.c.b16.cont [5/8] 0, 128
        %2590 = vxpose.xlu0.c.b16.cont [6/8] 0, 128
        %2591 = vxpose.xlu0.c.b16.cont [7/8] 0, 128
        %2592 = vxpose.xlu0.c.b16.end [8/8] 0, 128
        %v2593 = vpop.trf.xlu0
        %v2594 = vpop.trf.xlu0
        %v2595 = vpop.trf.xlu0
        %v2596 = vpop.trf.xlu0
        %v2597 = vpop.trf.xlu0
        %v2598 = vpop.trf.xlu0
        %v2599 = vpop.trf.xlu0
        %v2600 = vpop.trf.xlu0
        %2601 = vxpose.xlu0.c.b16.start [1/8] %v1192, 128
        %2602 = vxpose.xlu0.c.b16.cont [2/8] 0, 128
        %2603 = vxpose.xlu0.c.b16.cont [3/8] 0, 128
        %2604 = vxpose.xlu0.c.b16.cont [4/8] 0, 128
        %2605 = vxpose.xlu0.c.b16.cont [5/8] 0, 128
        %2606 = vxpose.xlu0.c.b16.cont [6/8] 0, 128
        %2607 = vxpose.xlu0.c.b16.cont [7/8] 0, 128
        %2608 = vxpose.xlu0.c.b16.end [8/8] 0, 128
        %v2609 = vpop.trf.xlu0
        %v2610 = vpop.trf.xlu0
        %v2611 = vpop.trf.xlu0
        %v2612 = vpop.trf.xlu0
        %v2613 = vpop.trf.xlu0
        %v2614 = vpop.trf.xlu0
        %v2615 = vpop.trf.xlu0
        %v2616 = vpop.trf.xlu0
        %2617 = vxpose.xlu0.c.b16.start [1/8] %v1193, 128
        %2618 = vxpose.xlu0.c.b16.cont [2/8] 0, 128
        %2619 = vxpose.xlu0.c.b16.cont [3/8] 0, 128
        %2620 = vxpose.xlu0.c.b16.cont [4/8] 0, 128
        %2621 = vxpose.xlu0.c.b16.cont [5/8] 0, 128
        %2622 = vxpose.xlu0.c.b16.cont [6/8] 0, 128
        %2623 = vxpose.xlu0.c.b16.cont [7/8] 0, 128
        %2624 = vxpose.xlu0.c.b16.end [8/8] 0, 128
        %v2625 = vpop.trf.xlu0
        %v2626 = vpop.trf.xlu0
        %v2627 = vpop.trf.xlu0
        %v2628 = vpop.trf.xlu0
        %v2629 = vpop.trf.xlu0
        %v2630 = vpop.trf.xlu0
        %v2631 = vpop.trf.xlu0
        %v2632 = vpop.trf.xlu0
        %2633 = vxpose.xlu0.c.b16.start [1/8] %v1194, 128
        %2634 = vxpose.xlu0.c.b16.cont [2/8] 0, 128
        %2635 = vxpose.xlu0.c.b16.cont [3/8] 0, 128
        %2636 = vxpose.xlu0.c.b16.cont [4/8] 0, 128
        %2637 = vxpose.xlu0.c.b16.cont [5/8] 0, 128
        %2638 = vxpose.xlu0.c.b16.cont [6/8] 0, 128
        %2639 = vxpose.xlu0.c.b16.cont [7/8] 0, 128
        %2640 = vxpose.xlu0.c.b16.end [8/8] 0, 128
        %v2641 = vpop.trf.xlu0
        %v2642 = vpop.trf.xlu0
        %v2643 = vpop.trf.xlu0
        %v2644 = vpop.trf.xlu0
        %v2645 = vpop.trf.xlu0
        %v2646 = vpop.trf.xlu0
        %v2647 = vpop.trf.xlu0
        %v2648 = vpop.trf.xlu0
        %2649 = vxpose.xlu0.c.b16.start [1/8] %v1195, 128
        %2650 = vxpose.xlu0.c.b16.cont [2/8] 0, 128
        %2651 = vxpose.xlu0.c.b16.cont [3/8] 0, 128
        %2652 = vxpose.xlu0.c.b16.cont [4/8] 0, 128
        %2653 = vxpose.xlu0.c.b16.cont [5/8] 0, 128
        %2654 = vxpose.xlu0.c.b16.cont [6/8] 0, 128
        %2655 = vxpose.xlu0.c.b16.cont [7/8] 0, 128
        %2656 = vxpose.xlu0.c.b16.end [8/8] 0, 128
        %v2657 = vpop.trf.xlu0
        %v2658 = vpop.trf.xlu0
        %v2659 = vpop.trf.xlu0
        %v2660 = vpop.trf.xlu0
        %v2661 = vpop.trf.xlu0
        %v2662 = vpop.trf.xlu0
        %v2663 = vpop.trf.xlu0
        %v2664 = vpop.trf.xlu0
        %v2665 = vcombine.low %v2545, %v2609
        %v2667 = vunpack.c.l.s4 1983009808
        %v2668 = vunpack.c.0.s8 %v2667
        %v2669 = vlaneseq
        %v2670 = vshrl.u32 %v2669, 7
        %v2671 = vsub.s32 %v2668, %v2670
        %v2672 = vrot.slane %v2665, %v2671
        %v2673 = vcombine.low %v2577, %v2641
        %v2675 = vunpack.c.l.s4 1983009808
        %v2676 = vunpack.c.0.s8 %v2675
        %v2677 = vlaneseq
        %v2678 = vshrl.u32 %v2677, 7
        %v2679 = vsub.s32 %v2676, %v2678
        %v2680 = vrot.slane %v2673, %v2679
        %v2681 = vcombine.low %v2672, %v2680
        %v2682 = vcombine.high %v2672, %v2680
        %v2684 = vunpack.c.l.s4 1934713408
        %v2685 = vunpack.c.0.s8 %v2684
        %v2686 = vlaneseq
        %v2687 = vshrl.u32 %v2686, 7
        %v2688 = vsub.s32 %v2685, %v2687
        %v2689 = vrot.slane %v2681, %v2688
        %v2691 = vunpack.c.l.s4 1934713408
        %v2692 = vunpack.c.0.s8 %v2691
        %v2693 = vlaneseq
        %v2694 = vshrl.u32 %v2693, 7
        %v2695 = vsub.s32 %v2692, %v2694
        %v2696 = vrot.slane %v2682, %v2695
        %v2697 = vcombine.high %v2689, 0
        %v2698 = vcombine.high %v2696, 0
        %v2699 = vcombine.low %v2561, %v2625
        %v2701 = vunpack.c.l.s4 1983009808
        %v2702 = vunpack.c.0.s8 %v2701
        %v2703 = vlaneseq
        %v2704 = vshrl.u32 %v2703, 7
        %v2705 = vsub.s32 %v2702, %v2704
        %v2706 = vrot.slane %v2699, %v2705
        %v2707 = vcombine.low %v2593, %v2657
        %v2709 = vunpack.c.l.s4 1983009808
        %v2710 = vunpack.c.0.s8 %v2709
        %v2711 = vlaneseq
        %v2712 = vshrl.u32 %v2711, 7
        %v2713 = vsub.s32 %v2710, %v2712
        %v2714 = vrot.slane %v2707, %v2713
        %v2715 = vcombine.low %v2706, %v2714
        %v2716 = vcombine.high %v2706, %v2714
        %v2718 = vunpack.c.l.s4 1934713408
        %v2719 = vunpack.c.0.s8 %v2718
        %v2720 = vlaneseq
        %v2721 = vshrl.u32 %v2720, 7
        %v2722 = vsub.s32 %v2719, %v2721
        %v2723 = vrot.slane %v2715, %v2722
        %v2725 = vunpack.c.l.s4 1934713408
        %v2726 = vunpack.c.0.s8 %v2725
        %v2727 = vlaneseq
        %v2728 = vshrl.u32 %v2727, 7
        %v2729 = vsub.s32 %v2726, %v2728
        %v2730 = vrot.slane %v2716, %v2729
        %v2731 = vcombine.high %v2723, 0
        %v2732 = vcombine.high %v2730, 0
        %v2735 = vpack.i.b16 %v2723, %v2689
        %v2737 = vshrl.u32 %v2689, 16
        %v2738 = vshrl.u32 %v2723, 16
        %v2739 = vpack.i.b16 %v2738, %v2737
        %v2743 = vpack.i.b16 %v2731, %v2697
        %v2745 = vshrl.u32 %v2697, 16
        %v2746 = vshrl.u32 %v2731, 16
        %v2747 = vpack.i.b16 %v2746, %v2745
        %v2751 = vpack.i.b16 %v2730, %v2696
        %v2753 = vshrl.u32 %v2696, 16
        %v2754 = vshrl.u32 %v2730, 16
        %v2755 = vpack.i.b16 %v2754, %v2753
        %v2759 = vpack.i.b16 %v2732, %v2698
        %v2761 = vshrl.u32 %v2698, 16
        %v2762 = vshrl.u32 %v2732, 16
        %v2763 = vpack.i.b16 %v2762, %v2761
        %2765 = vxpose.xlu0.c.b16.start [1/8] %v2735, 128
        %2766 = vxpose.xlu0.c.b16.cont [2/8] 0, 128
        %2767 = vxpose.xlu0.c.b16.cont [3/8] 0, 128
        %2768 = vxpose.xlu0.c.b16.cont [4/8] 0, 128
        %2769 = vxpose.xlu0.c.b16.cont [5/8] 0, 128
        %2770 = vxpose.xlu0.c.b16.cont [6/8] 0, 128
        %2771 = vxpose.xlu0.c.b16.cont [7/8] 0, 128
        %2772 = vxpose.xlu0.c.b16.end [8/8] 0, 128
        %v2773 = vpop.trf.xlu0
        %v2774 = vpop.trf.xlu0
        %v2775 = vpop.trf.xlu0
        %v2776 = vpop.trf.xlu0
        %v2777 = vpop.trf.xlu0
        %v2778 = vpop.trf.xlu0
        %v2779 = vpop.trf.xlu0
        %v2780 = vpop.trf.xlu0
        %2781 = vxpose.xlu0.c.b16.start [1/8] %v2739, 128
        %2782 = vxpose.xlu0.c.b16.cont [2/8] 0, 128
        %2783 = vxpose.xlu0.c.b16.cont [3/8] 0, 128
        %2784 = vxpose.xlu0.c.b16.cont [4/8] 0, 128
        %2785 = vxpose.xlu0.c.b16.cont [5/8] 0, 128
        %2786 = vxpose.xlu0.c.b16.cont [6/8] 0, 128
        %2787 = vxpose.xlu0.c.b16.cont [7/8] 0, 128
        %2788 = vxpose.xlu0.c.b16.end [8/8] 0, 128
        %v2789 = vpop.trf.xlu0
        %v2790 = vpop.trf.xlu0
        %v2791 = vpop.trf.xlu0
        %v2792 = vpop.trf.xlu0
        %v2793 = vpop.trf.xlu0
        %v2794 = vpop.trf.xlu0
        %v2795 = vpop.trf.xlu0
        %v2796 = vpop.trf.xlu0
        %2797 = vxpose.xlu0.c.b16.start [1/8] %v2743, 128
        %2798 = vxpose.xlu0.c.b16.cont [2/8] 0, 128
        %2799 = vxpose.xlu0.c.b16.cont [3/8] 0, 128
        %2800 = vxpose.xlu0.c.b16.cont [4/8] 0, 128
        %2801 = vxpose.xlu0.c.b16.cont [5/8] 0, 128
        %2802 = vxpose.xlu0.c.b16.cont [6/8] 0, 128
        %2803 = vxpose.xlu0.c.b16.cont [7/8] 0, 128
        %2804 = vxpose.xlu0.c.b16.end [8/8] 0, 128
        %v2805 = vpop.trf.xlu0
        %v2806 = vpop.trf.xlu0
        %v2807 = vpop.trf.xlu0
        %v2808 = vpop.trf.xlu0
        %v2809 = vpop.trf.xlu0
        %v2810 = vpop.trf.xlu0
        %v2811 = vpop.trf.xlu0
        %v2812 = vpop.trf.xlu0
        %2813 = vxpose.xlu0.c.b16.start [1/8] %v2747, 128
        %2814 = vxpose.xlu0.c.b16.cont [2/8] 0, 128
        %2815 = vxpose.xlu0.c.b16.cont [3/8] 0, 128
        %2816 = vxpose.xlu0.c.b16.cont [4/8] 0, 128
        %2817 = vxpose.xlu0.c.b16.cont [5/8] 0, 128
        %2818 = vxpose.xlu0.c.b16.cont [6/8] 0, 128
        %2819 = vxpose.xlu0.c.b16.cont [7/8] 0, 128
        %2820 = vxpose.xlu0.c.b16.end [8/8] 0, 128
        %v2821 = vpop.trf.xlu0
        %v2822 = vpop.trf.xlu0
        %v2823 = vpop.trf.xlu0
        %v2824 = vpop.trf.xlu0
        %v2825 = vpop.trf.xlu0
        %v2826 = vpop.trf.xlu0
        %v2827 = vpop.trf.xlu0
        %v2828 = vpop.trf.xlu0
        %2829 = vxpose.xlu0.c.b16.start [1/8] %v2751, 128
        %2830 = vxpose.xlu0.c.b16.cont [2/8] 0, 128
        %2831 = vxpose.xlu0.c.b16.cont [3/8] 0, 128
        %2832 = vxpose.xlu0.c.b16.cont [4/8] 0, 128
        %2833 = vxpose.xlu0.c.b16.cont [5/8] 0, 128
        %2834 = vxpose.xlu0.c.b16.cont [6/8] 0, 128
        %2835 = vxpose.xlu0.c.b16.cont [7/8] 0, 128
        %2836 = vxpose.xlu0.c.b16.end [8/8] 0, 128
        %v2837 = vpop.trf.xlu0
        %v2838 = vpop.trf.xlu0
        %v2839 = vpop.trf.xlu0
        %v2840 = vpop.trf.xlu0
        %v2841 = vpop.trf.xlu0
        %v2842 = vpop.trf.xlu0
        %v2843 = vpop.trf.xlu0
        %v2844 = vpop.trf.xlu0
        %2845 = vxpose.xlu0.c.b16.start [1/8] %v2755, 128
        %2846 = vxpose.xlu0.c.b16.cont [2/8] 0, 128
        %2847 = vxpose.xlu0.c.b16.cont [3/8] 0, 128
        %2848 = vxpose.xlu0.c.b16.cont [4/8] 0, 128
        %2849 = vxpose.xlu0.c.b16.cont [5/8] 0, 128
        %2850 = vxpose.xlu0.c.b16.cont [6/8] 0, 128
        %2851 = vxpose.xlu0.c.b16.cont [7/8] 0, 128
        %2852 = vxpose.xlu0.c.b16.end [8/8] 0, 128
        %v2853 = vpop.trf.xlu0
        %v2854 = vpop.trf.xlu0
        %v2855 = vpop.trf.xlu0
        %v2856 = vpop.trf.xlu0
        %v2857 = vpop.trf.xlu0
        %v2858 = vpop.trf.xlu0
        %v2859 = vpop.trf.xlu0
        %v2860 = vpop.trf.xlu0
        %2861 = vxpose.xlu0.c.b16.start [1/8] %v2759, 128
        %2862 = vxpose.xlu0.c.b16.cont [2/8] 0, 128
        %2863 = vxpose.xlu0.c.b16.cont [3/8] 0, 128
        %2864 = vxpose.xlu0.c.b16.cont [4/8] 0, 128
        %2865 = vxpose.xlu0.c.b16.cont [5/8] 0, 128
        %2866 = vxpose.xlu0.c.b16.cont [6/8] 0, 128
        %2867 = vxpose.xlu0.c.b16.cont [7/8] 0, 128
        %2868 = vxpose.xlu0.c.b16.end [8/8] 0, 128
        %v2869 = vpop.trf.xlu0
        %v2870 = vpop.trf.xlu0
        %v2871 = vpop.trf.xlu0
        %v2872 = vpop.trf.xlu0
        %v2873 = vpop.trf.xlu0
        %v2874 = vpop.trf.xlu0
        %v2875 = vpop.trf.xlu0
        %v2876 = vpop.trf.xlu0
        %2877 = vxpose.xlu0.c.b16.start [1/8] %v2763, 128
        %2878 = vxpose.xlu0.c.b16.cont [2/8] 0, 128
        %2879 = vxpose.xlu0.c.b16.cont [3/8] 0, 128
        %2880 = vxpose.xlu0.c.b16.cont [4/8] 0, 128
        %2881 = vxpose.xlu0.c.b16.cont [5/8] 0, 128
        %2882 = vxpose.xlu0.c.b16.cont [6/8] 0, 128
        %2883 = vxpose.xlu0.c.b16.cont [7/8] 0, 128
        %2884 = vxpose.xlu0.c.b16.end [8/8] 0, 128
        %v2885 = vpop.trf.xlu0
        %v2886 = vpop.trf.xlu0
        %v2887 = vpop.trf.xlu0
        %v2888 = vpop.trf.xlu0
        %v2889 = vpop.trf.xlu0
        %v2890 = vpop.trf.xlu0
        %v2891 = vpop.trf.xlu0
        %v2892 = vpop.trf.xlu0
        %v2893 = vcombine.low %v2773, %v2837
        %v2895 = vunpack.c.l.s4 1983009808
        %v2896 = vunpack.c.0.s8 %v2895
        %v2897 = vlaneseq
        %v2898 = vshrl.u32 %v2897, 7
        %v2899 = vsub.s32 %v2896, %v2898
        %v2900 = vrot.slane %v2893, %v2899
        %v2901 = vcombine.low %v2805, %v2869
        %v2903 = vunpack.c.l.s4 1983009808
        %v2904 = vunpack.c.0.s8 %v2903
        %v2905 = vlaneseq
        %v2906 = vshrl.u32 %v2905, 7
        %v2907 = vsub.s32 %v2904, %v2906
        %v2908 = vrot.slane %v2901, %v2907
        %v2909 = vcombine.low %v2900, %v2908
        %v2911 = vunpack.c.l.s4 1934713408
        %v2912 = vunpack.c.0.s8 %v2911
        %v2913 = vlaneseq
        %v2914 = vshrl.u32 %v2913, 7
        %v2915 = vsub.s32 %v2912, %v2914
        %v2916 = vrot.slane %v2909, %v2915
        %v2917 = vcombine.high %v2916, 0
        %v2918 = vcombine.low %v2789, %v2853
        %v2920 = vunpack.c.l.s4 1983009808
        %v2921 = vunpack.c.0.s8 %v2920
        %v2922 = vlaneseq
        %v2923 = vshrl.u32 %v2922, 7
        %v2924 = vsub.s32 %v2921, %v2923
        %v2925 = vrot.slane %v2918, %v2924
        %v2926 = vcombine.low %v2821, %v2885
        %v2928 = vunpack.c.l.s4 1983009808
        %v2929 = vunpack.c.0.s8 %v2928
        %v2930 = vlaneseq
        %v2931 = vshrl.u32 %v2930, 7
        %v2932 = vsub.s32 %v2929, %v2931
        %v2933 = vrot.slane %v2926, %v2932
        %v2934 = vcombine.low %v2925, %v2933
        %v2936 = vunpack.c.l.s4 1934713408
        %v2937 = vunpack.c.0.s8 %v2936
        %v2938 = vlaneseq
        %v2939 = vshrl.u32 %v2938, 7
        %v2940 = vsub.s32 %v2937, %v2939
        %v2941 = vrot.slane %v2934, %v2940
        %v2942 = vcombine.high %v2941, 0
        %v2945 = vpack.i.b16 %v2941, %v2916
        %v2946 = vshrl.u32 %v2916, 16
        %v2947 = vshrl.u32 %v2941, 16
        %v2948 = vpack.i.b16 %v2947, %v2946
        %v2951 = vpack.i.b16 %v2942, %v2917
        %v2952 = vshrl.u32 %v2917, 16
        %v2953 = vshrl.u32 %v2942, 16
        %v2954 = vpack.i.b16 %v2953, %v2952
        %v2956 = vsel %vm2298, %v2945, 0
        %v2959 = vsel %vm2298, %v2528, 0
        %2961 = vmatprep.subr.bf16.mxu0 0
        %2962 = vmatpush1.bf16.xpose.msra.mxu0 %v2959
        %2963 = vmatprep.subr.bf16.mxu0 0
        %2964 = vmatpush1.bf16.xpose.msra.mxu0 0
        %2965 = vmatprep.subr.bf16.mxu0 0
        %2966 = vmatpush1.bf16.xpose.msra.mxu0 0
        %2967 = vmatprep.subr.bf16.mxu0 0
        %2968 = vmatpush1.bf16.xpose.msra.mxu0 0
        %2969 = vmatprep.subr.bf16.mxu0 0
        %2970 = vmatpush1.bf16.xpose.msra.mxu0 0
        %2971 = vmatprep.subr.bf16.mxu0 0
        %2972 = vmatpush1.bf16.xpose.msra.mxu0 0
        %2973 = vmatprep.subr.bf16.mxu0 0
        %2974 = vmatpush1.bf16.xpose.msra.mxu0 0
        %2975 = vmatprep.subr.bf16.mxu0 0
        %2976 = vmatpush1.bf16.xpose.msra.mxu0 0
        %2977 = vmatprep.subr.bf16.mxu0 0
        %2978 = vmatpush1.bf16.xpose.msra.mxu0 0
        %2979 = vmatprep.subr.bf16.mxu0 0
        %2980 = vmatpush1.bf16.xpose.msra.mxu0 0
        %2981 = vmatprep.subr.bf16.mxu0 0
        %2982 = vmatpush1.bf16.xpose.msra.mxu0 0
        %2983 = vmatprep.subr.bf16.mxu0 0
        %2984 = vmatpush1.bf16.xpose.msra.mxu0 0
        %2985 = vmatprep.subr.bf16.mxu0 0
        %2986 = vmatpush1.bf16.xpose.msra.mxu0 0
        %2987 = vmatprep.subr.bf16.mxu0 0
        %2988 = vmatpush1.bf16.xpose.msra.mxu0 0
        %2989 = vmatprep.subr.bf16.mxu0 0
        %2990 = vmatpush1.bf16.xpose.msra.mxu0 0
        %2991 = vmatprep.subr.bf16.mxu0 0
        %2992 = vmatpush1.bf16.xpose.msra.mxu0 0
        %2993 = vmatprep.mubr.bf16.mxu0 0
        %2994 = vmatmul.mubr.bf16.gmra.mrb[0].mxu0 %v2956
        %v2995 = vpop.f32.mrb[0].mxu0
        %v2996 = vadd.f32 0.0, %v2995
        %v2997 = vpop.f32.mrb[0].mxu0
        %v2998 = vpop.f32.mrb[0].mxu0
        %v2999 = vpop.f32.mrb[0].mxu0
        %3000 = vdwg.mxu0
        %v3002 = vsel %vm2298, %v2948, 0
        %v3005 = vsel %vm2298, %v2529, 0
        %3007 = vmatprep.subr.bf16.mxu0 0
        %3008 = vmatpush1.bf16.xpose.msra.mxu0 %v3005
        %3009 = vmatprep.subr.bf16.mxu0 0
        %3010 = vmatpush1.bf16.xpose.msra.mxu0 0
        %3011 = vmatprep.subr.bf16.mxu0 0
        %3012 = vmatpush1.bf16.xpose.msra.mxu0 0
        %3013 = vmatprep.subr.bf16.mxu0 0
        %3014 = vmatpush1.bf16.xpose.msra.mxu0 0
        %3015 = vmatprep.subr.bf16.mxu0 0
        %3016 = vmatpush1.bf16.xpose.msra.mxu0 0
        %3017 = vmatprep.subr.bf16.mxu0 0
        %3018 = vmatpush1.bf16.xpose.msra.mxu0 0
        %3019 = vmatprep.subr.bf16.mxu0 0
        %3020 = vmatpush1.bf16.xpose.msra.mxu0 0
        %3021 = vmatprep.subr.bf16.mxu0 0
        %3022 = vmatpush1.bf16.xpose.msra.mxu0 0
        %3023 = vmatprep.subr.bf16.mxu0 0
        %3024 = vmatpush1.bf16.xpose.msra.mxu0 0
        %3025 = vmatprep.subr.bf16.mxu0 0
        %3026 = vmatpush1.bf16.xpose.msra.mxu0 0
        %3027 = vmatprep.subr.bf16.mxu0 0
        %3028 = vmatpush1.bf16.xpose.msra.mxu0 0
        %3029 = vmatprep.subr.bf16.mxu0 0
        %3030 = vmatpush1.bf16.xpose.msra.mxu0 0
        %3031 = vmatprep.subr.bf16.mxu0 0
        %3032 = vmatpush1.bf16.xpose.msra.mxu0 0
        %3033 = vmatprep.subr.bf16.mxu0 0
        %3034 = vmatpush1.bf16.xpose.msra.mxu0 0
        %3035 = vmatprep.subr.bf16.mxu0 0
        %3036 = vmatpush1.bf16.xpose.msra.mxu0 0
        %3037 = vmatprep.subr.bf16.mxu0 0
        %3038 = vmatpush1.bf16.xpose.msra.mxu0 0
        %3039 = vmatprep.mubr.bf16.mxu0 0
        %3040 = vmatmul.mubr.bf16.gmra.mrb[0].mxu0 %v3002
        %v3041 = vpop.f32.mrb[0].mxu0
        %v3042 = vadd.f32 0.0, %v3041
        %v3043 = vpop.f32.mrb[0].mxu0
        %v3044 = vpop.f32.mrb[0].mxu0
        %v3045 = vpop.f32.mrb[0].mxu0
        %3046 = vdwg.mxu0
        %v3048 = vsel %vm2298, %v2951, 0
        %v3051 = vsel %vm2298, %v2530, 0
        %3053 = vmatprep.subr.bf16.mxu0 0
        %3054 = vmatpush1.bf16.xpose.msra.mxu0 %v3051
        %3055 = vmatprep.subr.bf16.mxu0 0
        %3056 = vmatpush1.bf16.xpose.msra.mxu0 0
        %3057 = vmatprep.subr.bf16.mxu0 0
        %3058 = vmatpush1.bf16.xpose.msra.mxu0 0
        %3059 = vmatprep.subr.bf16.mxu0 0
        %3060 = vmatpush1.bf16.xpose.msra.mxu0 0
        %3061 = vmatprep.subr.bf16.mxu0 0
        %3062 = vmatpush1.bf16.xpose.msra.mxu0 0
        %3063 = vmatprep.subr.bf16.mxu0 0
        %3064 = vmatpush1.bf16.xpose.msra.mxu0 0
        %3065 = vmatprep.subr.bf16.mxu0 0
        %3066 = vmatpush1.bf16.xpose.msra.mxu0 0
        %3067 = vmatprep.subr.bf16.mxu0 0
        %3068 = vmatpush1.bf16.xpose.msra.mxu0 0
        %3069 = vmatprep.subr.bf16.mxu0 0
        %3070 = vmatpush1.bf16.xpose.msra.mxu0 0
        %3071 = vmatprep.subr.bf16.mxu0 0
        %3072 = vmatpush1.bf16.xpose.msra.mxu0 0
        %3073 = vmatprep.subr.bf16.mxu0 0
        %3074 = vmatpush1.bf16.xpose.msra.mxu0 0
        %3075 = vmatprep.subr.bf16.mxu0 0
        %3076 = vmatpush1.bf16.xpose.msra.mxu0 0
        %3077 = vmatprep.subr.bf16.mxu0 0
        %3078 = vmatpush1.bf16.xpose.msra.mxu0 0
        %3079 = vmatprep.subr.bf16.mxu0 0
        %3080 = vmatpush1.bf16.xpose.msra.mxu0 0
        %3081 = vmatprep.subr.bf16.mxu0 0
        %3082 = vmatpush1.bf16.xpose.msra.mxu0 0
        %3083 = vmatprep.subr.bf16.mxu0 0
        %3084 = vmatpush1.bf16.xpose.msra.mxu0 0
        %3085 = vmatprep.mubr.bf16.mxu0 0
        %3086 = vmatmul.mubr.bf16.gmra.mrb[0].mxu0 %v3048
        %v3087 = vpop.f32.mrb[0].mxu0
        %v3088 = vadd.f32 0.0, %v3087
        %v3089 = vpop.f32.mrb[0].mxu0
        %v3090 = vpop.f32.mrb[0].mxu0
        %v3091 = vpop.f32.mrb[0].mxu0
        %3092 = vdwg.mxu0
        %v3094 = vsel %vm2298, %v2954, 0
        %v3097 = vsel %vm2298, %v2531, 0
        %3099 = vmatprep.subr.bf16.mxu0 0
        %3100 = vmatpush1.bf16.xpose.msra.mxu0 %v3097
        %3101 = vmatprep.subr.bf16.mxu0 0
        %3102 = vmatpush1.bf16.xpose.msra.mxu0 0
        %3103 = vmatprep.subr.bf16.mxu0 0
        %3104 = vmatpush1.bf16.xpose.msra.mxu0 0
        %3105 = vmatprep.subr.bf16.mxu0 0
        %3106 = vmatpush1.bf16.xpose.msra.mxu0 0
        %3107 = vmatprep.subr.bf16.mxu0 0
        %3108 = vmatpush1.bf16.xpose.msra.mxu0 0
        %3109 = vmatprep.subr.bf16.mxu0 0
        %3110 = vmatpush1.bf16.xpose.msra.mxu0 0
        %3111 = vmatprep.subr.bf16.mxu0 0
        %3112 = vmatpush1.bf16.xpose.msra.mxu0 0
        %3113 = vmatprep.subr.bf16.mxu0 0
        %3114 = vmatpush1.bf16.xpose.msra.mxu0 0
        %3115 = vmatprep.subr.bf16.mxu0 0
        %3116 = vmatpush1.bf16.xpose.msra.mxu0 0
        %3117 = vmatprep.subr.bf16.mxu0 0
        %3118 = vmatpush1.bf16.xpose.msra.mxu0 0
        %3119 = vmatprep.subr.bf16.mxu0 0
        %3120 = vmatpush1.bf16.xpose.msra.mxu0 0
        %3121 = vmatprep.subr.bf16.mxu0 0
        %3122 = vmatpush1.bf16.xpose.msra.mxu0 0
        %3123 = vmatprep.subr.bf16.mxu0 0
        %3124 = vmatpush1.bf16.xpose.msra.mxu0 0
        %3125 = vmatprep.subr.bf16.mxu0 0
        %3126 = vmatpush1.bf16.xpose.msra.mxu0 0
        %3127 = vmatprep.subr.bf16.mxu0 0
        %3128 = vmatpush1.bf16.xpose.msra.mxu0 0
        %3129 = vmatprep.subr.bf16.mxu0 0
        %3130 = vmatpush1.bf16.xpose.msra.mxu0 0
        %3131 = vmatprep.mubr.bf16.mxu0 0
        %3132 = vmatmul.mubr.bf16.gmra.mrb[0].mxu0 %v3094
        %v3133 = vpop.f32.mrb[0].mxu0
        %v3134 = vadd.f32 0.0, %v3133
        %v3135 = vpop.f32.mrb[0].mxu0
        %v3136 = vpop.f32.mrb[0].mxu0
        %v3137 = vpop.f32.mrb[0].mxu0
        %3138 = vdwg.mxu0
        %3139 = vxpose.xlu0.b32.start [1/16] %v2996, 128
        %3140 = vxpose.xlu0.b32.cont [2/16] 0.0, 128
        %3141 = vxpose.xlu0.b32.cont [3/16] 0.0, 128
        %3142 = vxpose.xlu0.b32.cont [4/16] 0.0, 128
        %3143 = vxpose.xlu0.b32.cont [5/16] 0.0, 128
        %3144 = vxpose.xlu0.b32.cont [6/16] 0.0, 128
        %3145 = vxpose.xlu0.b32.cont [7/16] 0.0, 128
        %3146 = vxpose.xlu0.b32.cont [8/16] 0.0, 128
        %3147 = vxpose.xlu0.b32.cont [9/16] 0.0, 128
        %3148 = vxpose.xlu0.b32.cont [10/16] 0.0, 128
        %3149 = vxpose.xlu0.b32.cont [11/16] 0.0, 128
        %3150 = vxpose.xlu0.b32.cont [12/16] 0.0, 128
        %3151 = vxpose.xlu0.b32.cont [13/16] 0.0, 128
        %3152 = vxpose.xlu0.b32.cont [14/16] 0.0, 128
        %3153 = vxpose.xlu0.b32.cont [15/16] 0.0, 128
        %3154 = vxpose.xlu0.b32.end [16/16] 0.0, 128
        %v3155 = vpop.trf.xlu0
        %v3156 = vpop.trf.xlu0
        %v3157 = vpop.trf.xlu0
        %v3158 = vpop.trf.xlu0
        %v3159 = vpop.trf.xlu0
        %v3160 = vpop.trf.xlu0
        %v3161 = vpop.trf.xlu0
        %v3162 = vpop.trf.xlu0
        %v3163 = vpop.trf.xlu0
        %v3164 = vpop.trf.xlu0
        %v3165 = vpop.trf.xlu0
        %v3166 = vpop.trf.xlu0
        %v3167 = vpop.trf.xlu0
        %v3168 = vpop.trf.xlu0
        %v3169 = vpop.trf.xlu0
        %v3170 = vpop.trf.xlu0
        %3171 = vxpose.xlu0.b32.start [1/16] %v3042, 128
        %3172 = vxpose.xlu0.b32.cont [2/16] 0.0, 128
        %3173 = vxpose.xlu0.b32.cont [3/16] 0.0, 128
        %3174 = vxpose.xlu0.b32.cont [4/16] 0.0, 128
        %3175 = vxpose.xlu0.b32.cont [5/16] 0.0, 128
        %3176 = vxpose.xlu0.b32.cont [6/16] 0.0, 128
        %3177 = vxpose.xlu0.b32.cont [7/16] 0.0, 128
        %3178 = vxpose.xlu0.b32.cont [8/16] 0.0, 128
        %3179 = vxpose.xlu0.b32.cont [9/16] 0.0, 128
        %3180 = vxpose.xlu0.b32.cont [10/16] 0.0, 128
        %3181 = vxpose.xlu0.b32.cont [11/16] 0.0, 128
        %3182 = vxpose.xlu0.b32.cont [12/16] 0.0, 128
        %3183 = vxpose.xlu0.b32.cont [13/16] 0.0, 128
        %3184 = vxpose.xlu0.b32.cont [14/16] 0.0, 128
        %3185 = vxpose.xlu0.b32.cont [15/16] 0.0, 128
        %3186 = vxpose.xlu0.b32.end [16/16] 0.0, 128
        %v3187 = vpop.trf.xlu0
        %v3188 = vpop.trf.xlu0
        %v3189 = vpop.trf.xlu0
        %v3190 = vpop.trf.xlu0
        %v3191 = vpop.trf.xlu0
        %v3192 = vpop.trf.xlu0
        %v3193 = vpop.trf.xlu0
        %v3194 = vpop.trf.xlu0
        %v3195 = vpop.trf.xlu0
        %v3196 = vpop.trf.xlu0
        %v3197 = vpop.trf.xlu0
        %v3198 = vpop.trf.xlu0
        %v3199 = vpop.trf.xlu0
        %v3200 = vpop.trf.xlu0
        %v3201 = vpop.trf.xlu0
        %v3202 = vpop.trf.xlu0
        %3203 = vxpose.xlu0.b32.start [1/16] %v3088, 128
        %3204 = vxpose.xlu0.b32.cont [2/16] 0.0, 128
        %3205 = vxpose.xlu0.b32.cont [3/16] 0.0, 128
        %3206 = vxpose.xlu0.b32.cont [4/16] 0.0, 128
        %3207 = vxpose.xlu0.b32.cont [5/16] 0.0, 128
        %3208 = vxpose.xlu0.b32.cont [6/16] 0.0, 128
        %3209 = vxpose.xlu0.b32.cont [7/16] 0.0, 128
        %3210 = vxpose.xlu0.b32.cont [8/16] 0.0, 128
        %3211 = vxpose.xlu0.b32.cont [9/16] 0.0, 128
        %3212 = vxpose.xlu0.b32.cont [10/16] 0.0, 128
        %3213 = vxpose.xlu0.b32.cont [11/16] 0.0, 128
        %3214 = vxpose.xlu0.b32.cont [12/16] 0.0, 128
        %3215 = vxpose.xlu0.b32.cont [13/16] 0.0, 128
        %3216 = vxpose.xlu0.b32.cont [14/16] 0.0, 128
        %3217 = vxpose.xlu0.b32.cont [15/16] 0.0, 128
        %3218 = vxpose.xlu0.b32.end [16/16] 0.0, 128
        %v3219 = vpop.trf.xlu0
        %v3220 = vpop.trf.xlu0
        %v3221 = vpop.trf.xlu0
        %v3222 = vpop.trf.xlu0
        %v3223 = vpop.trf.xlu0
        %v3224 = vpop.trf.xlu0
        %v3225 = vpop.trf.xlu0
        %v3226 = vpop.trf.xlu0
        %v3227 = vpop.trf.xlu0
        %v3228 = vpop.trf.xlu0
        %v3229 = vpop.trf.xlu0
        %v3230 = vpop.trf.xlu0
        %v3231 = vpop.trf.xlu0
        %v3232 = vpop.trf.xlu0
        %v3233 = vpop.trf.xlu0
        %v3234 = vpop.trf.xlu0
        %3235 = vxpose.xlu0.b32.start [1/16] %v3134, 128
        %3236 = vxpose.xlu0.b32.cont [2/16] 0.0, 128
        %3237 = vxpose.xlu0.b32.cont [3/16] 0.0, 128
        %3238 = vxpose.xlu0.b32.cont [4/16] 0.0, 128
        %3239 = vxpose.xlu0.b32.cont [5/16] 0.0, 128
        %3240 = vxpose.xlu0.b32.cont [6/16] 0.0, 128
        %3241 = vxpose.xlu0.b32.cont [7/16] 0.0, 128
        %3242 = vxpose.xlu0.b32.cont [8/16] 0.0, 128
        %3243 = vxpose.xlu0.b32.cont [9/16] 0.0, 128
        %3244 = vxpose.xlu0.b32.cont [10/16] 0.0, 128
        %3245 = vxpose.xlu0.b32.cont [11/16] 0.0, 128
        %3246 = vxpose.xlu0.b32.cont [12/16] 0.0, 128
        %3247 = vxpose.xlu0.b32.cont [13/16] 0.0, 128
        %3248 = vxpose.xlu0.b32.cont [14/16] 0.0, 128
        %3249 = vxpose.xlu0.b32.cont [15/16] 0.0, 128
        %3250 = vxpose.xlu0.b32.end [16/16] 0.0, 128
        %v3251 = vpop.trf.xlu0
        %v3252 = vpop.trf.xlu0
        %v3253 = vpop.trf.xlu0
        %v3254 = vpop.trf.xlu0
        %v3255 = vpop.trf.xlu0
        %v3256 = vpop.trf.xlu0
        %v3257 = vpop.trf.xlu0
        %v3258 = vpop.trf.xlu0
        %v3259 = vpop.trf.xlu0
        %v3260 = vpop.trf.xlu0
        %v3261 = vpop.trf.xlu0
        %v3262 = vpop.trf.xlu0
        %v3263 = vpop.trf.xlu0
        %v3264 = vpop.trf.xlu0
        %v3265 = vpop.trf.xlu0
        %v3266 = vpop.trf.xlu0
        %v3267 = vcombine.low %v3155, %v3219
        %v3268 = vcombine.high %v3155, %v3219
        %v3270 = vunpack.c.l.s4 1983009808
        %v3271 = vunpack.c.0.s8 %v3270
        %v3272 = vlaneseq
        %v3273 = vshrl.u32 %v3272, 7
        %v3274 = vsub.s32 %v3271, %v3273
        %v3275 = vrot.slane %v3267, %v3274
        %v3277 = vunpack.c.l.s4 1983009808
        %v3278 = vunpack.c.0.s8 %v3277
        %v3279 = vlaneseq
        %v3280 = vshrl.u32 %v3279, 7
        %v3281 = vsub.s32 %v3278, %v3280
        %v3282 = vrot.slane %v3268, %v3281
        %v3283 = vcombine.low %v3187, %v3251
        %v3284 = vcombine.high %v3187, %v3251
        %v3286 = vunpack.c.l.s4 1983009808
        %v3287 = vunpack.c.0.s8 %v3286
        %v3288 = vlaneseq
        %v3289 = vshrl.u32 %v3288, 7
        %v3290 = vsub.s32 %v3287, %v3289
        %v3291 = vrot.slane %v3283, %v3290
        %v3293 = vunpack.c.l.s4 1983009808
        %v3294 = vunpack.c.0.s8 %v3293
        %v3295 = vlaneseq
        %v3296 = vshrl.u32 %v3295, 7
        %v3297 = vsub.s32 %v3294, %v3296
        %v3298 = vrot.slane %v3284, %v3297
        %v3299 = vcombine.low %v3275, %v3291
        %v3300 = vcombine.high %v3275, %v3291
        %v3302 = vunpack.c.l.s4 1934713408
        %v3303 = vunpack.c.0.s8 %v3302
        %v3304 = vlaneseq
        %v3305 = vshrl.u32 %v3304, 7
        %v3306 = vsub.s32 %v3303, %v3305
        %v3307 = vrot.slane %v3299, %v3306
        %v3309 = vunpack.c.l.s4 1934713408
        %v3310 = vunpack.c.0.s8 %v3309
        %v3311 = vlaneseq
        %v3312 = vshrl.u32 %v3311, 7
        %v3313 = vsub.s32 %v3310, %v3312
        %v3314 = vrot.slane %v3300, %v3313
        %v3315 = vcombine.low %v3282, %v3298
        %v3316 = vcombine.high %v3282, %v3298
        %v3318 = vunpack.c.l.s4 1934713408
        %v3319 = vunpack.c.0.s8 %v3318
        %v3320 = vlaneseq
        %v3321 = vshrl.u32 %v3320, 7
        %v3322 = vsub.s32 %v3319, %v3321
        %v3323 = vrot.slane %v3315, %v3322
        %v3325 = vunpack.c.l.s4 1934713408
        %v3326 = vunpack.c.0.s8 %v3325
        %v3327 = vlaneseq
        %v3328 = vshrl.u32 %v3327, 7
        %v3329 = vsub.s32 %v3326, %v3328
        %v3330 = vrot.slane %v3316, %v3329
        %v3331 = vcombine.high %v3307, 0.0
        %v3332 = vcombine.high %v3314, 0.0
        %v3333 = vcombine.high %v3323, 0.0
        %v3334 = vcombine.high %v3330, 0.0
        %v3335 = vld [vmem:[#allocation2] sm:$0xff]
        %v3336 = vcombine.low %v3307, %v3314
        %v3338 = vunpack.c.l.s4 1983009808
        %v3339 = vunpack.c.0.s8 %v3338
        %v3340 = vlaneseq
        %v3341 = vshrl.u32 %v3340, 7
        %v3342 = vsub.s32 %v3339, %v3341
        %v3343 = vrot.slane %v3336, %v3342
        %v3344 = vcombine.low %v3331, %v3332
        %v3346 = vunpack.c.l.s4 1983009808
        %v3347 = vunpack.c.0.s8 %v3346
        %v3348 = vlaneseq
        %v3349 = vshrl.u32 %v3348, 7
        %v3350 = vsub.s32 %v3347, %v3349
        %v3351 = vrot.slane %v3344, %v3350
        %v3352 = vcombine.low %v3323, %v3330
        %v3354 = vunpack.c.l.s4 1983009808
        %v3355 = vunpack.c.0.s8 %v3354
        %v3356 = vlaneseq
        %v3357 = vshrl.u32 %v3356, 7
        %v3358 = vsub.s32 %v3355, %v3357
        %v3359 = vrot.slane %v3352, %v3358
        %v3360 = vcombine.low %v3333, %v3334
        %v3362 = vunpack.c.l.s4 1983009808
        %v3363 = vunpack.c.0.s8 %v3362
        %v3364 = vlaneseq
        %v3365 = vshrl.u32 %v3364, 7
        %v3366 = vsub.s32 %v3363, %v3365
        %v3367 = vrot.slane %v3360, %v3366
        %v3368 = vcombine.low %v3343, %v3351
        %v3369 = vcombine.high %v3343, %v3351
        %v3371 = vunpack.c.l.s4 1934713408
        %v3372 = vunpack.c.0.s8 %v3371
        %v3373 = vlaneseq
        %v3374 = vshrl.u32 %v3373, 7
        %v3375 = vsub.s32 %v3372, %v3374
        %v3376 = vrot.slane %v3368, %v3375
        %v3378 = vunpack.c.l.s4 1934713408
        %v3379 = vunpack.c.0.s8 %v3378
        %v3380 = vlaneseq
        %v3381 = vshrl.u32 %v3380, 7
        %v3382 = vsub.s32 %v3379, %v3381
        %v3383 = vrot.slane %v3369, %v3382
        %v3384 = vcombine.low %v3359, %v3367
        %v3385 = vcombine.high %v3359, %v3367
        %v3387 = vunpack.c.l.s4 1934713408
        %v3388 = vunpack.c.0.s8 %v3387
        %v3389 = vlaneseq
        %v3390 = vshrl.u32 %v3389, 7
        %v3391 = vsub.s32 %v3388, %v3390
        %v3392 = vrot.slane %v3384, %v3391
        %v3394 = vunpack.c.l.s4 1934713408
        %v3395 = vunpack.c.0.s8 %v3394
        %v3396 = vlaneseq
        %v3397 = vshrl.u32 %v3396, 7
        %v3398 = vsub.s32 %v3395, %v3397
        %v3399 = vrot.slane %v3385, %v3398
        %v3400 = vcombine.low %v3376, %v3392
        %v3401 = vcombine.high %v3376, %v3392
        %v3402 = vcombine.low %v3383, %v3399
        %v3403 = vcombine.high %v3383, %v3399
        %3405 = vrot.lane.b32.xlu0 %v3401, 8
        %v3406 = vpop.permute.xlu0 %3405
        %3409 = vrot.lane.b32.xlu0 %v3402, 16
        %v3410 = vpop.permute.xlu0 %3409
        %3413 = vrot.lane.b32.xlu0 %v3403, 24
        %v3414 = vpop.permute.xlu0 %3413
        %v3416 = vsel %vm2298, %v3400, %v3406
        %vm3417 = vcmask 130048
        %v3418 = vsel %vm3417, %v3416, %v3410
        %vm3419 = vcmask 195584
        %v3420 = vsel %vm3419, %v3418, %v3414
        %v3421 = vpack.c.bf16 %v3420, %v3420
        %v3422 = vld [vmem:[%s771] sm:$0xf]
        %v3423 = vld [vmem:[%s771 + $0x4] sm:$0xf]
        %v3424 = vld [vmem:[%s771 + $0x8] sm:$0xf]
        %v3425 = vld [vmem:[%s771 + $0xc] sm:$0xf]
        %v3430 = vunpack.c.l.b16 %v3422
        %v3431 = vunpack.c.l.b16 %v3423
        %v3432 = vunpack.c.l.b16 %v3424
        %v3433 = vunpack.c.l.b16 %v3425
        %v3434 = vpack.c.b16 %v3431, %v3430
        %v3435 = vpack.c.b16 %v3433, %v3432
        %v3439 = vsel %vm798, %v3421, 0
        %3441 = vmatprep.subr.bf16.mxu0 0
        %3442 = vmatpush1.bf16.msra.mxu0 %v3434
        %3443 = vmatprep.subr.bf16.mxu0 0
        %3444 = vmatpush1.bf16.msra.mxu0 %v3435
        %3445 = vmatprep.subr.bf16.mxu0 0
        %3446 = vmatpush1.bf16.msra.mxu0 0
        %3447 = vmatprep.subr.bf16.mxu0 0
        %3448 = vmatpush1.bf16.msra.mxu0 0
        %3449 = vmatprep.subr.bf16.mxu0 0
        %3450 = vmatpush1.bf16.msra.mxu0 0
        %3451 = vmatprep.subr.bf16.mxu0 0
        %3452 = vmatpush1.bf16.msra.mxu0 0
        %3453 = vmatprep.subr.bf16.mxu0 0
        %3454 = vmatpush1.bf16.msra.mxu0 0
        %3455 = vmatprep.subr.bf16.mxu0 0
        %3456 = vmatpush1.bf16.msra.mxu0 0
        %3457 = vmatprep.subr.bf16.mxu0 0
        %3458 = vmatpush1.bf16.msra.mxu0 0
        %3459 = vmatprep.subr.bf16.mxu0 0
        %3460 = vmatpush1.bf16.msra.mxu0 0
        %3461 = vmatprep.subr.bf16.mxu0 0
        %3462 = vmatpush1.bf16.msra.mxu0 0
        %3463 = vmatprep.subr.bf16.mxu0 0
        %3464 = vmatpush1.bf16.msra.mxu0 0
        %3465 = vmatprep.subr.bf16.mxu0 0
        %3466 = vmatpush1.bf16.msra.mxu0 0
        %3467 = vmatprep.subr.bf16.mxu0 0
        %3468 = vmatpush1.bf16.msra.mxu0 0
        %3469 = vmatprep.subr.bf16.mxu0 0
        %3470 = vmatpush1.bf16.msra.mxu0 0
        %3471 = vmatprep.subr.bf16.mxu0 0
        %3472 = vmatpush1.bf16.msra.mxu0 0
        %3473 = vmatprep.mubr.bf16.mxu0 0
        %3474 = vmatmul.mubr.bf16.gmra.mrb[0].mxu0 %v3439
        %v3475 = vpop.f32.mrb[0].mxu0
        %v3476 = vadd.f32 0.0, %v3475
        %v3477 = vpop.f32.mrb[0].mxu0
        %v3478 = vpop.f32.mrb[0].mxu0
        %v3479 = vpop.f32.mrb[0].mxu0
        %3480 = vdwg.mxu0
        %v3481 = vadd.f32 %v3335, %v3476
        %3482 = vst.msk [vmem:[#allocation2] sm:$0xff] %vm798, %v3481
        // Predicated region
        $region109: #{tpu_custom_call.1} parent=95 // pred_check
          %p3483 = pneg %p775
        $region110: #{tpu_custom_call.1} parent=95 // pred_check_branch
          %3485 = sbr.rel (%p3483) target = $region112
        $region111: #{tpu_custom_call.1} parent=95 // pred_region
          %v3486 = vld [vmem:[%s754] sm:$0xff]
          %v3487 = vld [vmem:[#allocation2] sm:$0xff]
          %v3488 = vadd.f32 %v3486, %v3487
          %v3489 = vld [vmem:[%s11] sm:$0x1]
          %v3490 = vld [vmem:[%s12] sm:$0x1]
          %v3491 = vsel %vm798, %v3488, 0.0
          %3492 = vadd.xlane.f32.xlu0 %v3491
          %v3493 = vpop.xlane.xlu0 %3492
          %v3494 = vrcp.pop 32.0
          %v3495 = vmul.f32 %v3493, %v3494
          %v3496 = vsub.f32 %v3488, %v3495
          %v3497 = vmul.f32 %v3496, %v3496
          %v3498 = vsel %vm798, %v3497, 0.0
          %3499 = vadd.xlane.f32.xlu0 %v3498
          %v3500 = vpop.xlane.xlu0 %3499
          %v3501 = vmul.f32 %v3500, %v3494
          %v3502 = vadd.f32 %v3501, 1e-05
          %v3503 = vrsqrt.pop %v3502
          %v3504 = vmul.f32 %v3496, %v3503
          %v3506 = vlaneseq
          %v3507 = vshrl.u32 %v3506, 7
          %v3508 = vsub.s32 0, %v3507
          %v3509 = vrot.slane %v3489, %v3508
          %v3511 = vmul.f32 %v3504, %v3509
          %v3513 = vlaneseq
          %v3514 = vshrl.u32 %v3513, 7
          %v3515 = vsub.s32 0, %v3514
          %v3516 = vrot.slane %v3490, %v3515
          %v3518 = vadd.f32 %v3511, %v3516
          %v3519 = vpack.c.bf16 %v3518, %v3518
          %v3520 = vld [vmem:[%s15] sm:$0xf]
          %v3521 = vld [vmem:[%s15 + $0x4] sm:$0xf]
          %v3522 = vld [vmem:[%s15 + $0x8] sm:$0xf]
          %v3523 = vld [vmem:[%s15 + $0xc] sm:$0xf]
          %v3524 = vld [vmem:[%s16] sm:$0x1]
          %v3526 = vlaneseq
          %v3527 = vshrl.u32 %v3526, 7
          %v3528 = vsub.s32 0, %v3527
          %v3529 = vrot.slane %v3524, %v3528
          %v3535 = vunpack.c.l.b16 %v3520
          %v3536 = vunpack.c.l.b16 %v3521
          %v3537 = vunpack.c.l.b16 %v3522
          %v3538 = vunpack.c.l.b16 %v3523
          %v3539 = vpack.c.b16 %v3536, %v3535
          %v3540 = vpack.c.b16 %v3538, %v3537
          %v3544 = vsel %vm798, %v3519, 0
          %3546 = vmatprep.subr.bf16.mxu0 0
          %3547 = vmatpush1.bf16.msra.mxu0 %v3539
          %3548 = vmatprep.subr.bf16.mxu0 0
          %3549 = vmatpush1.bf16.msra.mxu0 %v3540
          %3550 = vmatprep.subr.bf16.mxu0 0
          %3551 = vmatpush1.bf16.msra.mxu0 0
          %3552 = vmatprep.subr.bf16.mxu0 0
          %3553 = vmatpush1.bf16.msra.mxu0 0
          %3554 = vmatprep.subr.bf16.mxu0 0
          %3555 = vmatpush1.bf16.msra.mxu0 0
          %3556 = vmatprep.subr.bf16.mxu0 0
          %3557 = vmatpush1.bf16.msra.mxu0 0
          %3558 = vmatprep.subr.bf16.mxu0 0
          %3559 = vmatpush1.bf16.msra.mxu0 0
          %3560 = vmatprep.subr.bf16.mxu0 0
          %3561 = vmatpush1.bf16.msra.mxu0 0
          %3562 = vmatprep.subr.bf16.mxu0 0
          %3563 = vmatpush1.bf16.msra.mxu0 0
          %3564 = vmatprep.subr.bf16.mxu0 0
          %3565 = vmatpush1.bf16.msra.mxu0 0
          %3566 = vmatprep.subr.bf16.mxu0 0
          %3567 = vmatpush1.bf16.msra.mxu0 0
          %3568 = vmatprep.subr.bf16.mxu0 0
          %3569 = vmatpush1.bf16.msra.mxu0 0
          %3570 = vmatprep.subr.bf16.mxu0 0
          %3571 = vmatpush1.bf16.msra.mxu0 0
          %3572 = vmatprep.subr.bf16.mxu0 0
          %3573 = vmatpush1.bf16.msra.mxu0 0
          %3574 = vmatprep.subr.bf16.mxu0 0
          %3575 = vmatpush1.bf16.msra.mxu0 0
          %3576 = vmatprep.subr.bf16.mxu0 0
          %3577 = vmatpush1.bf16.msra.mxu0 0
          %3578 = vmatprep.mubr.bf16.mxu0 0
          %3579 = vmatmul.mubr.bf16.gmra.mrb[0].mxu0 %v3544
          %v3580 = vpop.f32.mrb[0].mxu0
          %v3581 = vadd.f32 %v3529, %v3580
          %v3582 = vpop.f32.mrb[0].mxu0
          %v3583 = vpop.f32.mrb[0].mxu0
          %v3584 = vpop.f32.mrb[0].mxu0
          %3585 = vdwg.mxu0
          %v3586 = vmul.f32 %v3581, %v3581
          %v3587 = vmul.f32 %v3581, %v3586
          %v3588 = vmul.f32 %v3587, 0.044715
          %v3589 = vadd.f32 %v3581, %v3588
          %v3590 = vmul.f32 %v3589, 0.7978846
          %v3591 = vtanh.pop %v3590
          %v3592 = vadd.f32 %v3591, 1.0
          %v3593 = vmul.f32 %v3592, 0.5
          %v3594 = vmul.f32 %v3581, %v3593
          %v3595 = vpack.c.bf16 %v3594, %v3594
          %v3596 = vld [vmem:[%s17] sm:$0xf]
          %v3597 = vld [vmem:[%s17 + $0x4] sm:$0xf]
          %v3598 = vld [vmem:[%s17 + $0x8] sm:$0xf]
          %v3599 = vld [vmem:[%s17 + $0xc] sm:$0xf]
          %v3600 = vld [vmem:[%s17 + $0x10] sm:$0xf]
          %v3601 = vld [vmem:[%s17 + $0x14] sm:$0xf]
          %v3602 = vld [vmem:[%s17 + $0x18] sm:$0xf]
          %v3603 = vld [vmem:[%s17 + $0x1c] sm:$0xf]
          %v3604 = vld [vmem:[%s17 + $0x20] sm:$0xf]
          %v3605 = vld [vmem:[%s17 + $0x24] sm:$0xf]
          %v3606 = vld [vmem:[%s17 + $0x28] sm:$0xf]
          %v3607 = vld [vmem:[%s17 + $0x2c] sm:$0xf]
          %v3608 = vld [vmem:[%s17 + $0x30] sm:$0xf]
          %v3609 = vld [vmem:[%s17 + $0x34] sm:$0xf]
          %v3610 = vld [vmem:[%s17 + $0x38] sm:$0xf]
          %v3611 = vld [vmem:[%s17 + $0x3c] sm:$0xf]
          %v3612 = vld [vmem:[%s18] sm:$0x1]
          %v3614 = vlaneseq
          %v3615 = vshrl.u32 %v3614, 7
          %v3616 = vsub.s32 0, %v3615
          %v3617 = vrot.slane %v3612, %v3616
          %v3635 = vunpack.c.l.b16 %v3596
          %v3636 = vunpack.c.l.b16 %v3597
          %v3637 = vunpack.c.l.b16 %v3598
          %v3638 = vunpack.c.l.b16 %v3599
          %v3639 = vunpack.c.l.b16 %v3600
          %v3640 = vunpack.c.l.b16 %v3601
          %v3641 = vunpack.c.l.b16 %v3602
          %v3642 = vunpack.c.l.b16 %v3603
          %v3643 = vunpack.c.l.b16 %v3604
          %v3644 = vunpack.c.l.b16 %v3605
          %v3645 = vunpack.c.l.b16 %v3606
          %v3646 = vunpack.c.l.b16 %v3607
          %v3647 = vunpack.c.l.b16 %v3608
          %v3648 = vunpack.c.l.b16 %v3609
          %v3649 = vunpack.c.l.b16 %v3610
          %v3650 = vunpack.c.l.b16 %v3611
          %v3651 = vpack.c.b16 %v3636, %v3635
          %v3652 = vpack.c.b16 %v3638, %v3637
          %v3653 = vpack.c.b16 %v3640, %v3639
          %v3654 = vpack.c.b16 %v3642, %v3641
          %v3655 = vpack.c.b16 %v3644, %v3643
          %v3656 = vpack.c.b16 %v3646, %v3645
          %v3657 = vpack.c.b16 %v3648, %v3647
          %v3658 = vpack.c.b16 %v3650, %v3649
          %3667 = vmatprep.subr.bf16.mxu0 0
          %3668 = vmatpush1.bf16.msra.mxu0 %v3651
          %3669 = vmatprep.subr.bf16.mxu0 0
          %3670 = vmatpush1.bf16.msra.mxu0 %v3652
          %3671 = vmatprep.subr.bf16.mxu0 0
          %3672 = vmatpush1.bf16.msra.mxu0 %v3653
          %3673 = vmatprep.subr.bf16.mxu0 0
          %3674 = vmatpush1.bf16.msra.mxu0 %v3654
          %3675 = vmatprep.subr.bf16.mxu0 0
          %3676 = vmatpush1.bf16.msra.mxu0 %v3655
          %3677 = vmatprep.subr.bf16.mxu0 0
          %3678 = vmatpush1.bf16.msra.mxu0 %v3656
          %3679 = vmatprep.subr.bf16.mxu0 0
          %3680 = vmatpush1.bf16.msra.mxu0 %v3657
          %3681 = vmatprep.subr.bf16.mxu0 0
          %3682 = vmatpush1.bf16.msra.mxu0 %v3658
          %3683 = vmatprep.subr.bf16.mxu0 0
          %3684 = vmatpush1.bf16.msra.mxu0 0
          %3685 = vmatprep.subr.bf16.mxu0 0
          %3686 = vmatpush1.bf16.msra.mxu0 0
          %3687 = vmatprep.subr.bf16.mxu0 0
          %3688 = vmatpush1.bf16.msra.mxu0 0
          %3689 = vmatprep.subr.bf16.mxu0 0
          %3690 = vmatpush1.bf16.msra.mxu0 0
          %3691 = vmatprep.subr.bf16.mxu0 0
          %3692 = vmatpush1.bf16.msra.mxu0 0
          %3693 = vmatprep.subr.bf16.mxu0 0
          %3694 = vmatpush1.bf16.msra.mxu0 0
          %3695 = vmatprep.subr.bf16.mxu0 0
          %3696 = vmatpush1.bf16.msra.mxu0 0
          %3697 = vmatprep.subr.bf16.mxu0 0
          %3698 = vmatpush1.bf16.msra.mxu0 0
          %3699 = vmatprep.mubr.bf16.mxu0 0
          %3700 = vmatmul.mubr.bf16.gmra.mrb[0].mxu0 %v3595
          %v3701 = vpop.f32.mrb[0].mxu0
          %v3702 = vadd.f32 %v3617, %v3701
          %v3703 = vpop.f32.mrb[0].mxu0
          %v3704 = vpop.f32.mrb[0].mxu0
          %v3705 = vpop.f32.mrb[0].mxu0
          %3706 = vdwg.mxu0
          %v3707 = vadd.f32 %v3518, %v3702
          %v3708 = vld [vmem:[%s13] sm:$0x1]
          %v3709 = vld [vmem:[%s14] sm:$0x1]
          %v3710 = vsel %vm798, %v3707, 0.0
          %3711 = vadd.xlane.f32.xlu0 %v3710
          %v3712 = vpop.xlane.xlu0 %3711
          %v3713 = vmul.f32 %v3712, %v3494
          %v3714 = vsub.f32 %v3707, %v3713
          %v3715 = vmul.f32 %v3714, %v3714
          %v3716 = vsel %vm798, %v3715, 0.0
          %3717 = vadd.xlane.f32.xlu0 %v3716
          %v3718 = vpop.xlane.xlu0 %3717
          %v3719 = vmul.f32 %v3718, %v3494
          %v3720 = vadd.f32 %v3719, 1e-05
          %v3721 = vrsqrt.pop %v3720
          %v3722 = vmul.f32 %v3714, %v3721
          %v3724 = vlaneseq
          %v3725 = vshrl.u32 %v3724, 7
          %v3726 = vsub.s32 0, %v3725
          %v3727 = vrot.slane %v3708, %v3726
          %v3729 = vmul.f32 %v3722, %v3727
          %v3731 = vlaneseq
          %v3732 = vshrl.u32 %v3731, 7
          %v3733 = vsub.s32 0, %v3732
          %v3734 = vrot.slane %v3709, %v3733
          %v3736 = vadd.f32 %v3729, %v3734
          %3737 = vst.msk [vmem:[%s743] sm:$0xff] %vm798, %v3736
        $region112: #{tpu_custom_call.1} parent=95 // pred_fallthru
          _
        %s3738 = sand.u32 %s491, 1
        %s3739 = scalar_lea.sflag [#allocation5], %s3738
        %s3740 = sand.u32 %s491, 1
        %s3741 = smul.addr %s3740, 8
        %s3742 = scalar_lea.vmem [#allocation8], %s3741
        %s3743 = sand.u32 %s519, 1
        %s3744 = scalar_lea.sflag [#allocation10], %s3743
        %s3745 = sand.u32 %s519, 1
        %s3746 = smul.addr %s3745, 16
        %s3747 = scalar_lea.vmem [#allocation9], %s3746
        // Predicated region
        $region113: #{tpu_custom_call.1} parent=95 // pred_check
          %p3748 = pneg %p501
        $region114: #{tpu_custom_call.1} parent=95 // pred_check_branch
          %3750 = sbr.rel (%p3748) target = $region116
        $region115: #{tpu_custom_call.1} parent=95 // pred_region
          %s3752 = ssub.s32 128, 128
          %3753 = vsyncadd %s3739, %s3752
          %s3754 = smul.addr %s46, 128
          %s3755 = scalar_lea.hbm %s19, %s3754
          %s3757 = sshll.u32 %s3742, 4
          %s3758 = int_to_ptr.vmem [resolvable:$true] %s3757
          %3760 = dma.vmem_to_hbm [thread:$0]  %s3758, 128, %s3755, %s3739
        $region116: #{tpu_custom_call.1} parent=95 // pred_fallthru
          _
        // Predicated region
        $region117: #{tpu_custom_call.1} parent=95 // pred_check
          %p3761 = pneg %p529
        $region118: #{tpu_custom_call.1} parent=95 // pred_check_branch
          %3763 = sbr.rel (%p3761) target = $region120
        $region119: #{tpu_custom_call.1} parent=95 // pred_region
          %s3764 = smul.u32 4, %s47
          %s3766 = ssub.s32 256, 256
          %3767 = vsyncadd %s3744, %s3766
          %s3768 = smul.addr %s46, 4
          %s3769 = sadd.s32 %s3764, %s3768
          %s3770 = smul.addr %s3769, 64
          %s3771 = scalar_lea.hbm %s20, %s3770
          %s3772 = sshll.u32 %s3747, 4
          %s3773 = int_to_ptr.vmem [resolvable:$true] %s3772
          %3778 = dma.vmem_to_hbm [thread:$0]  %s3773, 256, %s3771, %s3744, 64, 64, 4
        $region120: #{tpu_custom_call.1} parent=95 // pred_fallthru
          _
      $region96: #{tpu_custom_call.1} parent=5 // pred_fallthru
        _
      %p3779 = scmp.le.s32.totalorder 2, %s37
      // Predicated region
      $region121: #{tpu_custom_call.1} parent=5 // pred_check
        %p3780 = pneg %p3779
      $region122: #{tpu_custom_call.1} parent=5 // pred_check_branch
        %3782 = sbr.rel (%p3780) target = $region124
      $region123: #{tpu_custom_call.1} parent=5 // pred_region
        %s3783 = ssub.s32 %s37, 2
        // Predicated region
        $region125: #{tpu_custom_call.1} parent=123 // pred_check
          %p3784 = pneg %p507
        $region126: #{tpu_custom_call.1} parent=123 // pred_check_branch
          %3786 = sbr.rel (%p3784) target = $region128
        $region127: #{tpu_custom_call.1} parent=123 // pred_region
          %s3787 = sand.u32 %s492, 1
          %s3788 = scalar_lea.sflag [#allocation5], %s3787
          %s3789 = sand.u32 %s492, 1
          %s3790 = smul.addr %s3789, 8
          %s3791 = scalar_lea.vmem [#allocation8], %s3790
          %3792 = dma.done %s3788, 128
        $region128: #{tpu_custom_call.1} parent=123 // pred_fallthru
          _
        // Predicated region
        $region129: #{tpu_custom_call.1} parent=123 // pred_check
          %p3793 = pneg %p535
        $region130: #{tpu_custom_call.1} parent=123 // pred_check_branch
          %3795 = sbr.rel (%p3793) target = $region132
        $region131: #{tpu_custom_call.1} parent=123 // pred_region
          %s3796 = sand.u32 %s520, 1
          %s3797 = scalar_lea.sflag [#allocation10], %s3796
          %s3798 = sand.u32 %s520, 1
          %s3799 = smul.addr %s3798, 16
          %s3800 = scalar_lea.vmem [#allocation9], %s3799
          %3801 = dma.done %s3797, 256
        $region132: #{tpu_custom_call.1} parent=123 // pred_fallthru
          _
      $region124: #{tpu_custom_call.1} parent=5 // pred_fallthru
        _
    $region6: #{tpu_custom_call.1} parent=1 // loop_footer
      %s41 = sadd.s32 1, %s37
    $region7: #{tpu_custom_call.1} parent=1 // loop_footer_branch
      %36 = sbr.rel target = $region3
    $region8: #{tpu_custom_call.1} parent=1 // loop_exit
      _
    %3802 = vsyncpa [#allocation4], 1
    %s3803 = scalar_lea.sflag [#allocation4], 1
    %3804 = vsyncpa %s3803, 1
    %3805 = vsyncpa [#allocation7], 1
    %3806 = vsyncpa [#allocation5], 1
    %s3807 = scalar_lea.sflag [#allocation5], 1
    %3808 = vsyncpa %s3807, 1
    %3809 = vsyncpa [#allocation10], 1
    %s3810 = scalar_lea.sflag [#allocation10], 1
    %3811 = vsyncpa %s3810, 1

</llo_original>
